<compile_context>
chip_gen: v7x
topology: tpu7x:2x2x1
jax: 0.10.0
libtpu: 0.0.40
codegen_flags: <defaults>
</compile_context>

<pallas_src>
import functools
import math

import jax
import jax.numpy as jnp
from jax.experimental import pallas as pl
from jax.experimental.pallas import tpu as pltpu

# ---------------- problem sizes (small, consistent with the module) ---------
B, S, D = 2, 8, 32          # batch, sequence length, d_model (= layer.size)
H = 4                       # attention heads
DH = D // H                 # per-head dim
DFF = 64                    # feed-forward hidden dim
N_LAYERS = 2                # Encoder N_layers
EPS = 1e-6                  # LayerNorm eps (matches the PyTorch module)
LANES = 128                 # packed f32 parameter slab row width


# ---------------- in-kernel LayerNorm (Annotated-Transformer semantics) -----
def _layernorm(v, a, b, d):
    # torch: mean over last dim; std with Bessel correction (d-1); eps on std.
    mean = jnp.mean(v, axis=-1, keepdims=True)
    var = jnp.sum((v - mean) ** 2, axis=-1, keepdims=True) * (1.0 / (d - 1))
    inv = pl.reciprocal(jnp.sqrt(var) + EPS, approx=True)
    return a * (v - mean) * inv + b


# ---------------- fused encoder kernel (all layers + final norm) ------------
def _encoder_kernel(x_ref, wqkv_ref, wo_ref, w1_ref, w2_ref, scal_ref, o_ref,
                    *, b, s, d, h, dff, n_layers):
    dh = d // h
    bs = b * s
    scale = 1.0 / math.sqrt(dh)

    x = x_ref[...]                                   # (bs, d) f32 activation

    for l in range(n_layers):                        # static unroll; weights resident
        sc = scal_ref[8 * l:8 * l + 8, :]            # (8, 128) per-layer vectors
        b_qkv = sc[0:1, 0:3 * d]
        b_o = sc[1:2, 0:d]
        b_1 = sc[2:3, 0:dff]
        b_2 = sc[3:4, 0:d]
        ln1_a, ln1_b = sc[4:5, 0:d], sc[5:6, 0:d]
        ln2_a, ln2_b = sc[6:7, 0:d], sc[7:8, 0:d]

        # ---- sublayer 1: x + MultiHeadSelfAttention(LayerNorm(x)), mask=None
        ln1 = _layernorm(x, ln1_a, ln1_b, d)
        qkv = jnp.dot(ln1, wqkv_ref[l],
                      preferred_element_type=jnp.float32) + b_qkv   # (bs, 3d)

        # head split: (bs, d) slab -> (h*b, s, dh), batch index n = head*b + batch
        def split(start):
            return jnp.concatenate(
                [qkv[:, start + hh * dh:start + (hh + 1) * dh].reshape(b, s, dh)
                 for hh in range(h)], axis=0)
        q3, k3, v3 = split(0), split(d), split(2 * d)

        # single batched attention: one scores einsum / one softmax / one p@v
        scores = jnp.einsum('nqd,nkd->nqk', q3, k3,
                            preferred_element_type=jnp.float32) * scale
        m = jnp.max(scores, axis=-1, keepdims=True)
        e = jnp.exp(scores - m)
        p = e * pl.reciprocal(jnp.sum(e, axis=-1, keepdims=True), approx=True)
        ctx = jnp.einsum('nqk,nkd->nqd', p, v3,
                         preferred_element_type=jnp.float32)        # (h*b, s, dh)

        # merge heads back to (bs, d) and apply W_O in its original layout
        ctx2 = jnp.concatenate(
            [ctx[hh * b:(hh + 1) * b].reshape(bs, dh) for hh in range(h)], axis=1)
        att = jnp.dot(ctx2, wo_ref[l],
                      preferred_element_type=jnp.float32) + b_o
        x = x + att

        # ---- sublayer 2: x + PositionwiseFeedForward(LayerNorm(x)) ---------
        ln2 = _layernorm(x, ln2_a, ln2_b, d)
        h1 = jnp.maximum(jnp.dot(ln2, w1_ref[l],
                                 preferred_element_type=jnp.float32) + b_1, 0.0)
        ff = jnp.dot(h1, w2_ref[l],
                     preferred_element_type=jnp.float32) + b_2
        x = x + ff

    # final Encoder.norm, single HBM writeback
    f_a = scal_ref[8 * n_layers:8 * n_layers + 1, 0:d]
    f_b = scal_ref[8 * n_layers + 1:8 * n_layers + 2, 0:d]
    o_ref[...] = _layernorm(x, f_a, f_b, d).astype(o_ref.dtype)


# ---------------- wrapper ----------------------------------------------------
def encoder_forward(x, params):
    """Encoder.forward: x:(B,S,D) -> (B,S,D); all layers + final norm fused."""
    b, s, d = x.shape
    bs = b * s
    kernel = functools.partial(_encoder_kernel, b=b, s=s, d=d, h=H, dff=DFF,
                               n_layers=N_LAYERS)
    vmem = pl.BlockSpec(memory_space=pltpu.MemorySpace.VMEM)   # whole array in VMEM

    out = pl.pallas_call(
        kernel,
        out_shape=jax.ShapeDtypeStruct((bs, d), jnp.float32),
        in_specs=[vmem] * 6,
        out_specs=vmem,
    )(x.reshape(bs, d),
      params['wqkv'], params['wo'], params['w1'], params['w2'], params['scal'])
    return out.reshape(b, s, d)


# ---------------- deterministic parameter construction ------------------------
def init_params(key):
    s_d = 1.0 / math.sqrt(D)
    s_f = 1.0 / math.sqrt(DFF)
    wqkv, wo, w1, w2 = [], [], [], []
    for lk in jax.random.split(key, N_LAYERS):
        k = jax.random.split(lk, 6)
        wq = jax.random.normal(k[0], (D, D), jnp.float32) * s_d
        wk = jax.random.normal(k[1], (D, D), jnp.float32) * s_d
        wv = jax.random.normal(k[2], (D, D), jnp.float32) * s_d
        wo_l = jax.random.normal(k[3], (D, D), jnp.float32) * s_d
        w1_l = jax.random.normal(k[4], (D, DFF), jnp.float32) * s_d
        w2_l = jax.random.normal(k[5], (DFF, D), jnp.float32) * s_f
        wqkv.append(jnp.concatenate([wq, wk, wv], axis=1))   # (D, 3D) packed Q/K/V
        wo.append(wo_l)                                      # (D, D) original layout
        w1.append(w1_l)
        w2.append(w2_l)

    # Packed small f32 params, one lane-0-aligned 128-wide row each.
    # Per layer (8 rows): [b_qkv | b_o | b_1 | b_2 | ln1_a | ln1_b | ln2_a | ln2_b]
    # Trailing 2 rows:    [fnorm_a | fnorm_b]  (Encoder.norm)
    def row(vec):
        out = jnp.zeros((LANES,), jnp.float32)
        return out.at[:vec.shape[0]].set(vec)

    ones_d = jnp.ones((D,), jnp.float32)
    zeros_d = jnp.zeros((D,), jnp.float32)
    rows = []
    for _ in range(N_LAYERS):
        rows += [row(jnp.zeros((3 * D,), jnp.float32)),   # b_qkv (Linear biases = 0)
                 row(zeros_d),                            # b_o
                 row(jnp.zeros((DFF,), jnp.float32)),     # b_1
                 row(zeros_d),                            # b_2
                 row(ones_d), row(zeros_d),               # LayerNorm1 a_2, b_2
                 row(ones_d), row(zeros_d)]               # LayerNorm2 a_2, b_2
    rows += [row(ones_d), row(zeros_d)]                   # final Encoder.norm a_2, b_2
    scal = jnp.stack(rows)                                # (N_LAYERS*8 + 2, 128)

    return {
        'wqkv': jnp.stack(wqkv),   # (N, D, 3D)   f32
        'wo': jnp.stack(wo),       # (N, D, D)    f32
        'w1': jnp.stack(w1),       # (N, D, DFF)  f32
        'w2': jnp.stack(w2),       # (N, DFF, D)  f32
        'scal': scal,              # (N*8+2, 128) f32 packed biases + LN vectors
    }


if __name__ == "__main__":
    key = jax.random.PRNGKey(0)
    k_x, k_p = jax.random.split(key)

    x = jax.random.normal(k_x, (B, S, D), jnp.float32)
    params = init_params(k_p)

    out = encoder_forward(x, params)
    out = jax.block_until_ready(out)

    assert out.shape == (B, S, D)
    assert bool(jnp.all(jnp.isfinite(out)))
    print("KERNEL_OK")
</pallas_src>

<mosaic_0001>
module attributes {stable_mosaic.version = 11 : i64} {
  func.func @_encoder_kernel(%arg0: memref<16x32xf32, #tpu.memory_space<vmem>>, %arg1: memref<2x32x96xf32, #tpu.memory_space<vmem>>, %arg2: memref<2x32x32xf32, #tpu.memory_space<vmem>>, %arg3: memref<2x32x64xf32, #tpu.memory_space<vmem>>, %arg4: memref<2x64x32xf32, #tpu.memory_space<vmem>>, %arg5: memref<18x128xf32, #tpu.memory_space<vmem>>, %arg6: memref<16x32xf32, #tpu.memory_space<vmem>>) attributes {dimension_semantics = [], scalar_prefetch = 0 : i64, scratch_operands = 0 : i64, tpu.core_type = #tpu.core_type<tc>} {
    %c0 = arith.constant 0 : index
    %c0_0 = arith.constant 0 : index
    %0 = vector.load %arg0[%c0, %c0_0] : memref<16x32xf32, #tpu.memory_space<vmem>>, vector<16x32xf32>
    %c0_1 = arith.constant 0 : index
    %c0_2 = arith.constant 0 : index
    %1 = vector.load %arg5[%c0_1, %c0_2] : memref<18x128xf32, #tpu.memory_space<vmem>>, vector<8x128xf32>
    %2 = vector.extract_strided_slice %1 {offsets = [0, 0], sizes = [1, 96], strides = [1, 1]} : vector<8x128xf32> to vector<1x96xf32>
    %3 = vector.extract_strided_slice %1 {offsets = [1, 0], sizes = [1, 32], strides = [1, 1]} : vector<8x128xf32> to vector<1x32xf32>
    %4 = vector.extract_strided_slice %1 {offsets = [2, 0], sizes = [1, 64], strides = [1, 1]} : vector<8x128xf32> to vector<1x64xf32>
    %5 = vector.extract_strided_slice %1 {offsets = [3, 0], sizes = [1, 32], strides = [1, 1]} : vector<8x128xf32> to vector<1x32xf32>
    %6 = vector.extract_strided_slice %1 {offsets = [4, 0], sizes = [1, 32], strides = [1, 1]} : vector<8x128xf32> to vector<1x32xf32>
    %7 = vector.extract_strided_slice %1 {offsets = [5, 0], sizes = [1, 32], strides = [1, 1]} : vector<8x128xf32> to vector<1x32xf32>
    %8 = vector.extract_strided_slice %1 {offsets = [6, 0], sizes = [1, 32], strides = [1, 1]} : vector<8x128xf32> to vector<1x32xf32>
    %9 = vector.extract_strided_slice %1 {offsets = [7, 0], sizes = [1, 32], strides = [1, 1]} : vector<8x128xf32> to vector<1x32xf32>
    %cst = arith.constant dense<0.000000e+00> : vector<16xf32>
    %10 = vector.multi_reduction <add>, %0, %cst [1] : vector<16x32xf32> to vector<16xf32>
    %11 = vector.shape_cast %10 : vector<16xf32> to vector<16x1xf32>
    %cst_3 = arith.constant 3.200000e+01 : f32
    %12 = vector.broadcast %cst_3 : f32 to vector<16x1xf32>
    %13 = arith.divf %11, %12 : vector<16x1xf32>
    %14 = vector.broadcast %13 : vector<16x1xf32> to vector<16x32xf32>
    %15 = arith.subf %0, %14 : vector<16x32xf32>
    %16 = arith.mulf %15, %15 : vector<16x32xf32>
    %cst_4 = arith.constant dense<0.000000e+00> : vector<16xf32>
    %17 = vector.multi_reduction <add>, %16, %cst_4 [1] : vector<16x32xf32> to vector<16xf32>
    %18 = vector.shape_cast %17 : vector<16xf32> to vector<16x1xf32>
    %cst_5 = arith.constant 0.0322580636 : f32
    %19 = vector.broadcast %cst_5 : f32 to vector<16x1xf32>
    %20 = arith.mulf %18, %19 : vector<16x1xf32>
    %21 = math.sqrt %20 : vector<16x1xf32>
    %cst_6 = arith.constant 9.99999997E-7 : f32
    %22 = vector.broadcast %cst_6 : f32 to vector<16x1xf32>
    %23 = arith.addf %21, %22 : vector<16x1xf32>
    %24 = tpu.reciprocal %23 {approx = true} : vector<16x1xf32> -> vector<16x1xf32>
    %25 = vector.broadcast %13 : vector<16x1xf32> to vector<16x32xf32>
    %26 = arith.subf %0, %25 : vector<16x32xf32>
    %27 = vector.broadcast %6 : vector<1x32xf32> to vector<16x32xf32>
    %28 = arith.mulf %27, %26 : vector<16x32xf32>
    %29 = vector.broadcast %24 : vector<16x1xf32> to vector<16x32xf32>
    %30 = arith.mulf %28, %29 : vector<16x32xf32>
    %31 = vector.broadcast %7 : vector<1x32xf32> to vector<16x32xf32>
    %32 = arith.addf %30, %31 : vector<16x32xf32>
    %c0_7 = arith.constant 0 : index
    %c0_8 = arith.constant 0 : index
    %c0_9 = arith.constant 0 : index
    %33 = vector.load %arg1[%c0_7, %c0_8, %c0_9] : memref<2x32x96xf32, #tpu.memory_space<vmem>>, vector<1x32x96xf32>
    %34 = vector.shape_cast %33 : vector<1x32x96xf32> to vector<32x96xf32>
    %cst_10 = arith.constant dense<0.000000e+00> : vector<16x96xf32>
    %35 = tpu.matmul %32, %34, %cst_10 {dimension_numbers = #tpu.dot_dimension_numbers<[1], [0], [0], [1], [0, 0, 1, 1], [], []>} : vector<16x32xf32>, vector<32x96xf32>, vector<16x96xf32> -> vector<16x96xf32>
    %36 = vector.broadcast %2 : vector<1x96xf32> to vector<16x96xf32>
    %37 = arith.addf %35, %36 : vector<16x96xf32>
    %38 = vector.extract_strided_slice %37 {offsets = [0, 0], sizes = [16, 8], strides = [1, 1]} : vector<16x96xf32> to vector<16x8xf32>
    %39 = vector.shape_cast %38 : vector<16x8xf32> to vector<2x8x8xf32>
    %40 = vector.extract_strided_slice %37 {offsets = [0, 8], sizes = [16, 8], strides = [1, 1]} : vector<16x96xf32> to vector<16x8xf32>
    %41 = vector.shape_cast %40 : vector<16x8xf32> to vector<2x8x8xf32>
    %42 = vector.extract_strided_slice %37 {offsets = [0, 16], sizes = [16, 8], strides = [1, 1]} : vector<16x96xf32> to vector<16x8xf32>
    %43 = vector.shape_cast %42 : vector<16x8xf32> to vector<2x8x8xf32>
    %44 = vector.extract_strided_slice %37 {offsets = [0, 24], sizes = [16, 8], strides = [1, 1]} : vector<16x96xf32> to vector<16x8xf32>
    %45 = vector.shape_cast %44 : vector<16x8xf32> to vector<2x8x8xf32>
    %46 = tpu.concatenate %39, %41, %43, %45 in 0 : vector<2x8x8xf32>, vector<2x8x8xf32>, vector<2x8x8xf32>, vector<2x8x8xf32> -> vector<8x8x8xf32>
    %47 = vector.extract_strided_slice %37 {offsets = [0, 32], sizes = [16, 8], strides = [1, 1]} : vector<16x96xf32> to vector<16x8xf32>
    %48 = vector.shape_cast %47 : vector<16x8xf32> to vector<2x8x8xf32>
    %49 = vector.extract_strided_slice %37 {offsets = [0, 40], sizes = [16, 8], strides = [1, 1]} : vector<16x96xf32> to vector<16x8xf32>
    %50 = vector.shape_cast %49 : vector<16x8xf32> to vector<2x8x8xf32>
    %51 = vector.extract_strided_slice %37 {offsets = [0, 48], sizes = [16, 8], strides = [1, 1]} : vector<16x96xf32> to vector<16x8xf32>
    %52 = vector.shape_cast %51 : vector<16x8xf32> to vector<2x8x8xf32>
    %53 = vector.extract_strided_slice %37 {offsets = [0, 56], sizes = [16, 8], strides = [1, 1]} : vector<16x96xf32> to vector<16x8xf32>
    %54 = vector.shape_cast %53 : vector<16x8xf32> to vector<2x8x8xf32>
    %55 = tpu.concatenate %48, %50, %52, %54 in 0 : vector<2x8x8xf32>, vector<2x8x8xf32>, vector<2x8x8xf32>, vector<2x8x8xf32> -> vector<8x8x8xf32>
    %56 = vector.extract_strided_slice %37 {offsets = [0, 64], sizes = [16, 8], strides = [1, 1]} : vector<16x96xf32> to vector<16x8xf32>
    %57 = vector.shape_cast %56 : vector<16x8xf32> to vector<2x8x8xf32>
    %58 = vector.extract_strided_slice %37 {offsets = [0, 72], sizes = [16, 8], strides = [1, 1]} : vector<16x96xf32> to vector<16x8xf32>
    %59 = vector.shape_cast %58 : vector<16x8xf32> to vector<2x8x8xf32>
    %60 = vector.extract_strided_slice %37 {offsets = [0, 80], sizes = [16, 8], strides = [1, 1]} : vector<16x96xf32> to vector<16x8xf32>
    %61 = vector.shape_cast %60 : vector<16x8xf32> to vector<2x8x8xf32>
    %62 = vector.extract_strided_slice %37 {offsets = [0, 88], sizes = [16, 8], strides = [1, 1]} : vector<16x96xf32> to vector<16x8xf32>
    %63 = vector.shape_cast %62 : vector<16x8xf32> to vector<2x8x8xf32>
    %64 = tpu.concatenate %57, %59, %61, %63 in 0 : vector<2x8x8xf32>, vector<2x8x8xf32>, vector<2x8x8xf32>, vector<2x8x8xf32> -> vector<8x8x8xf32>
    "tpu.trace_start"() <{level = 10 : i32, message = "nqd,nkd->nqk"}> : () -> ()
    %cst_11 = arith.constant dense<0.000000e+00> : vector<8x8x8xf32>
    %65 = tpu.matmul %46, %55, %cst_11 {dimension_numbers = #tpu.dot_dimension_numbers<[2], [2], [1], [1], [0, 0, 0, 1, 1, 1], [0], [0]>} : vector<8x8x8xf32>, vector<8x8x8xf32>, vector<8x8x8xf32> -> vector<8x8x8xf32>
    "tpu.trace_stop"() : () -> ()
    %cst_12 = arith.constant 0.353553385 : f32
    %66 = vector.broadcast %cst_12 : f32 to vector<8x8x8xf32>
    %67 = arith.mulf %65, %66 : vector<8x8x8xf32>
    %cst_13 = arith.constant dense<0xFF800000> : vector<8x8xf32>
    %68 = vector.multi_reduction <maximumf>, %67, %cst_13 [2] : vector<8x8x8xf32> to vector<8x8xf32>
    %69 = vector.shape_cast %68 : vector<8x8xf32> to vector<8x8x1xf32>
    %70 = vector.broadcast %69 : vector<8x8x1xf32> to vector<8x8x8xf32>
    %71 = arith.subf %67, %70 : vector<8x8x8xf32>
    %72 = math.exp %71 : vector<8x8x8xf32>
    %cst_14 = arith.constant dense<0.000000e+00> : vector<8x8xf32>
    %73 = vector.multi_reduction <add>, %72, %cst_14 [2] : vector<8x8x8xf32> to vector<8x8xf32>
    %74 = vector.shape_cast %73 : vector<8x8xf32> to vector<8x8x1xf32>
    %75 = tpu.reciprocal %74 {approx = true} : vector<8x8x1xf32> -> vector<8x8x1xf32>
    %76 = vector.broadcast %75 : vector<8x8x1xf32> to vector<8x8x8xf32>
    %77 = arith.mulf %72, %76 : vector<8x8x8xf32>
    "tpu.trace_start"() <{level = 10 : i32, message = "nqk,nkd->nqd"}> : () -> ()
    %cst_15 = arith.constant dense<0.000000e+00> : vector<8x8x8xf32>
    %78 = tpu.matmul %77, %64, %cst_15 {dimension_numbers = #tpu.dot_dimension_numbers<[2], [1], [1], [2], [0, 0, 0, 1, 1, 2], [0], [0]>} : vector<8x8x8xf32>, vector<8x8x8xf32>, vector<8x8x8xf32> -> vector<8x8x8xf32>
    "tpu.trace_stop"() : () -> ()
    %79 = vector.extract_strided_slice %78 {offsets = [0, 0, 0], sizes = [2, 8, 8], strides = [1, 1, 1]} : vector<8x8x8xf32> to vector<2x8x8xf32>
    %80 = vector.shape_cast %79 : vector<2x8x8xf32> to vector<16x8xf32>
    %81 = vector.extract_strided_slice %78 {offsets = [2, 0, 0], sizes = [2, 8, 8], strides = [1, 1, 1]} : vector<8x8x8xf32> to vector<2x8x8xf32>
    %82 = vector.shape_cast %81 : vector<2x8x8xf32> to vector<16x8xf32>
    %83 = vector.extract_strided_slice %78 {offsets = [4, 0, 0], sizes = [2, 8, 8], strides = [1, 1, 1]} : vector<8x8x8xf32> to vector<2x8x8xf32>
    %84 = vector.shape_cast %83 : vector<2x8x8xf32> to vector<16x8xf32>
    %85 = vector.extract_strided_slice %78 {offsets = [6, 0, 0], sizes = [2, 8, 8], strides = [1, 1, 1]} : vector<8x8x8xf32> to vector<2x8x8xf32>
    %86 = vector.shape_cast %85 : vector<2x8x8xf32> to vector<16x8xf32>
    %87 = tpu.concatenate %80, %82, %84, %86 in 1 : vector<16x8xf32>, vector<16x8xf32>, vector<16x8xf32>, vector<16x8xf32> -> vector<16x32xf32>
    %c0_16 = arith.constant 0 : index
    %c0_17 = arith.constant 0 : index
    %c0_18 = arith.constant 0 : index
    %88 = vector.load %arg2[%c0_16, %c0_17, %c0_18] : memref<2x32x32xf32, #tpu.memory_space<vmem>>, vector<1x32x32xf32>
    %89 = vector.shape_cast %88 : vector<1x32x32xf32> to vector<32x32xf32>
    %cst_19 = arith.constant dense<0.000000e+00> : vector<16x32xf32>
    %90 = tpu.matmul %87, %89, %cst_19 {dimension_numbers = #tpu.dot_dimension_numbers<[1], [0], [0], [1], [0, 0, 1, 1], [], []>} : vector<16x32xf32>, vector<32x32xf32>, vector<16x32xf32> -> vector<16x32xf32>
    %91 = vector.broadcast %3 : vector<1x32xf32> to vector<16x32xf32>
    %92 = arith.addf %90, %91 : vector<16x32xf32>
    %93 = arith.addf %0, %92 : vector<16x32xf32>
    %cst_20 = arith.constant dense<0.000000e+00> : vector<16xf32>
    %94 = vector.multi_reduction <add>, %93, %cst_20 [1] : vector<16x32xf32> to vector<16xf32>
    %95 = vector.shape_cast %94 : vector<16xf32> to vector<16x1xf32>
    %cst_21 = arith.constant 3.200000e+01 : f32
    %96 = vector.broadcast %cst_21 : f32 to vector<16x1xf32>
    %97 = arith.divf %95, %96 : vector<16x1xf32>
    %98 = vector.broadcast %97 : vector<16x1xf32> to vector<16x32xf32>
    %99 = arith.subf %93, %98 : vector<16x32xf32>
    %100 = arith.mulf %99, %99 : vector<16x32xf32>
    %cst_22 = arith.constant dense<0.000000e+00> : vector<16xf32>
    %101 = vector.multi_reduction <add>, %100, %cst_22 [1] : vector<16x32xf32> to vector<16xf32>
    %102 = vector.shape_cast %101 : vector<16xf32> to vector<16x1xf32>
    %cst_23 = arith.constant 0.0322580636 : f32
    %103 = vector.broadcast %cst_23 : f32 to vector<16x1xf32>
    %104 = arith.mulf %102, %103 : vector<16x1xf32>
    %105 = math.sqrt %104 : vector<16x1xf32>
    %cst_24 = arith.constant 9.99999997E-7 : f32
    %106 = vector.broadcast %cst_24 : f32 to vector<16x1xf32>
    %107 = arith.addf %105, %106 : vector<16x1xf32>
    %108 = tpu.reciprocal %107 {approx = true} : vector<16x1xf32> -> vector<16x1xf32>
    %109 = vector.broadcast %97 : vector<16x1xf32> to vector<16x32xf32>
    %110 = arith.subf %93, %109 : vector<16x32xf32>
    %111 = vector.broadcast %8 : vector<1x32xf32> to vector<16x32xf32>
    %112 = arith.mulf %111, %110 : vector<16x32xf32>
    %113 = vector.broadcast %108 : vector<16x1xf32> to vector<16x32xf32>
    %114 = arith.mulf %112, %113 : vector<16x32xf32>
    %115 = vector.broadcast %9 : vector<1x32xf32> to vector<16x32xf32>
    %116 = arith.addf %114, %115 : vector<16x32xf32>
    %c0_25 = arith.constant 0 : index
    %c0_26 = arith.constant 0 : index
    %c0_27 = arith.constant 0 : index
    %117 = vector.load %arg3[%c0_25, %c0_26, %c0_27] : memref<2x32x64xf32, #tpu.memory_space<vmem>>, vector<1x32x64xf32>
    %118 = vector.shape_cast %117 : vector<1x32x64xf32> to vector<32x64xf32>
    %cst_28 = arith.constant dense<0.000000e+00> : vector<16x64xf32>
    %119 = tpu.matmul %116, %118, %cst_28 {dimension_numbers = #tpu.dot_dimension_numbers<[1], [0], [0], [1], [0, 0, 1, 1], [], []>} : vector<16x32xf32>, vector<32x64xf32>, vector<16x64xf32> -> vector<16x64xf32>
    %120 = vector.broadcast %4 : vector<1x64xf32> to vector<16x64xf32>
    %121 = arith.addf %119, %120 : vector<16x64xf32>
    %cst_29 = arith.constant 0.000000e+00 : f32
    %122 = vector.broadcast %cst_29 : f32 to vector<16x64xf32>
    %123 = arith.maximumf %121, %122 : vector<16x64xf32>
    %c0_30 = arith.constant 0 : index
    %c0_31 = arith.constant 0 : index
    %c0_32 = arith.constant 0 : index
    %124 = vector.load %arg4[%c0_30, %c0_31, %c0_32] : memref<2x64x32xf32, #tpu.memory_space<vmem>>, vector<1x64x32xf32>
    %125 = vector.shape_cast %124 : vector<1x64x32xf32> to vector<64x32xf32>
    %cst_33 = arith.constant dense<0.000000e+00> : vector<16x32xf32>
    %126 = tpu.matmul %123, %125, %cst_33 {dimension_numbers = #tpu.dot_dimension_numbers<[1], [0], [0], [1], [0, 0, 1, 1], [], []>} : vector<16x64xf32>, vector<64x32xf32>, vector<16x32xf32> -> vector<16x32xf32>
    %127 = vector.broadcast %5 : vector<1x32xf32> to vector<16x32xf32>
    %128 = arith.addf %126, %127 : vector<16x32xf32>
    %129 = arith.addf %93, %128 : vector<16x32xf32>
    %c8 = arith.constant 8 : index
    %c0_34 = arith.constant 0 : index
    %130 = vector.load %arg5[%c8, %c0_34] : memref<18x128xf32, #tpu.memory_space<vmem>>, vector<8x128xf32>
    %131 = vector.extract_strided_slice %130 {offsets = [0, 0], sizes = [1, 96], strides = [1, 1]} : vector<8x128xf32> to vector<1x96xf32>
    %132 = vector.extract_strided_slice %130 {offsets = [1, 0], sizes = [1, 32], strides = [1, 1]} : vector<8x128xf32> to vector<1x32xf32>
    %133 = vector.extract_strided_slice %130 {offsets = [2, 0], sizes = [1, 64], strides = [1, 1]} : vector<8x128xf32> to vector<1x64xf32>
    %134 = vector.extract_strided_slice %130 {offsets = [3, 0], sizes = [1, 32], strides = [1, 1]} : vector<8x128xf32> to vector<1x32xf32>
    %135 = vector.extract_strided_slice %130 {offsets = [4, 0], sizes = [1, 32], strides = [1, 1]} : vector<8x128xf32> to vector<1x32xf32>
    %136 = vector.extract_strided_slice %130 {offsets = [5, 0], sizes = [1, 32], strides = [1, 1]} : vector<8x128xf32> to vector<1x32xf32>
    %137 = vector.extract_strided_slice %130 {offsets = [6, 0], sizes = [1, 32], strides = [1, 1]} : vector<8x128xf32> to vector<1x32xf32>
    %138 = vector.extract_strided_slice %130 {offsets = [7, 0], sizes = [1, 32], strides = [1, 1]} : vector<8x128xf32> to vector<1x32xf32>
    %cst_35 = arith.constant dense<0.000000e+00> : vector<16xf32>
    %139 = vector.multi_reduction <add>, %129, %cst_35 [1] : vector<16x32xf32> to vector<16xf32>
    %140 = vector.shape_cast %139 : vector<16xf32> to vector<16x1xf32>
    %cst_36 = arith.constant 3.200000e+01 : f32
    %141 = vector.broadcast %cst_36 : f32 to vector<16x1xf32>
    %142 = arith.divf %140, %141 : vector<16x1xf32>
    %143 = vector.broadcast %142 : vector<16x1xf32> to vector<16x32xf32>
    %144 = arith.subf %129, %143 : vector<16x32xf32>
    %145 = arith.mulf %144, %144 : vector<16x32xf32>
    %cst_37 = arith.constant dense<0.000000e+00> : vector<16xf32>
    %146 = vector.multi_reduction <add>, %145, %cst_37 [1] : vector<16x32xf32> to vector<16xf32>
    %147 = vector.shape_cast %146 : vector<16xf32> to vector<16x1xf32>
    %cst_38 = arith.constant 0.0322580636 : f32
    %148 = vector.broadcast %cst_38 : f32 to vector<16x1xf32>
    %149 = arith.mulf %147, %148 : vector<16x1xf32>
    %150 = math.sqrt %149 : vector<16x1xf32>
    %cst_39 = arith.constant 9.99999997E-7 : f32
    %151 = vector.broadcast %cst_39 : f32 to vector<16x1xf32>
    %152 = arith.addf %150, %151 : vector<16x1xf32>
    %153 = tpu.reciprocal %152 {approx = true} : vector<16x1xf32> -> vector<16x1xf32>
    %154 = vector.broadcast %142 : vector<16x1xf32> to vector<16x32xf32>
    %155 = arith.subf %129, %154 : vector<16x32xf32>
    %156 = vector.broadcast %135 : vector<1x32xf32> to vector<16x32xf32>
    %157 = arith.mulf %156, %155 : vector<16x32xf32>
    %158 = vector.broadcast %153 : vector<16x1xf32> to vector<16x32xf32>
    %159 = arith.mulf %157, %158 : vector<16x32xf32>
    %160 = vector.broadcast %136 : vector<1x32xf32> to vector<16x32xf32>
    %161 = arith.addf %159, %160 : vector<16x32xf32>
    %c1 = arith.constant 1 : index
    %c0_40 = arith.constant 0 : index
    %c0_41 = arith.constant 0 : index
    %162 = vector.load %arg1[%c1, %c0_40, %c0_41] : memref<2x32x96xf32, #tpu.memory_space<vmem>>, vector<1x32x96xf32>
    %163 = vector.shape_cast %162 : vector<1x32x96xf32> to vector<32x96xf32>
    %cst_42 = arith.constant dense<0.000000e+00> : vector<16x96xf32>
    %164 = tpu.matmul %161, %163, %cst_42 {dimension_numbers = #tpu.dot_dimension_numbers<[1], [0], [0], [1], [0, 0, 1, 1], [], []>} : vector<16x32xf32>, vector<32x96xf32>, vector<16x96xf32> -> vector<16x96xf32>
    %165 = vector.broadcast %131 : vector<1x96xf32> to vector<16x96xf32>
    %166 = arith.addf %164, %165 : vector<16x96xf32>
    %167 = vector.extract_strided_slice %166 {offsets = [0, 0], sizes = [16, 8], strides = [1, 1]} : vector<16x96xf32> to vector<16x8xf32>
    %168 = vector.shape_cast %167 : vector<16x8xf32> to vector<2x8x8xf32>
    %169 = vector.extract_strided_slice %166 {offsets = [0, 8], sizes = [16, 8], strides = [1, 1]} : vector<16x96xf32> to vector<16x8xf32>
    %170 = vector.shape_cast %169 : vector<16x8xf32> to vector<2x8x8xf32>
    %171 = vector.extract_strided_slice %166 {offsets = [0, 16], sizes = [16, 8], strides = [1, 1]} : vector<16x96xf32> to vector<16x8xf32>
    %172 = vector.shape_cast %171 : vector<16x8xf32> to vector<2x8x8xf32>
    %173 = vector.extract_strided_slice %166 {offsets = [0, 24], sizes = [16, 8], strides = [1, 1]} : vector<16x96xf32> to vector<16x8xf32>
    %174 = vector.shape_cast %173 : vector<16x8xf32> to vector<2x8x8xf32>
    %175 = tpu.concatenate %168, %170, %172, %174 in 0 : vector<2x8x8xf32>, vector<2x8x8xf32>, vector<2x8x8xf32>, vector<2x8x8xf32> -> vector<8x8x8xf32>
    %176 = vector.extract_strided_slice %166 {offsets = [0, 32], sizes = [16, 8], strides = [1, 1]} : vector<16x96xf32> to vector<16x8xf32>
    %177 = vector.shape_cast %176 : vector<16x8xf32> to vector<2x8x8xf32>
    %178 = vector.extract_strided_slice %166 {offsets = [0, 40], sizes = [16, 8], strides = [1, 1]} : vector<16x96xf32> to vector<16x8xf32>
    %179 = vector.shape_cast %178 : vector<16x8xf32> to vector<2x8x8xf32>
    %180 = vector.extract_strided_slice %166 {offsets = [0, 48], sizes = [16, 8], strides = [1, 1]} : vector<16x96xf32> to vector<16x8xf32>
    %181 = vector.shape_cast %180 : vector<16x8xf32> to vector<2x8x8xf32>
    %182 = vector.extract_strided_slice %166 {offsets = [0, 56], sizes = [16, 8], strides = [1, 1]} : vector<16x96xf32> to vector<16x8xf32>
    %183 = vector.shape_cast %182 : vector<16x8xf32> to vector<2x8x8xf32>
    %184 = tpu.concatenate %177, %179, %181, %183 in 0 : vector<2x8x8xf32>, vector<2x8x8xf32>, vector<2x8x8xf32>, vector<2x8x8xf32> -> vector<8x8x8xf32>
    %185 = vector.extract_strided_slice %166 {offsets = [0, 64], sizes = [16, 8], strides = [1, 1]} : vector<16x96xf32> to vector<16x8xf32>
    %186 = vector.shape_cast %185 : vector<16x8xf32> to vector<2x8x8xf32>
    %187 = vector.extract_strided_slice %166 {offsets = [0, 72], sizes = [16, 8], strides = [1, 1]} : vector<16x96xf32> to vector<16x8xf32>
    %188 = vector.shape_cast %187 : vector<16x8xf32> to vector<2x8x8xf32>
    %189 = vector.extract_strided_slice %166 {offsets = [0, 80], sizes = [16, 8], strides = [1, 1]} : vector<16x96xf32> to vector<16x8xf32>
    %190 = vector.shape_cast %189 : vector<16x8xf32> to vector<2x8x8xf32>
    %191 = vector.extract_strided_slice %166 {offsets = [0, 88], sizes = [16, 8], strides = [1, 1]} : vector<16x96xf32> to vector<16x8xf32>
    %192 = vector.shape_cast %191 : vector<16x8xf32> to vector<2x8x8xf32>
    %193 = tpu.concatenate %186, %188, %190, %192 in 0 : vector<2x8x8xf32>, vector<2x8x8xf32>, vector<2x8x8xf32>, vector<2x8x8xf32> -> vector<8x8x8xf32>
    "tpu.trace_start"() <{level = 10 : i32, message = "nqd,nkd->nqk"}> : () -> ()
    %cst_43 = arith.constant dense<0.000000e+00> : vector<8x8x8xf32>
    %194 = tpu.matmul %175, %184, %cst_43 {dimension_numbers = #tpu.dot_dimension_numbers<[2], [2], [1], [1], [0, 0, 0, 1, 1, 1], [0], [0]>} : vector<8x8x8xf32>, vector<8x8x8xf32>, vector<8x8x8xf32> -> vector<8x8x8xf32>
    "tpu.trace_stop"() : () -> ()
    %cst_44 = arith.constant 0.353553385 : f32
    %195 = vector.broadcast %cst_44 : f32 to vector<8x8x8xf32>
    %196 = arith.mulf %194, %195 : vector<8x8x8xf32>
    %cst_45 = arith.constant dense<0xFF800000> : vector<8x8xf32>
    %197 = vector.multi_reduction <maximumf>, %196, %cst_45 [2] : vector<8x8x8xf32> to vector<8x8xf32>
    %198 = vector.shape_cast %197 : vector<8x8xf32> to vector<8x8x1xf32>
    %199 = vector.broadcast %198 : vector<8x8x1xf32> to vector<8x8x8xf32>
    %200 = arith.subf %196, %199 : vector<8x8x8xf32>
    %201 = math.exp %200 : vector<8x8x8xf32>
    %cst_46 = arith.constant dense<0.000000e+00> : vector<8x8xf32>
    %202 = vector.multi_reduction <add>, %201, %cst_46 [2] : vector<8x8x8xf32> to vector<8x8xf32>
    %203 = vector.shape_cast %202 : vector<8x8xf32> to vector<8x8x1xf32>
    %204 = tpu.reciprocal %203 {approx = true} : vector<8x8x1xf32> -> vector<8x8x1xf32>
    %205 = vector.broadcast %204 : vector<8x8x1xf32> to vector<8x8x8xf32>
    %206 = arith.mulf %201, %205 : vector<8x8x8xf32>
    "tpu.trace_start"() <{level = 10 : i32, message = "nqk,nkd->nqd"}> : () -> ()
    %cst_47 = arith.constant dense<0.000000e+00> : vector<8x8x8xf32>
    %207 = tpu.matmul %206, %193, %cst_47 {dimension_numbers = #tpu.dot_dimension_numbers<[2], [1], [1], [2], [0, 0, 0, 1, 1, 2], [0], [0]>} : vector<8x8x8xf32>, vector<8x8x8xf32>, vector<8x8x8xf32> -> vector<8x8x8xf32>
    "tpu.trace_stop"() : () -> ()
    %208 = vector.extract_strided_slice %207 {offsets = [0, 0, 0], sizes = [2, 8, 8], strides = [1, 1, 1]} : vector<8x8x8xf32> to vector<2x8x8xf32>
    %209 = vector.shape_cast %208 : vector<2x8x8xf32> to vector<16x8xf32>
    %210 = vector.extract_strided_slice %207 {offsets = [2, 0, 0], sizes = [2, 8, 8], strides = [1, 1, 1]} : vector<8x8x8xf32> to vector<2x8x8xf32>
    %211 = vector.shape_cast %210 : vector<2x8x8xf32> to vector<16x8xf32>
    %212 = vector.extract_strided_slice %207 {offsets = [4, 0, 0], sizes = [2, 8, 8], strides = [1, 1, 1]} : vector<8x8x8xf32> to vector<2x8x8xf32>
    %213 = vector.shape_cast %212 : vector<2x8x8xf32> to vector<16x8xf32>
    %214 = vector.extract_strided_slice %207 {offsets = [6, 0, 0], sizes = [2, 8, 8], strides = [1, 1, 1]} : vector<8x8x8xf32> to vector<2x8x8xf32>
    %215 = vector.shape_cast %214 : vector<2x8x8xf32> to vector<16x8xf32>
    %216 = tpu.concatenate %209, %211, %213, %215 in 1 : vector<16x8xf32>, vector<16x8xf32>, vector<16x8xf32>, vector<16x8xf32> -> vector<16x32xf32>
    %c1_48 = arith.constant 1 : index
    %c0_49 = arith.constant 0 : index
    %c0_50 = arith.constant 0 : index
    %217 = vector.load %arg2[%c1_48, %c0_49, %c0_50] : memref<2x32x32xf32, #tpu.memory_space<vmem>>, vector<1x32x32xf32>
    %218 = vector.shape_cast %217 : vector<1x32x32xf32> to vector<32x32xf32>
    %cst_51 = arith.constant dense<0.000000e+00> : vector<16x32xf32>
    %219 = tpu.matmul %216, %218, %cst_51 {dimension_numbers = #tpu.dot_dimension_numbers<[1], [0], [0], [1], [0, 0, 1, 1], [], []>} : vector<16x32xf32>, vector<32x32xf32>, vector<16x32xf32> -> vector<16x32xf32>
    %220 = vector.broadcast %132 : vector<1x32xf32> to vector<16x32xf32>
    %221 = arith.addf %219, %220 : vector<16x32xf32>
    %222 = arith.addf %129, %221 : vector<16x32xf32>
    %cst_52 = arith.constant dense<0.000000e+00> : vector<16xf32>
    %223 = vector.multi_reduction <add>, %222, %cst_52 [1] : vector<16x32xf32> to vector<16xf32>
    %224 = vector.shape_cast %223 : vector<16xf32> to vector<16x1xf32>
    %cst_53 = arith.constant 3.200000e+01 : f32
    %225 = vector.broadcast %cst_53 : f32 to vector<16x1xf32>
    %226 = arith.divf %224, %225 : vector<16x1xf32>
    %227 = vector.broadcast %226 : vector<16x1xf32> to vector<16x32xf32>
    %228 = arith.subf %222, %227 : vector<16x32xf32>
    %229 = arith.mulf %228, %228 : vector<16x32xf32>
    %cst_54 = arith.constant dense<0.000000e+00> : vector<16xf32>
    %230 = vector.multi_reduction <add>, %229, %cst_54 [1] : vector<16x32xf32> to vector<16xf32>
    %231 = vector.shape_cast %230 : vector<16xf32> to vector<16x1xf32>
    %cst_55 = arith.constant 0.0322580636 : f32
    %232 = vector.broadcast %cst_55 : f32 to vector<16x1xf32>
    %233 = arith.mulf %231, %232 : vector<16x1xf32>
    %234 = math.sqrt %233 : vector<16x1xf32>
    %cst_56 = arith.constant 9.99999997E-7 : f32
    %235 = vector.broadcast %cst_56 : f32 to vector<16x1xf32>
    %236 = arith.addf %234, %235 : vector<16x1xf32>
    %237 = tpu.reciprocal %236 {approx = true} : vector<16x1xf32> -> vector<16x1xf32>
    %238 = vector.broadcast %226 : vector<16x1xf32> to vector<16x32xf32>
    %239 = arith.subf %222, %238 : vector<16x32xf32>
    %240 = vector.broadcast %137 : vector<1x32xf32> to vector<16x32xf32>
    %241 = arith.mulf %240, %239 : vector<16x32xf32>
    %242 = vector.broadcast %237 : vector<16x1xf32> to vector<16x32xf32>
    %243 = arith.mulf %241, %242 : vector<16x32xf32>
    %244 = vector.broadcast %138 : vector<1x32xf32> to vector<16x32xf32>
    %245 = arith.addf %243, %244 : vector<16x32xf32>
    %c1_57 = arith.constant 1 : index
    %c0_58 = arith.constant 0 : index
    %c0_59 = arith.constant 0 : index
    %246 = vector.load %arg3[%c1_57, %c0_58, %c0_59] : memref<2x32x64xf32, #tpu.memory_space<vmem>>, vector<1x32x64xf32>
    %247 = vector.shape_cast %246 : vector<1x32x64xf32> to vector<32x64xf32>
    %cst_60 = arith.constant dense<0.000000e+00> : vector<16x64xf32>
    %248 = tpu.matmul %245, %247, %cst_60 {dimension_numbers = #tpu.dot_dimension_numbers<[1], [0], [0], [1], [0, 0, 1, 1], [], []>} : vector<16x32xf32>, vector<32x64xf32>, vector<16x64xf32> -> vector<16x64xf32>
    %249 = vector.broadcast %133 : vector<1x64xf32> to vector<16x64xf32>
    %250 = arith.addf %248, %249 : vector<16x64xf32>
    %cst_61 = arith.constant 0.000000e+00 : f32
    %251 = vector.broadcast %cst_61 : f32 to vector<16x64xf32>
    %252 = arith.maximumf %250, %251 : vector<16x64xf32>
    %c1_62 = arith.constant 1 : index
    %c0_63 = arith.constant 0 : index
    %c0_64 = arith.constant 0 : index
    %253 = vector.load %arg4[%c1_62, %c0_63, %c0_64] : memref<2x64x32xf32, #tpu.memory_space<vmem>>, vector<1x64x32xf32>
    %254 = vector.shape_cast %253 : vector<1x64x32xf32> to vector<64x32xf32>
    %cst_65 = arith.constant dense<0.000000e+00> : vector<16x32xf32>
    %255 = tpu.matmul %252, %254, %cst_65 {dimension_numbers = #tpu.dot_dimension_numbers<[1], [0], [0], [1], [0, 0, 1, 1], [], []>} : vector<16x64xf32>, vector<64x32xf32>, vector<16x32xf32> -> vector<16x32xf32>
    %256 = vector.broadcast %134 : vector<1x32xf32> to vector<16x32xf32>
    %257 = arith.addf %255, %256 : vector<16x32xf32>
    %258 = arith.addf %222, %257 : vector<16x32xf32>
    %c16 = arith.constant 16 : index
    %c0_66 = arith.constant 0 : index
    %259 = vector.load %arg5[%c16, %c0_66] : memref<18x128xf32, #tpu.memory_space<vmem>>, vector<1x32xf32>
    %c17 = arith.constant 17 : index
    %c0_67 = arith.constant 0 : index
    %260 = vector.load %arg5[%c17, %c0_67] : memref<18x128xf32, #tpu.memory_space<vmem>>, vector<1x32xf32>
    %cst_68 = arith.constant dense<0.000000e+00> : vector<16xf32>
    %261 = vector.multi_reduction <add>, %258, %cst_68 [1] : vector<16x32xf32> to vector<16xf32>
    %262 = vector.shape_cast %261 : vector<16xf32> to vector<16x1xf32>
    %cst_69 = arith.constant 3.200000e+01 : f32
    %263 = vector.broadcast %cst_69 : f32 to vector<16x1xf32>
    %264 = arith.divf %262, %263 : vector<16x1xf32>
    %265 = vector.broadcast %264 : vector<16x1xf32> to vector<16x32xf32>
    %266 = arith.subf %258, %265 : vector<16x32xf32>
    %267 = arith.mulf %266, %266 : vector<16x32xf32>
    %cst_70 = arith.constant dense<0.000000e+00> : vector<16xf32>
    %268 = vector.multi_reduction <add>, %267, %cst_70 [1] : vector<16x32xf32> to vector<16xf32>
    %269 = vector.shape_cast %268 : vector<16xf32> to vector<16x1xf32>
    %cst_71 = arith.constant 0.0322580636 : f32
    %270 = vector.broadcast %cst_71 : f32 to vector<16x1xf32>
    %271 = arith.mulf %269, %270 : vector<16x1xf32>
    %272 = math.sqrt %271 : vector<16x1xf32>
    %cst_72 = arith.constant 9.99999997E-7 : f32
    %273 = vector.broadcast %cst_72 : f32 to vector<16x1xf32>
    %274 = arith.addf %272, %273 : vector<16x1xf32>
    %275 = tpu.reciprocal %274 {approx = true} : vector<16x1xf32> -> vector<16x1xf32>
    %276 = vector.broadcast %264 : vector<16x1xf32> to vector<16x32xf32>
    %277 = arith.subf %258, %276 : vector<16x32xf32>
    %278 = vector.broadcast %259 : vector<1x32xf32> to vector<16x32xf32>
    %279 = arith.mulf %278, %277 : vector<16x32xf32>
    %280 = vector.broadcast %275 : vector<16x1xf32> to vector<16x32xf32>
    %281 = arith.mulf %279, %280 : vector<16x32xf32>
    %282 = vector.broadcast %260 : vector<1x32xf32> to vector<16x32xf32>
    %283 = arith.addf %281, %282 : vector<16x32xf32>
    %c0_73 = arith.constant 0 : index
    %c0_74 = arith.constant 0 : index
    %284 = vector.load %arg6[%c0_73, %c0_74] : memref<16x32xf32, #tpu.memory_space<vmem>>, vector<16x32xf32>
    tpu.vector_store %arg6[%c0_73, %c0_74], %283 {strides = array<i32>} : memref<16x32xf32, #tpu.memory_space<vmem>>, vector<16x32xf32>,
    return
  }
}

</mosaic_0001>

<llo_original>
// kernel: tpu_custom_call.1
$region0: #{tpu_custom_call.1}
  #allocation0 [shape = 'u32[]', space=smem, size = 0x4, offset = 0x4, fixed_abs, tag = 'smem constant byte address 0x4 - core index']
  #allocation1 [shape = 'u32[144,128]{1,0:T(1,128)}', space=vmem, size = 0x12000, scoped, tag = 'internal scratch']
  %s0 = inlined_call_operand.hbm [shape: f32[16,32], index: 0, kind: input, shape index: {}]
  %s1 = inlined_call_operand.vmem [shape: f32[2,32,96], index: 1, kind: input, shape index: {}]
  %s2 = inlined_call_operand.vmem [shape: f32[2,32,32], index: 2, kind: input, shape index: {}]
  %s3 = inlined_call_operand.vmem [shape: f32[2,32,64], index: 3, kind: input, shape index: {}]
  %s4 = inlined_call_operand.vmem [shape: f32[2,64,32], index: 4, kind: input, shape index: {}]
  %s5 = inlined_call_operand.hbm [shape: f32[18,128], index: 5, kind: input, shape index: {}]
  %s6 = inlined_call_operand.hbm [shape: f32[16,32], index: 6, kind: output, shape index: {}]
  %s7 = sld [smem:[#allocation0]]
  $region42: #{tpu_custom_call.1} parent=0
    _
  %s9 = ssub.s32 1, %s7
  %s10 = scalar_select 0, %s9, %s7
  $region1: #{tpu_custom_call.1} parent=0
    #allocation2 [shape = 'u8[8192]{0}', space=vmem, size = 0x2000, scoped, tag = 'input window, operand 0, single buffered']
    #allocation3 [shape = 's32[1]{0}', space=sflag, size = 0x4, scoped, tag = 'scoped memory for tpu_custom_call.1']
    #allocation4 [shape = 's32[1]{0}', space=sflag, size = 0x4, scoped, tag = 'scoped memory for tpu_custom_call.1']
    #allocation5 [shape = 'u8[12288]{0}', space=vmem, size = 0x3000, scoped, tag = 'input window, operand 5, single buffered']
    #allocation6 [shape = 's32[1]{0}', space=sflag, size = 0x4, scoped, tag = 'scoped memory for tpu_custom_call.1']
    #allocation7 [shape = 'u8[8192]{0}', space=vmem, size = 0x2000, scoped, tag = 'output window, operand 0, single buffered']
    %11 = vsyncpa [#allocation3], 0
    %12 = vsyncpa [#allocation6], 0
    %13 = vsyncpa [#allocation4], 0
    // Predicated region
    $region2: #{tpu_custom_call.1} parent=1 // pred_check
      _
    $region3: #{tpu_custom_call.1} parent=1 // pred_check_branch
      %15 = sbr.rel (0) target = $region5
    $region4: #{tpu_custom_call.1} parent=1 // pred_region
      %s17 = ssub.s32 256, 256
      %18 = vsyncadd [#allocation3], %s17
      %s19 = sshll.u32 [#allocation2], 4
      %s20 = int_to_ptr.vmem [resolvable:$true] %s19
      %25 = dma.hbm_to_vmem [thread:$0]  %s0, 256, %s20, [#allocation3], 128, 128, 8
    $region5: #{tpu_custom_call.1} parent=1 // pred_fallthru
      _
    // Predicated region
    $region6: #{tpu_custom_call.1} parent=1 // pred_check
      _
    $region7: #{tpu_custom_call.1} parent=1 // pred_check_branch
      %27 = sbr.rel (0) target = $region9
    $region8: #{tpu_custom_call.1} parent=1 // pred_region
      _
    $region9: #{tpu_custom_call.1} parent=1 // pred_fallthru
      _
    // Predicated region
    $region10: #{tpu_custom_call.1} parent=1 // pred_check
      _
    $region11: #{tpu_custom_call.1} parent=1 // pred_check_branch
      %29 = sbr.rel (0) target = $region13
    $region12: #{tpu_custom_call.1} parent=1 // pred_region
      _
    $region13: #{tpu_custom_call.1} parent=1 // pred_fallthru
      _
    // Predicated region
    $region14: #{tpu_custom_call.1} parent=1 // pred_check
      _
    $region15: #{tpu_custom_call.1} parent=1 // pred_check_branch
      %31 = sbr.rel (0) target = $region17
    $region16: #{tpu_custom_call.1} parent=1 // pred_region
      _
    $region17: #{tpu_custom_call.1} parent=1 // pred_fallthru
      _
    // Predicated region
    $region18: #{tpu_custom_call.1} parent=1 // pred_check
      _
    $region19: #{tpu_custom_call.1} parent=1 // pred_check_branch
      %33 = sbr.rel (0) target = $region21
    $region20: #{tpu_custom_call.1} parent=1 // pred_region
      _
    $region21: #{tpu_custom_call.1} parent=1 // pred_fallthru
      _
    // Predicated region
    $region22: #{tpu_custom_call.1} parent=1 // pred_check
      _
    $region23: #{tpu_custom_call.1} parent=1 // pred_check_branch
      %35 = sbr.rel (0) target = $region25
    $region24: #{tpu_custom_call.1} parent=1 // pred_region
      %s37 = ssub.s32 384, 384
      %38 = vsyncadd [#allocation6], %s37
      %s39 = sshll.u32 [#allocation5], 4
      %s40 = int_to_ptr.vmem [resolvable:$true] %s39
      %45 = dma.hbm_to_vmem [thread:$0]  %s5, 384, %s40, [#allocation6], 128, 128, 8
    $region25: #{tpu_custom_call.1} parent=1 // pred_fallthru
      _
    // Predicated region
    $region26: #{tpu_custom_call.1} parent=1 // pred_check
      _
    $region27: #{tpu_custom_call.1} parent=1 // pred_check_branch
      %47 = sbr.rel (0) target = $region29
    $region28: #{tpu_custom_call.1} parent=1 // pred_region
      %48 = dma.done [#allocation3], 256
    $region29: #{tpu_custom_call.1} parent=1 // pred_fallthru
      _
    // Predicated region
    $region30: #{tpu_custom_call.1} parent=1 // pred_check
      _
    $region31: #{tpu_custom_call.1} parent=1 // pred_check_branch
      %50 = sbr.rel (0) target = $region33
    $region32: #{tpu_custom_call.1} parent=1 // pred_region
      %51 = dma.done [#allocation6], 384
    $region33: #{tpu_custom_call.1} parent=1 // pred_fallthru
      _
    %v52 = vld [vmem:[#allocation2] sm:$0xff]
    %v53 = vld [vmem:[#allocation2 + $0x8] sm:$0xff]
    %v54 = vld [vmem:[#allocation5] sm:$0xff]
    %vm55 = vcmask 261120
    %v56 = vsel %vm55, %v52, 0.0
    %57 = vadd.xlane.f32.xlu0 %v56
    %v58 = vpop.xlane.xlu0 %57
    %v59 = vsel %vm55, %v53, 0.0
    %60 = vadd.xlane.f32.xlu0 %v59
    %v61 = vpop.xlane.xlu0 %60
    %v62 = vrcp.pop 32.0
    %v63 = vmul.f32 %v58, %v62
    %v64 = vmul.f32 %v61, %v62
    %v65 = vsub.f32 %v52, %v63
    %v66 = vsub.f32 %v53, %v64
    %v67 = vmul.f32 %v65, %v65
    %v68 = vmul.f32 %v66, %v66
    %v69 = vsel %vm55, %v67, 0.0
    %70 = vadd.xlane.f32.xlu0 %v69
    %v71 = vpop.xlane.xlu0 %70
    %v72 = vsel %vm55, %v68, 0.0
    %73 = vadd.xlane.f32.xlu0 %v72
    %v74 = vpop.xlane.xlu0 %73
    %v75 = vmul.f32 %v71, 0.032258064
    %v76 = vmul.f32 %v74, 0.032258064
    %v77 = vrsqrt.pop %v75
    %v78 = vmul.f32 %v75, %v77
    %vm79 = vcmp.eq.f32.partialorder %v75, inf
    %v80 = vsel %vm79, %v75, %v78
    %vm81 = vcmp.eq.f32.partialorder %v75, 0.0
    %v82 = vand.u32 %v75, 2147483648
    %v83 = vsel %vm81, %v82, %v80
    %v84 = vrsqrt.pop %v76
    %v85 = vmul.f32 %v76, %v84
    %vm86 = vcmp.eq.f32.partialorder %v76, inf
    %v87 = vsel %vm86, %v76, %v85
    %vm88 = vcmp.eq.f32.partialorder %v76, 0.0
    %v89 = vand.u32 %v76, 2147483648
    %v90 = vsel %vm88, %v89, %v87
    %v91 = vadd.f32 %v83, 1e-06
    %v92 = vadd.f32 %v90, 1e-06
    %v93 = vrcp.pop %v91
    %v94 = vrcp.pop %v92
    %v95 = vlaneseq
    %v96 = vshrl.u32 %v95, 7
    %v97 = vsub.s32 4, %v96
    %v98 = vrot.slane %v54, %v97
    %v99 = vmul.f32 %v98, %v65
    %v100 = vmul.f32 %v98, %v66
    %v101 = vmul.f32 %v99, %v93
    %v102 = vmul.f32 %v100, %v94
    %v103 = vlaneseq
    %v104 = vshrl.u32 %v103, 7
    %v105 = vsub.s32 5, %v104
    %v106 = vrot.slane %v54, %v105
    %v107 = vadd.f32 %v101, %v106
    %v108 = vadd.f32 %v102, %v106
    %v109 = vld [vmem:[%s1] sm:$0xff]
    %v110 = vld [vmem:[%s1 + $0x8] sm:$0xff]
    %v111 = vld [vmem:[%s1 + $0x10] sm:$0xff]
    %v112 = vld [vmem:[%s1 + $0x18] sm:$0xff]
    %v113 = vlaneseq
    %v114 = vshrl.u32 %v113, 7
    %v115 = vsub.s32 0, %v114
    %v116 = vrot.slane %v54, %v115
    %v118 = vsel %vm55, %v107, 0
    %v121 = vsel %vm55, %v108, 0
    %123 = vmatprep.subr.mxu0 0.0
    %124 = vmatpush1.msra.mxu0 %v109
    %125 = vmatprep.subr.mxu0 0.0
    %126 = vmatpush1.msra.mxu0 %v110
    %127 = vmatprep.subr.mxu0 0.0
    %128 = vmatpush1.msra.mxu0 %v111
    %129 = vmatprep.subr.mxu0 0.0
    %130 = vmatpush1.msra.mxu0 %v112
    %131 = vmatprep.subr.mxu0 0.0
    %132 = vmatpush1.msra.mxu0 0.0
    %133 = vmatprep.subr.mxu0 0.0
    %134 = vmatpush1.msra.mxu0 0.0
    %135 = vmatprep.subr.mxu0 0.0
    %136 = vmatpush1.msra.mxu0 0.0
    %137 = vmatprep.subr.mxu0 0.0
    %138 = vmatpush1.msra.mxu0 0.0
    %139 = vmatprep.subr.mxu0 0.0
    %140 = vmatpush1.msra.mxu0 0.0
    %141 = vmatprep.subr.mxu0 0.0
    %142 = vmatpush1.msra.mxu0 0.0
    %143 = vmatprep.subr.mxu0 0.0
    %144 = vmatpush1.msra.mxu0 0.0
    %145 = vmatprep.subr.mxu0 0.0
    %146 = vmatpush1.msra.mxu0 0.0
    %147 = vmatprep.subr.mxu0 0.0
    %148 = vmatpush1.msra.mxu0 0.0
    %149 = vmatprep.subr.mxu0 0.0
    %150 = vmatpush1.msra.mxu0 0.0
    %151 = vmatprep.subr.mxu0 0.0
    %152 = vmatpush1.msra.mxu0 0.0
    %153 = vmatprep.subr.mxu0 0.0
    %154 = vmatpush1.msra.mxu0 0.0
    %155 = vmatprep.subr.mxu0 0.0
    %156 = vmatpush1.msra.mxu0 0.0
    %157 = vmatprep.subr.mxu0 0.0
    %158 = vmatpush1.msra.mxu0 0.0
    %159 = vmatprep.subr.mxu0 0.0
    %160 = vmatpush1.msra.mxu0 0.0
    %161 = vmatprep.subr.mxu0 0.0
    %162 = vmatpush1.msra.mxu0 0.0
    %163 = vmatprep.subr.mxu0 0.0
    %164 = vmatpush1.msra.mxu0 0.0
    %165 = vmatprep.subr.mxu0 0.0
    %166 = vmatpush1.msra.mxu0 0.0
    %167 = vmatprep.subr.mxu0 0.0
    %168 = vmatpush1.msra.mxu0 0.0
    %169 = vmatprep.subr.mxu0 0.0
    %170 = vmatpush1.msra.mxu0 0.0
    %171 = vmatprep.subr.mxu0 0.0
    %172 = vmatpush1.msra.mxu0 0.0
    %173 = vmatprep.subr.mxu0 0.0
    %174 = vmatpush1.msra.mxu0 0.0
    %175 = vmatprep.subr.mxu0 0.0
    %176 = vmatpush1.msra.mxu0 0.0
    %177 = vmatprep.subr.mxu0 0.0
    %178 = vmatpush1.msra.mxu0 0.0
    %179 = vmatprep.subr.mxu0 0.0
    %180 = vmatpush1.msra.mxu0 0.0
    %181 = vmatprep.subr.mxu0 0.0
    %182 = vmatpush1.msra.mxu0 0.0
    %183 = vmatprep.subr.mxu0 0.0
    %184 = vmatpush1.msra.mxu0 0.0
    %185 = vmatprep.subr.mxu0 0.0
    %186 = vmatpush1.msra.mxu0 0.0
    %187 = vmatprep.mubr.f32.mxu0 0.0
    %188 = vmatmul.mubr.f32.gmra.mrb[0].mxu0 %v118
    %v189 = vpop.f32.mrb[0].mxu0
    %v190 = vadd.f32 %v116, %v189
    %v191 = vpop.f32.mrb[0].mxu0
    %192 = vmatprep.mubr.f32.mxu0 0.0
    %193 = vmatmul.mubr.f32.gmra.mrb[0].mxu0 %v121
    %v194 = vpop.f32.mrb[0].mxu0
    %v195 = vadd.f32 %v116, %v194
    %v196 = vpop.f32.mrb[0].mxu0
    %197 = vdwg.mxu0
    %200 = vrot.lane.b32.xlu0 %v190, 120
    %v201 = vpop.permute.xlu0 %200
    %202 = vrot.lane.b32.xlu0 %v195, 120
    %v203 = vpop.permute.xlu0 %202
    %204 = vrot.lane.b32.xlu0 %v190, 112
    %v205 = vpop.permute.xlu0 %204
    %206 = vrot.lane.b32.xlu0 %v195, 112
    %v207 = vpop.permute.xlu0 %206
    %208 = vrot.lane.b32.xlu0 %v190, 104
    %v209 = vpop.permute.xlu0 %208
    %210 = vrot.lane.b32.xlu0 %v195, 104
    %v211 = vpop.permute.xlu0 %210
    %212 = vrot.lane.b32.xlu0 %v190, 96
    %v213 = vpop.permute.xlu0 %212
    %vm214 = vcmask 64512
    %v215 = vsel %vm214, %v190, 0
    %v217 = vsel %vm214, %v213, 0
    %219 = vmatprep.subr.mxu0 0.0
    %220 = vmatpush1.xpose.msra.mxu0 %v217
    %221 = vmatprep.subr.mxu0 0.0
    %222 = vmatpush1.xpose.msra.mxu0 0.0
    %223 = vmatprep.subr.mxu0 0.0
    %224 = vmatpush1.xpose.msra.mxu0 0.0
    %225 = vmatprep.subr.mxu0 0.0
    %226 = vmatpush1.xpose.msra.mxu0 0.0
    %227 = vmatprep.subr.mxu0 0.0
    %228 = vmatpush1.xpose.msra.mxu0 0.0
    %229 = vmatprep.subr.mxu0 0.0
    %230 = vmatpush1.xpose.msra.mxu0 0.0
    %231 = vmatprep.subr.mxu0 0.0
    %232 = vmatpush1.xpose.msra.mxu0 0.0
    %233 = vmatprep.subr.mxu0 0.0
    %234 = vmatpush1.xpose.msra.mxu0 0.0
    %235 = vmatprep.subr.mxu0 0.0
    %236 = vmatpush1.xpose.msra.mxu0 0.0
    %237 = vmatprep.subr.mxu0 0.0
    %238 = vmatpush1.xpose.msra.mxu0 0.0
    %239 = vmatprep.subr.mxu0 0.0
    %240 = vmatpush1.xpose.msra.mxu0 0.0
    %241 = vmatprep.subr.mxu0 0.0
    %242 = vmatpush1.xpose.msra.mxu0 0.0
    %243 = vmatprep.subr.mxu0 0.0
    %244 = vmatpush1.xpose.msra.mxu0 0.0
    %245 = vmatprep.subr.mxu0 0.0
    %246 = vmatpush1.xpose.msra.mxu0 0.0
    %247 = vmatprep.subr.mxu0 0.0
    %248 = vmatpush1.xpose.msra.mxu0 0.0
    %249 = vmatprep.subr.mxu0 0.0
    %250 = vmatpush1.xpose.msra.mxu0 0.0
    %251 = vmatprep.subr.mxu0 0.0
    %252 = vmatpush1.xpose.msra.mxu0 0.0
    %253 = vmatprep.subr.mxu0 0.0
    %254 = vmatpush1.xpose.msra.mxu0 0.0
    %255 = vmatprep.subr.mxu0 0.0
    %256 = vmatpush1.xpose.msra.mxu0 0.0
    %257 = vmatprep.subr.mxu0 0.0
    %258 = vmatpush1.xpose.msra.mxu0 0.0
    %259 = vmatprep.subr.mxu0 0.0
    %260 = vmatpush1.xpose.msra.mxu0 0.0
    %261 = vmatprep.subr.mxu0 0.0
    %262 = vmatpush1.xpose.msra.mxu0 0.0
    %263 = vmatprep.subr.mxu0 0.0
    %264 = vmatpush1.xpose.msra.mxu0 0.0
    %265 = vmatprep.subr.mxu0 0.0
    %266 = vmatpush1.xpose.msra.mxu0 0.0
    %267 = vmatprep.subr.mxu0 0.0
    %268 = vmatpush1.xpose.msra.mxu0 0.0
    %269 = vmatprep.subr.mxu0 0.0
    %270 = vmatpush1.xpose.msra.mxu0 0.0
    %271 = vmatprep.subr.mxu0 0.0
    %272 = vmatpush1.xpose.msra.mxu0 0.0
    %273 = vmatprep.subr.mxu0 0.0
    %274 = vmatpush1.xpose.msra.mxu0 0.0
    %275 = vmatprep.subr.mxu0 0.0
    %276 = vmatpush1.xpose.msra.mxu0 0.0
    %277 = vmatprep.subr.mxu0 0.0
    %278 = vmatpush1.xpose.msra.mxu0 0.0
    %279 = vmatprep.subr.mxu0 0.0
    %280 = vmatpush1.xpose.msra.mxu0 0.0
    %281 = vmatprep.subr.mxu0 0.0
    %282 = vmatpush1.xpose.msra.mxu0 0.0
    %283 = vmatprep.mubr.f32.mxu0 0.0
    %284 = vmatmul.mubr.f32.gmra.mrb[0].mxu0 %v215
    %v285 = vpop.f32.mrb[0].mxu0
    %v286 = vadd.f32 0.0, %v285
    %v287 = vpop.f32.mrb[0].mxu0
    %288 = vdwg.mxu0
    %289 = vrot.lane.b32.xlu0 %v195, 96
    %v290 = vpop.permute.xlu0 %289
    %v291 = vsel %vm214, %v195, 0
    %v293 = vsel %vm214, %v290, 0
    %295 = vmatprep.subr.mxu0 0.0
    %296 = vmatpush1.xpose.msra.mxu0 %v293
    %297 = vmatprep.subr.mxu0 0.0
    %298 = vmatpush1.xpose.msra.mxu0 0.0
    %299 = vmatprep.subr.mxu0 0.0
    %300 = vmatpush1.xpose.msra.mxu0 0.0
    %301 = vmatprep.subr.mxu0 0.0
    %302 = vmatpush1.xpose.msra.mxu0 0.0
    %303 = vmatprep.subr.mxu0 0.0
    %304 = vmatpush1.xpose.msra.mxu0 0.0
    %305 = vmatprep.subr.mxu0 0.0
    %306 = vmatpush1.xpose.msra.mxu0 0.0
    %307 = vmatprep.subr.mxu0 0.0
    %308 = vmatpush1.xpose.msra.mxu0 0.0
    %309 = vmatprep.subr.mxu0 0.0
    %310 = vmatpush1.xpose.msra.mxu0 0.0
    %311 = vmatprep.subr.mxu0 0.0
    %312 = vmatpush1.xpose.msra.mxu0 0.0
    %313 = vmatprep.subr.mxu0 0.0
    %314 = vmatpush1.xpose.msra.mxu0 0.0
    %315 = vmatprep.subr.mxu0 0.0
    %316 = vmatpush1.xpose.msra.mxu0 0.0
    %317 = vmatprep.subr.mxu0 0.0
    %318 = vmatpush1.xpose.msra.mxu0 0.0
    %319 = vmatprep.subr.mxu0 0.0
    %320 = vmatpush1.xpose.msra.mxu0 0.0
    %321 = vmatprep.subr.mxu0 0.0
    %322 = vmatpush1.xpose.msra.mxu0 0.0
    %323 = vmatprep.subr.mxu0 0.0
    %324 = vmatpush1.xpose.msra.mxu0 0.0
    %325 = vmatprep.subr.mxu0 0.0
    %326 = vmatpush1.xpose.msra.mxu0 0.0
    %327 = vmatprep.subr.mxu0 0.0
    %328 = vmatpush1.xpose.msra.mxu0 0.0
    %329 = vmatprep.subr.mxu0 0.0
    %330 = vmatpush1.xpose.msra.mxu0 0.0
    %331 = vmatprep.subr.mxu0 0.0
    %332 = vmatpush1.xpose.msra.mxu0 0.0
    %333 = vmatprep.subr.mxu0 0.0
    %334 = vmatpush1.xpose.msra.mxu0 0.0
    %335 = vmatprep.subr.mxu0 0.0
    %336 = vmatpush1.xpose.msra.mxu0 0.0
    %337 = vmatprep.subr.mxu0 0.0
    %338 = vmatpush1.xpose.msra.mxu0 0.0
    %339 = vmatprep.subr.mxu0 0.0
    %340 = vmatpush1.xpose.msra.mxu0 0.0
    %341 = vmatprep.subr.mxu0 0.0
    %342 = vmatpush1.xpose.msra.mxu0 0.0
    %343 = vmatprep.subr.mxu0 0.0
    %344 = vmatpush1.xpose.msra.mxu0 0.0
    %345 = vmatprep.subr.mxu0 0.0
    %346 = vmatpush1.xpose.msra.mxu0 0.0
    %347 = vmatprep.subr.mxu0 0.0
    %348 = vmatpush1.xpose.msra.mxu0 0.0
    %349 = vmatprep.subr.mxu0 0.0
    %350 = vmatpush1.xpose.msra.mxu0 0.0
    %351 = vmatprep.subr.mxu0 0.0
    %352 = vmatpush1.xpose.msra.mxu0 0.0
    %353 = vmatprep.subr.mxu0 0.0
    %354 = vmatpush1.xpose.msra.mxu0 0.0
    %355 = vmatprep.subr.mxu0 0.0
    %356 = vmatpush1.xpose.msra.mxu0 0.0
    %357 = vmatprep.subr.mxu0 0.0
    %358 = vmatpush1.xpose.msra.mxu0 0.0
    %359 = vmatprep.mubr.f32.mxu0 0.0
    %360 = vmatmul.mubr.f32.gmra.mrb[0].mxu0 %v291
    %v361 = vpop.f32.mrb[0].mxu0
    %v362 = vadd.f32 0.0, %v361
    %v363 = vpop.f32.mrb[0].mxu0
    %364 = vdwg.mxu0
    %365 = vrot.lane.b32.xlu0 %v201, 96
    %v366 = vpop.permute.xlu0 %365
    %v367 = vsel %vm214, %v201, 0
    %v369 = vsel %vm214, %v366, 0
    %371 = vmatprep.subr.mxu0 0.0
    %372 = vmatpush1.xpose.msra.mxu0 %v369
    %373 = vmatprep.subr.mxu0 0.0
    %374 = vmatpush1.xpose.msra.mxu0 0.0
    %375 = vmatprep.subr.mxu0 0.0
    %376 = vmatpush1.xpose.msra.mxu0 0.0
    %377 = vmatprep.subr.mxu0 0.0
    %378 = vmatpush1.xpose.msra.mxu0 0.0
    %379 = vmatprep.subr.mxu0 0.0
    %380 = vmatpush1.xpose.msra.mxu0 0.0
    %381 = vmatprep.subr.mxu0 0.0
    %382 = vmatpush1.xpose.msra.mxu0 0.0
    %383 = vmatprep.subr.mxu0 0.0
    %384 = vmatpush1.xpose.msra.mxu0 0.0
    %385 = vmatprep.subr.mxu0 0.0
    %386 = vmatpush1.xpose.msra.mxu0 0.0
    %387 = vmatprep.subr.mxu0 0.0
    %388 = vmatpush1.xpose.msra.mxu0 0.0
    %389 = vmatprep.subr.mxu0 0.0
    %390 = vmatpush1.xpose.msra.mxu0 0.0
    %391 = vmatprep.subr.mxu0 0.0
    %392 = vmatpush1.xpose.msra.mxu0 0.0
    %393 = vmatprep.subr.mxu0 0.0
    %394 = vmatpush1.xpose.msra.mxu0 0.0
    %395 = vmatprep.subr.mxu0 0.0
    %396 = vmatpush1.xpose.msra.mxu0 0.0
    %397 = vmatprep.subr.mxu0 0.0
    %398 = vmatpush1.xpose.msra.mxu0 0.0
    %399 = vmatprep.subr.mxu0 0.0
    %400 = vmatpush1.xpose.msra.mxu0 0.0
    %401 = vmatprep.subr.mxu0 0.0
    %402 = vmatpush1.xpose.msra.mxu0 0.0
    %403 = vmatprep.subr.mxu0 0.0
    %404 = vmatpush1.xpose.msra.mxu0 0.0
    %405 = vmatprep.subr.mxu0 0.0
    %406 = vmatpush1.xpose.msra.mxu0 0.0
    %407 = vmatprep.subr.mxu0 0.0
    %408 = vmatpush1.xpose.msra.mxu0 0.0
    %409 = vmatprep.subr.mxu0 0.0
    %410 = vmatpush1.xpose.msra.mxu0 0.0
    %411 = vmatprep.subr.mxu0 0.0
    %412 = vmatpush1.xpose.msra.mxu0 0.0
    %413 = vmatprep.subr.mxu0 0.0
    %414 = vmatpush1.xpose.msra.mxu0 0.0
    %415 = vmatprep.subr.mxu0 0.0
    %416 = vmatpush1.xpose.msra.mxu0 0.0
    %417 = vmatprep.subr.mxu0 0.0
    %418 = vmatpush1.xpose.msra.mxu0 0.0
    %419 = vmatprep.subr.mxu0 0.0
    %420 = vmatpush1.xpose.msra.mxu0 0.0
    %421 = vmatprep.subr.mxu0 0.0
    %422 = vmatpush1.xpose.msra.mxu0 0.0
    %423 = vmatprep.subr.mxu0 0.0
    %424 = vmatpush1.xpose.msra.mxu0 0.0
    %425 = vmatprep.subr.mxu0 0.0
    %426 = vmatpush1.xpose.msra.mxu0 0.0
    %427 = vmatprep.subr.mxu0 0.0
    %428 = vmatpush1.xpose.msra.mxu0 0.0
    %429 = vmatprep.subr.mxu0 0.0
    %430 = vmatpush1.xpose.msra.mxu0 0.0
    %431 = vmatprep.subr.mxu0 0.0
    %432 = vmatpush1.xpose.msra.mxu0 0.0
    %433 = vmatprep.subr.mxu0 0.0
    %434 = vmatpush1.xpose.msra.mxu0 0.0
    %435 = vmatprep.mubr.f32.mxu0 0.0
    %436 = vmatmul.mubr.f32.gmra.mrb[0].mxu0 %v367
    %v437 = vpop.f32.mrb[0].mxu0
    %v438 = vadd.f32 0.0, %v437
    %v439 = vpop.f32.mrb[0].mxu0
    %440 = vdwg.mxu0
    %441 = vrot.lane.b32.xlu0 %v203, 96
    %v442 = vpop.permute.xlu0 %441
    %v443 = vsel %vm214, %v203, 0
    %v445 = vsel %vm214, %v442, 0
    %447 = vmatprep.subr.mxu0 0.0
    %448 = vmatpush1.xpose.msra.mxu0 %v445
    %449 = vmatprep.subr.mxu0 0.0
    %450 = vmatpush1.xpose.msra.mxu0 0.0
    %451 = vmatprep.subr.mxu0 0.0
    %452 = vmatpush1.xpose.msra.mxu0 0.0
    %453 = vmatprep.subr.mxu0 0.0
    %454 = vmatpush1.xpose.msra.mxu0 0.0
    %455 = vmatprep.subr.mxu0 0.0
    %456 = vmatpush1.xpose.msra.mxu0 0.0
    %457 = vmatprep.subr.mxu0 0.0
    %458 = vmatpush1.xpose.msra.mxu0 0.0
    %459 = vmatprep.subr.mxu0 0.0
    %460 = vmatpush1.xpose.msra.mxu0 0.0
    %461 = vmatprep.subr.mxu0 0.0
    %462 = vmatpush1.xpose.msra.mxu0 0.0
    %463 = vmatprep.subr.mxu0 0.0
    %464 = vmatpush1.xpose.msra.mxu0 0.0
    %465 = vmatprep.subr.mxu0 0.0
    %466 = vmatpush1.xpose.msra.mxu0 0.0
    %467 = vmatprep.subr.mxu0 0.0
    %468 = vmatpush1.xpose.msra.mxu0 0.0
    %469 = vmatprep.subr.mxu0 0.0
    %470 = vmatpush1.xpose.msra.mxu0 0.0
    %471 = vmatprep.subr.mxu0 0.0
    %472 = vmatpush1.xpose.msra.mxu0 0.0
    %473 = vmatprep.subr.mxu0 0.0
    %474 = vmatpush1.xpose.msra.mxu0 0.0
    %475 = vmatprep.subr.mxu0 0.0
    %476 = vmatpush1.xpose.msra.mxu0 0.0
    %477 = vmatprep.subr.mxu0 0.0
    %478 = vmatpush1.xpose.msra.mxu0 0.0
    %479 = vmatprep.subr.mxu0 0.0
    %480 = vmatpush1.xpose.msra.mxu0 0.0
    %481 = vmatprep.subr.mxu0 0.0
    %482 = vmatpush1.xpose.msra.mxu0 0.0
    %483 = vmatprep.subr.mxu0 0.0
    %484 = vmatpush1.xpose.msra.mxu0 0.0
    %485 = vmatprep.subr.mxu0 0.0
    %486 = vmatpush1.xpose.msra.mxu0 0.0
    %487 = vmatprep.subr.mxu0 0.0
    %488 = vmatpush1.xpose.msra.mxu0 0.0
    %489 = vmatprep.subr.mxu0 0.0
    %490 = vmatpush1.xpose.msra.mxu0 0.0
    %491 = vmatprep.subr.mxu0 0.0
    %492 = vmatpush1.xpose.msra.mxu0 0.0
    %493 = vmatprep.subr.mxu0 0.0
    %494 = vmatpush1.xpose.msra.mxu0 0.0
    %495 = vmatprep.subr.mxu0 0.0
    %496 = vmatpush1.xpose.msra.mxu0 0.0
    %497 = vmatprep.subr.mxu0 0.0
    %498 = vmatpush1.xpose.msra.mxu0 0.0
    %499 = vmatprep.subr.mxu0 0.0
    %500 = vmatpush1.xpose.msra.mxu0 0.0
    %501 = vmatprep.subr.mxu0 0.0
    %502 = vmatpush1.xpose.msra.mxu0 0.0
    %503 = vmatprep.subr.mxu0 0.0
    %504 = vmatpush1.xpose.msra.mxu0 0.0
    %505 = vmatprep.subr.mxu0 0.0
    %506 = vmatpush1.xpose.msra.mxu0 0.0
    %507 = vmatprep.subr.mxu0 0.0
    %508 = vmatpush1.xpose.msra.mxu0 0.0
    %509 = vmatprep.subr.mxu0 0.0
    %510 = vmatpush1.xpose.msra.mxu0 0.0
    %511 = vmatprep.mubr.f32.mxu0 0.0
    %512 = vmatmul.mubr.f32.gmra.mrb[0].mxu0 %v443
    %v513 = vpop.f32.mrb[0].mxu0
    %v514 = vadd.f32 0.0, %v513
    %v515 = vpop.f32.mrb[0].mxu0
    %516 = vdwg.mxu0
    %517 = vrot.lane.b32.xlu0 %v205, 96
    %v518 = vpop.permute.xlu0 %517
    %v519 = vsel %vm214, %v205, 0
    %v521 = vsel %vm214, %v518, 0
    %523 = vmatprep.subr.mxu0 0.0
    %524 = vmatpush1.xpose.msra.mxu0 %v521
    %525 = vmatprep.subr.mxu0 0.0
    %526 = vmatpush1.xpose.msra.mxu0 0.0
    %527 = vmatprep.subr.mxu0 0.0
    %528 = vmatpush1.xpose.msra.mxu0 0.0
    %529 = vmatprep.subr.mxu0 0.0
    %530 = vmatpush1.xpose.msra.mxu0 0.0
    %531 = vmatprep.subr.mxu0 0.0
    %532 = vmatpush1.xpose.msra.mxu0 0.0
    %533 = vmatprep.subr.mxu0 0.0
    %534 = vmatpush1.xpose.msra.mxu0 0.0
    %535 = vmatprep.subr.mxu0 0.0
    %536 = vmatpush1.xpose.msra.mxu0 0.0
    %537 = vmatprep.subr.mxu0 0.0
    %538 = vmatpush1.xpose.msra.mxu0 0.0
    %539 = vmatprep.subr.mxu0 0.0
    %540 = vmatpush1.xpose.msra.mxu0 0.0
    %541 = vmatprep.subr.mxu0 0.0
    %542 = vmatpush1.xpose.msra.mxu0 0.0
    %543 = vmatprep.subr.mxu0 0.0
    %544 = vmatpush1.xpose.msra.mxu0 0.0
    %545 = vmatprep.subr.mxu0 0.0
    %546 = vmatpush1.xpose.msra.mxu0 0.0
    %547 = vmatprep.subr.mxu0 0.0
    %548 = vmatpush1.xpose.msra.mxu0 0.0
    %549 = vmatprep.subr.mxu0 0.0
    %550 = vmatpush1.xpose.msra.mxu0 0.0
    %551 = vmatprep.subr.mxu0 0.0
    %552 = vmatpush1.xpose.msra.mxu0 0.0
    %553 = vmatprep.subr.mxu0 0.0
    %554 = vmatpush1.xpose.msra.mxu0 0.0
    %555 = vmatprep.subr.mxu0 0.0
    %556 = vmatpush1.xpose.msra.mxu0 0.0
    %557 = vmatprep.subr.mxu0 0.0
    %558 = vmatpush1.xpose.msra.mxu0 0.0
    %559 = vmatprep.subr.mxu0 0.0
    %560 = vmatpush1.xpose.msra.mxu0 0.0
    %561 = vmatprep.subr.mxu0 0.0
    %562 = vmatpush1.xpose.msra.mxu0 0.0
    %563 = vmatprep.subr.mxu0 0.0
    %564 = vmatpush1.xpose.msra.mxu0 0.0
    %565 = vmatprep.subr.mxu0 0.0
    %566 = vmatpush1.xpose.msra.mxu0 0.0
    %567 = vmatprep.subr.mxu0 0.0
    %568 = vmatpush1.xpose.msra.mxu0 0.0
    %569 = vmatprep.subr.mxu0 0.0
    %570 = vmatpush1.xpose.msra.mxu0 0.0
    %571 = vmatprep.subr.mxu0 0.0
    %572 = vmatpush1.xpose.msra.mxu0 0.0
    %573 = vmatprep.subr.mxu0 0.0
    %574 = vmatpush1.xpose.msra.mxu0 0.0
    %575 = vmatprep.subr.mxu0 0.0
    %576 = vmatpush1.xpose.msra.mxu0 0.0
    %577 = vmatprep.subr.mxu0 0.0
    %578 = vmatpush1.xpose.msra.mxu0 0.0
    %579 = vmatprep.subr.mxu0 0.0
    %580 = vmatpush1.xpose.msra.mxu0 0.0
    %581 = vmatprep.subr.mxu0 0.0
    %582 = vmatpush1.xpose.msra.mxu0 0.0
    %583 = vmatprep.subr.mxu0 0.0
    %584 = vmatpush1.xpose.msra.mxu0 0.0
    %585 = vmatprep.subr.mxu0 0.0
    %586 = vmatpush1.xpose.msra.mxu0 0.0
    %587 = vmatprep.mubr.f32.mxu0 0.0
    %588 = vmatmul.mubr.f32.gmra.mrb[0].mxu0 %v519
    %v589 = vpop.f32.mrb[0].mxu0
    %v590 = vadd.f32 0.0, %v589
    %v591 = vpop.f32.mrb[0].mxu0
    %592 = vdwg.mxu0
    %593 = vrot.lane.b32.xlu0 %v207, 96
    %v594 = vpop.permute.xlu0 %593
    %v595 = vsel %vm214, %v207, 0
    %v597 = vsel %vm214, %v594, 0
    %599 = vmatprep.subr.mxu0 0.0
    %600 = vmatpush1.xpose.msra.mxu0 %v597
    %601 = vmatprep.subr.mxu0 0.0
    %602 = vmatpush1.xpose.msra.mxu0 0.0
    %603 = vmatprep.subr.mxu0 0.0
    %604 = vmatpush1.xpose.msra.mxu0 0.0
    %605 = vmatprep.subr.mxu0 0.0
    %606 = vmatpush1.xpose.msra.mxu0 0.0
    %607 = vmatprep.subr.mxu0 0.0
    %608 = vmatpush1.xpose.msra.mxu0 0.0
    %609 = vmatprep.subr.mxu0 0.0
    %610 = vmatpush1.xpose.msra.mxu0 0.0
    %611 = vmatprep.subr.mxu0 0.0
    %612 = vmatpush1.xpose.msra.mxu0 0.0
    %613 = vmatprep.subr.mxu0 0.0
    %614 = vmatpush1.xpose.msra.mxu0 0.0
    %615 = vmatprep.subr.mxu0 0.0
    %616 = vmatpush1.xpose.msra.mxu0 0.0
    %617 = vmatprep.subr.mxu0 0.0
    %618 = vmatpush1.xpose.msra.mxu0 0.0
    %619 = vmatprep.subr.mxu0 0.0
    %620 = vmatpush1.xpose.msra.mxu0 0.0
    %621 = vmatprep.subr.mxu0 0.0
    %622 = vmatpush1.xpose.msra.mxu0 0.0
    %623 = vmatprep.subr.mxu0 0.0
    %624 = vmatpush1.xpose.msra.mxu0 0.0
    %625 = vmatprep.subr.mxu0 0.0
    %626 = vmatpush1.xpose.msra.mxu0 0.0
    %627 = vmatprep.subr.mxu0 0.0
    %628 = vmatpush1.xpose.msra.mxu0 0.0
    %629 = vmatprep.subr.mxu0 0.0
    %630 = vmatpush1.xpose.msra.mxu0 0.0
    %631 = vmatprep.subr.mxu0 0.0
    %632 = vmatpush1.xpose.msra.mxu0 0.0
    %633 = vmatprep.subr.mxu0 0.0
    %634 = vmatpush1.xpose.msra.mxu0 0.0
    %635 = vmatprep.subr.mxu0 0.0
    %636 = vmatpush1.xpose.msra.mxu0 0.0
    %637 = vmatprep.subr.mxu0 0.0
    %638 = vmatpush1.xpose.msra.mxu0 0.0
    %639 = vmatprep.subr.mxu0 0.0
    %640 = vmatpush1.xpose.msra.mxu0 0.0
    %641 = vmatprep.subr.mxu0 0.0
    %642 = vmatpush1.xpose.msra.mxu0 0.0
    %643 = vmatprep.subr.mxu0 0.0
    %644 = vmatpush1.xpose.msra.mxu0 0.0
    %645 = vmatprep.subr.mxu0 0.0
    %646 = vmatpush1.xpose.msra.mxu0 0.0
    %647 = vmatprep.subr.mxu0 0.0
    %648 = vmatpush1.xpose.msra.mxu0 0.0
    %649 = vmatprep.subr.mxu0 0.0
    %650 = vmatpush1.xpose.msra.mxu0 0.0
    %651 = vmatprep.subr.mxu0 0.0
    %652 = vmatpush1.xpose.msra.mxu0 0.0
    %653 = vmatprep.subr.mxu0 0.0
    %654 = vmatpush1.xpose.msra.mxu0 0.0
    %655 = vmatprep.subr.mxu0 0.0
    %656 = vmatpush1.xpose.msra.mxu0 0.0
    %657 = vmatprep.subr.mxu0 0.0
    %658 = vmatpush1.xpose.msra.mxu0 0.0
    %659 = vmatprep.subr.mxu0 0.0
    %660 = vmatpush1.xpose.msra.mxu0 0.0
    %661 = vmatprep.subr.mxu0 0.0
    %662 = vmatpush1.xpose.msra.mxu0 0.0
    %663 = vmatprep.mubr.f32.mxu0 0.0
    %664 = vmatmul.mubr.f32.gmra.mrb[0].mxu0 %v595
    %v665 = vpop.f32.mrb[0].mxu0
    %v666 = vadd.f32 0.0, %v665
    %v667 = vpop.f32.mrb[0].mxu0
    %668 = vdwg.mxu0
    %669 = vrot.lane.b32.xlu0 %v209, 96
    %v670 = vpop.permute.xlu0 %669
    %v671 = vsel %vm214, %v209, 0
    %v673 = vsel %vm214, %v670, 0
    %675 = vmatprep.subr.mxu0 0.0
    %676 = vmatpush1.xpose.msra.mxu0 %v673
    %677 = vmatprep.subr.mxu0 0.0
    %678 = vmatpush1.xpose.msra.mxu0 0.0
    %679 = vmatprep.subr.mxu0 0.0
    %680 = vmatpush1.xpose.msra.mxu0 0.0
    %681 = vmatprep.subr.mxu0 0.0
    %682 = vmatpush1.xpose.msra.mxu0 0.0
    %683 = vmatprep.subr.mxu0 0.0
    %684 = vmatpush1.xpose.msra.mxu0 0.0
    %685 = vmatprep.subr.mxu0 0.0
    %686 = vmatpush1.xpose.msra.mxu0 0.0
    %687 = vmatprep.subr.mxu0 0.0
    %688 = vmatpush1.xpose.msra.mxu0 0.0
    %689 = vmatprep.subr.mxu0 0.0
    %690 = vmatpush1.xpose.msra.mxu0 0.0
    %691 = vmatprep.subr.mxu0 0.0
    %692 = vmatpush1.xpose.msra.mxu0 0.0
    %693 = vmatprep.subr.mxu0 0.0
    %694 = vmatpush1.xpose.msra.mxu0 0.0
    %695 = vmatprep.subr.mxu0 0.0
    %696 = vmatpush1.xpose.msra.mxu0 0.0
    %697 = vmatprep.subr.mxu0 0.0
    %698 = vmatpush1.xpose.msra.mxu0 0.0
    %699 = vmatprep.subr.mxu0 0.0
    %700 = vmatpush1.xpose.msra.mxu0 0.0
    %701 = vmatprep.subr.mxu0 0.0
    %702 = vmatpush1.xpose.msra.mxu0 0.0
    %703 = vmatprep.subr.mxu0 0.0
    %704 = vmatpush1.xpose.msra.mxu0 0.0
    %705 = vmatprep.subr.mxu0 0.0
    %706 = vmatpush1.xpose.msra.mxu0 0.0
    %707 = vmatprep.subr.mxu0 0.0
    %708 = vmatpush1.xpose.msra.mxu0 0.0
    %709 = vmatprep.subr.mxu0 0.0
    %710 = vmatpush1.xpose.msra.mxu0 0.0
    %711 = vmatprep.subr.mxu0 0.0
    %712 = vmatpush1.xpose.msra.mxu0 0.0
    %713 = vmatprep.subr.mxu0 0.0
    %714 = vmatpush1.xpose.msra.mxu0 0.0
    %715 = vmatprep.subr.mxu0 0.0
    %716 = vmatpush1.xpose.msra.mxu0 0.0
    %717 = vmatprep.subr.mxu0 0.0
    %718 = vmatpush1.xpose.msra.mxu0 0.0
    %719 = vmatprep.subr.mxu0 0.0
    %720 = vmatpush1.xpose.msra.mxu0 0.0
    %721 = vmatprep.subr.mxu0 0.0
    %722 = vmatpush1.xpose.msra.mxu0 0.0
    %723 = vmatprep.subr.mxu0 0.0
    %724 = vmatpush1.xpose.msra.mxu0 0.0
    %725 = vmatprep.subr.mxu0 0.0
    %726 = vmatpush1.xpose.msra.mxu0 0.0
    %727 = vmatprep.subr.mxu0 0.0
    %728 = vmatpush1.xpose.msra.mxu0 0.0
    %729 = vmatprep.subr.mxu0 0.0
    %730 = vmatpush1.xpose.msra.mxu0 0.0
    %731 = vmatprep.subr.mxu0 0.0
    %732 = vmatpush1.xpose.msra.mxu0 0.0
    %733 = vmatprep.subr.mxu0 0.0
    %734 = vmatpush1.xpose.msra.mxu0 0.0
    %735 = vmatprep.subr.mxu0 0.0
    %736 = vmatpush1.xpose.msra.mxu0 0.0
    %737 = vmatprep.subr.mxu0 0.0
    %738 = vmatpush1.xpose.msra.mxu0 0.0
    %739 = vmatprep.mubr.f32.mxu0 0.0
    %740 = vmatmul.mubr.f32.gmra.mrb[0].mxu0 %v671
    %v741 = vpop.f32.mrb[0].mxu0
    %v742 = vadd.f32 0.0, %v741
    %v743 = vpop.f32.mrb[0].mxu0
    %744 = vdwg.mxu0
    %745 = vrot.lane.b32.xlu0 %v211, 96
    %v746 = vpop.permute.xlu0 %745
    %v747 = vsel %vm214, %v211, 0
    %v749 = vsel %vm214, %v746, 0
    %751 = vmatprep.subr.mxu0 0.0
    %752 = vmatpush1.xpose.msra.mxu0 %v749
    %753 = vmatprep.subr.mxu0 0.0
    %754 = vmatpush1.xpose.msra.mxu0 0.0
    %755 = vmatprep.subr.mxu0 0.0
    %756 = vmatpush1.xpose.msra.mxu0 0.0
    %757 = vmatprep.subr.mxu0 0.0
    %758 = vmatpush1.xpose.msra.mxu0 0.0
    %759 = vmatprep.subr.mxu0 0.0
    %760 = vmatpush1.xpose.msra.mxu0 0.0
    %761 = vmatprep.subr.mxu0 0.0
    %762 = vmatpush1.xpose.msra.mxu0 0.0
    %763 = vmatprep.subr.mxu0 0.0
    %764 = vmatpush1.xpose.msra.mxu0 0.0
    %765 = vmatprep.subr.mxu0 0.0
    %766 = vmatpush1.xpose.msra.mxu0 0.0
    %767 = vmatprep.subr.mxu0 0.0
    %768 = vmatpush1.xpose.msra.mxu0 0.0
    %769 = vmatprep.subr.mxu0 0.0
    %770 = vmatpush1.xpose.msra.mxu0 0.0
    %771 = vmatprep.subr.mxu0 0.0
    %772 = vmatpush1.xpose.msra.mxu0 0.0
    %773 = vmatprep.subr.mxu0 0.0
    %774 = vmatpush1.xpose.msra.mxu0 0.0
    %775 = vmatprep.subr.mxu0 0.0
    %776 = vmatpush1.xpose.msra.mxu0 0.0
    %777 = vmatprep.subr.mxu0 0.0
    %778 = vmatpush1.xpose.msra.mxu0 0.0
    %779 = vmatprep.subr.mxu0 0.0
    %780 = vmatpush1.xpose.msra.mxu0 0.0
    %781 = vmatprep.subr.mxu0 0.0
    %782 = vmatpush1.xpose.msra.mxu0 0.0
    %783 = vmatprep.subr.mxu0 0.0
    %784 = vmatpush1.xpose.msra.mxu0 0.0
    %785 = vmatprep.subr.mxu0 0.0
    %786 = vmatpush1.xpose.msra.mxu0 0.0
    %787 = vmatprep.subr.mxu0 0.0
    %788 = vmatpush1.xpose.msra.mxu0 0.0
    %789 = vmatprep.subr.mxu0 0.0
    %790 = vmatpush1.xpose.msra.mxu0 0.0
    %791 = vmatprep.subr.mxu0 0.0
    %792 = vmatpush1.xpose.msra.mxu0 0.0
    %793 = vmatprep.subr.mxu0 0.0
    %794 = vmatpush1.xpose.msra.mxu0 0.0
    %795 = vmatprep.subr.mxu0 0.0
    %796 = vmatpush1.xpose.msra.mxu0 0.0
    %797 = vmatprep.subr.mxu0 0.0
    %798 = vmatpush1.xpose.msra.mxu0 0.0
    %799 = vmatprep.subr.mxu0 0.0
    %800 = vmatpush1.xpose.msra.mxu0 0.0
    %801 = vmatprep.subr.mxu0 0.0
    %802 = vmatpush1.xpose.msra.mxu0 0.0
    %803 = vmatprep.subr.mxu0 0.0
    %804 = vmatpush1.xpose.msra.mxu0 0.0
    %805 = vmatprep.subr.mxu0 0.0
    %806 = vmatpush1.xpose.msra.mxu0 0.0
    %807 = vmatprep.subr.mxu0 0.0
    %808 = vmatpush1.xpose.msra.mxu0 0.0
    %809 = vmatprep.subr.mxu0 0.0
    %810 = vmatpush1.xpose.msra.mxu0 0.0
    %811 = vmatprep.subr.mxu0 0.0
    %812 = vmatpush1.xpose.msra.mxu0 0.0
    %813 = vmatprep.subr.mxu0 0.0
    %814 = vmatpush1.xpose.msra.mxu0 0.0
    %815 = vmatprep.mubr.f32.mxu0 0.0
    %816 = vmatmul.mubr.f32.gmra.mrb[0].mxu0 %v747
    %v817 = vpop.f32.mrb[0].mxu0
    %v818 = vadd.f32 0.0, %v817
    %v819 = vpop.f32.mrb[0].mxu0
    %820 = vdwg.mxu0
    %v821 = vmul.f32 %v286, 0.35355338
    %v822 = vmul.f32 %v362, 0.35355338
    %v823 = vmul.f32 %v438, 0.35355338
    %v824 = vmul.f32 %v514, 0.35355338
    %v825 = vmul.f32 %v590, 0.35355338
    %v826 = vmul.f32 %v666, 0.35355338
    %v827 = vmul.f32 %v742, 0.35355338
    %v828 = vmul.f32 %v818, 0.35355338
    %v829 = vsel %vm214, %v821, -inf
    %830 = vmax.xlane.f32.xlu0 %v829
    %v831 = vpop.xlane.xlu0 %830
    %v832 = vsel %vm214, %v822, -inf
    %833 = vmax.xlane.f32.xlu0 %v832
    %v834 = vpop.xlane.xlu0 %833
    %v835 = vsel %vm214, %v823, -inf
    %836 = vmax.xlane.f32.xlu0 %v835
    %v837 = vpop.xlane.xlu0 %836
    %v838 = vsel %vm214, %v824, -inf
    %839 = vmax.xlane.f32.xlu0 %v838
    %v840 = vpop.xlane.xlu0 %839
    %v841 = vsel %vm214, %v825, -inf
    %842 = vmax.xlane.f32.xlu0 %v841
    %v843 = vpop.xlane.xlu0 %842
    %v844 = vsel %vm214, %v826, -inf
    %845 = vmax.xlane.f32.xlu0 %v844
    %v846 = vpop.xlane.xlu0 %845
    %v847 = vsel %vm214, %v827, -inf
    %848 = vmax.xlane.f32.xlu0 %v847
    %v849 = vpop.xlane.xlu0 %848
    %v850 = vsel %vm214, %v828, -inf
    %851 = vmax.xlane.f32.xlu0 %v850
    %v852 = vpop.xlane.xlu0 %851
    %v853 = vsub.f32 %v821, %v831
    %v854 = vsub.f32 %v822, %v834
    %v855 = vsub.f32 %v823, %v837
    %v856 = vsub.f32 %v824, %v840
    %v857 = vsub.f32 %v825, %v843
    %v858 = vsub.f32 %v826, %v846
    %v859 = vsub.f32 %v827, %v849
    %v860 = vsub.f32 %v828, %v852
    %v861 = vmul.f32 %v853, 1.442695
    %v862 = vpow.pop %v861
    %v863 = vmul.f32 %v854, 1.442695
    %v864 = vpow.pop %v863
    %v865 = vmul.f32 %v855, 1.442695
    %v866 = vpow.pop %v865
    %v867 = vmul.f32 %v856, 1.442695
    %v868 = vpow.pop %v867
    %v869 = vmul.f32 %v857, 1.442695
    %v870 = vpow.pop %v869
    %v871 = vmul.f32 %v858, 1.442695
    %v872 = vpow.pop %v871
    %v873 = vmul.f32 %v859, 1.442695
    %v874 = vpow.pop %v873
    %v875 = vmul.f32 %v860, 1.442695
    %v876 = vpow.pop %v875
    %v877 = vsel %vm214, %v862, 0.0
    %878 = vadd.xlane.f32.xlu0 %v877
    %v879 = vpop.xlane.xlu0 %878
    %v880 = vsel %vm214, %v864, 0.0
    %881 = vadd.xlane.f32.xlu0 %v880
    %v882 = vpop.xlane.xlu0 %881
    %v883 = vsel %vm214, %v866, 0.0
    %884 = vadd.xlane.f32.xlu0 %v883
    %v885 = vpop.xlane.xlu0 %884
    %v886 = vsel %vm214, %v868, 0.0
    %887 = vadd.xlane.f32.xlu0 %v886
    %v888 = vpop.xlane.xlu0 %887
    %v889 = vsel %vm214, %v870, 0.0
    %890 = vadd.xlane.f32.xlu0 %v889
    %v891 = vpop.xlane.xlu0 %890
    %v892 = vsel %vm214, %v872, 0.0
    %893 = vadd.xlane.f32.xlu0 %v892
    %v894 = vpop.xlane.xlu0 %893
    %v895 = vsel %vm214, %v874, 0.0
    %896 = vadd.xlane.f32.xlu0 %v895
    %v897 = vpop.xlane.xlu0 %896
    %v898 = vsel %vm214, %v876, 0.0
    %899 = vadd.xlane.f32.xlu0 %v898
    %v900 = vpop.xlane.xlu0 %899
    %v901 = vrcp.pop %v879
    %v902 = vrcp.pop %v882
    %v903 = vrcp.pop %v885
    %v904 = vrcp.pop %v888
    %v905 = vrcp.pop %v891
    %v906 = vrcp.pop %v894
    %v907 = vrcp.pop %v897
    %v908 = vrcp.pop %v900
    %v909 = vmul.f32 %v862, %v901
    %v910 = vmul.f32 %v864, %v902
    %v911 = vmul.f32 %v866, %v903
    %v912 = vmul.f32 %v868, %v904
    %v913 = vmul.f32 %v870, %v905
    %v914 = vmul.f32 %v872, %v906
    %v915 = vmul.f32 %v874, %v907
    %v916 = vmul.f32 %v876, %v908
    %917 = vrot.lane.b32.xlu0 %v190, 64
    %v918 = vpop.permute.xlu0 %917
    %v921 = vsel %vm214, %v909, 0
    %923 = vmatprep.subr.mxu0 0.0
    %924 = vmatpush1.msra.mxu0 %v918
    %925 = vmatprep.subr.mxu0 0.0
    %926 = vmatpush1.msra.mxu0 0.0
    %927 = vmatprep.subr.mxu0 0.0
    %928 = vmatpush1.msra.mxu0 0.0
    %929 = vmatprep.subr.mxu0 0.0
    %930 = vmatpush1.msra.mxu0 0.0
    %931 = vmatprep.subr.mxu0 0.0
    %932 = vmatpush1.msra.mxu0 0.0
    %933 = vmatprep.subr.mxu0 0.0
    %934 = vmatpush1.msra.mxu0 0.0
    %935 = vmatprep.subr.mxu0 0.0
    %936 = vmatpush1.msra.mxu0 0.0
    %937 = vmatprep.subr.mxu0 0.0
    %938 = vmatpush1.msra.mxu0 0.0
    %939 = vmatprep.subr.mxu0 0.0
    %940 = vmatpush1.msra.mxu0 0.0
    %941 = vmatprep.subr.mxu0 0.0
    %942 = vmatpush1.msra.mxu0 0.0
    %943 = vmatprep.subr.mxu0 0.0
    %944 = vmatpush1.msra.mxu0 0.0
    %945 = vmatprep.subr.mxu0 0.0
    %946 = vmatpush1.msra.mxu0 0.0
    %947 = vmatprep.subr.mxu0 0.0
    %948 = vmatpush1.msra.mxu0 0.0
    %949 = vmatprep.subr.mxu0 0.0
    %950 = vmatpush1.msra.mxu0 0.0
    %951 = vmatprep.subr.mxu0 0.0
    %952 = vmatpush1.msra.mxu0 0.0
    %953 = vmatprep.subr.mxu0 0.0
    %954 = vmatpush1.msra.mxu0 0.0
    %955 = vmatprep.subr.mxu0 0.0
    %956 = vmatpush1.msra.mxu0 0.0
    %957 = vmatprep.subr.mxu0 0.0
    %958 = vmatpush1.msra.mxu0 0.0
    %959 = vmatprep.subr.mxu0 0.0
    %960 = vmatpush1.msra.mxu0 0.0
    %961 = vmatprep.subr.mxu0 0.0
    %962 = vmatpush1.msra.mxu0 0.0
    %963 = vmatprep.subr.mxu0 0.0
    %964 = vmatpush1.msra.mxu0 0.0
    %965 = vmatprep.subr.mxu0 0.0
    %966 = vmatpush1.msra.mxu0 0.0
    %967 = vmatprep.subr.mxu0 0.0
    %968 = vmatpush1.msra.mxu0 0.0
    %969 = vmatprep.subr.mxu0 0.0
    %970 = vmatpush1.msra.mxu0 0.0
    %971 = vmatprep.subr.mxu0 0.0
    %972 = vmatpush1.msra.mxu0 0.0
    %973 = vmatprep.subr.mxu0 0.0
    %974 = vmatpush1.msra.mxu0 0.0
    %975 = vmatprep.subr.mxu0 0.0
    %976 = vmatpush1.msra.mxu0 0.0
    %977 = vmatprep.subr.mxu0 0.0
    %978 = vmatpush1.msra.mxu0 0.0
    %979 = vmatprep.subr.mxu0 0.0
    %980 = vmatpush1.msra.mxu0 0.0
    %981 = vmatprep.subr.mxu0 0.0
    %982 = vmatpush1.msra.mxu0 0.0
    %983 = vmatprep.subr.mxu0 0.0
    %984 = vmatpush1.msra.mxu0 0.0
    %985 = vmatprep.subr.mxu0 0.0
    %986 = vmatpush1.msra.mxu0 0.0
    %987 = vmatprep.mubr.f32.mxu0 0.0
    %988 = vmatmul.mubr.f32.gmra.mrb[0].mxu0 %v921
    %v989 = vpop.f32.mrb[0].mxu0
    %v990 = vadd.f32 0.0, %v989
    %v991 = vpop.f32.mrb[0].mxu0
    %992 = vdwg.mxu0
    %993 = vrot.lane.b32.xlu0 %v195, 64
    %v994 = vpop.permute.xlu0 %993
    %v997 = vsel %vm214, %v910, 0
    %999 = vmatprep.subr.mxu0 0.0
    %1000 = vmatpush1.msra.mxu0 %v994
    %1001 = vmatprep.subr.mxu0 0.0
    %1002 = vmatpush1.msra.mxu0 0.0
    %1003 = vmatprep.subr.mxu0 0.0
    %1004 = vmatpush1.msra.mxu0 0.0
    %1005 = vmatprep.subr.mxu0 0.0
    %1006 = vmatpush1.msra.mxu0 0.0
    %1007 = vmatprep.subr.mxu0 0.0
    %1008 = vmatpush1.msra.mxu0 0.0
    %1009 = vmatprep.subr.mxu0 0.0
    %1010 = vmatpush1.msra.mxu0 0.0
    %1011 = vmatprep.subr.mxu0 0.0
    %1012 = vmatpush1.msra.mxu0 0.0
    %1013 = vmatprep.subr.mxu0 0.0
    %1014 = vmatpush1.msra.mxu0 0.0
    %1015 = vmatprep.subr.mxu0 0.0
    %1016 = vmatpush1.msra.mxu0 0.0
    %1017 = vmatprep.subr.mxu0 0.0
    %1018 = vmatpush1.msra.mxu0 0.0
    %1019 = vmatprep.subr.mxu0 0.0
    %1020 = vmatpush1.msra.mxu0 0.0
    %1021 = vmatprep.subr.mxu0 0.0
    %1022 = vmatpush1.msra.mxu0 0.0
    %1023 = vmatprep.subr.mxu0 0.0
    %1024 = vmatpush1.msra.mxu0 0.0
    %1025 = vmatprep.subr.mxu0 0.0
    %1026 = vmatpush1.msra.mxu0 0.0
    %1027 = vmatprep.subr.mxu0 0.0
    %1028 = vmatpush1.msra.mxu0 0.0
    %1029 = vmatprep.subr.mxu0 0.0
    %1030 = vmatpush1.msra.mxu0 0.0
    %1031 = vmatprep.subr.mxu0 0.0
    %1032 = vmatpush1.msra.mxu0 0.0
    %1033 = vmatprep.subr.mxu0 0.0
    %1034 = vmatpush1.msra.mxu0 0.0
    %1035 = vmatprep.subr.mxu0 0.0
    %1036 = vmatpush1.msra.mxu0 0.0
    %1037 = vmatprep.subr.mxu0 0.0
    %1038 = vmatpush1.msra.mxu0 0.0
    %1039 = vmatprep.subr.mxu0 0.0
    %1040 = vmatpush1.msra.mxu0 0.0
    %1041 = vmatprep.subr.mxu0 0.0
    %1042 = vmatpush1.msra.mxu0 0.0
    %1043 = vmatprep.subr.mxu0 0.0
    %1044 = vmatpush1.msra.mxu0 0.0
    %1045 = vmatprep.subr.mxu0 0.0
    %1046 = vmatpush1.msra.mxu0 0.0
    %1047 = vmatprep.subr.mxu0 0.0
    %1048 = vmatpush1.msra.mxu0 0.0
    %1049 = vmatprep.subr.mxu0 0.0
    %1050 = vmatpush1.msra.mxu0 0.0
    %1051 = vmatprep.subr.mxu0 0.0
    %1052 = vmatpush1.msra.mxu0 0.0
    %1053 = vmatprep.subr.mxu0 0.0
    %1054 = vmatpush1.msra.mxu0 0.0
    %1055 = vmatprep.subr.mxu0 0.0
    %1056 = vmatpush1.msra.mxu0 0.0
    %1057 = vmatprep.subr.mxu0 0.0
    %1058 = vmatpush1.msra.mxu0 0.0
    %1059 = vmatprep.subr.mxu0 0.0
    %1060 = vmatpush1.msra.mxu0 0.0
    %1061 = vmatprep.subr.mxu0 0.0
    %1062 = vmatpush1.msra.mxu0 0.0
    %1063 = vmatprep.mubr.f32.mxu0 0.0
    %1064 = vmatmul.mubr.f32.gmra.mrb[0].mxu0 %v997
    %v1065 = vpop.f32.mrb[0].mxu0
    %v1066 = vadd.f32 0.0, %v1065
    %v1067 = vpop.f32.mrb[0].mxu0
    %1068 = vdwg.mxu0
    %1069 = vrot.lane.b32.xlu0 %v201, 64
    %v1070 = vpop.permute.xlu0 %1069
    %v1073 = vsel %vm214, %v911, 0
    %1075 = vmatprep.subr.mxu0 0.0
    %1076 = vmatpush1.msra.mxu0 %v1070
    %1077 = vmatprep.subr.mxu0 0.0
    %1078 = vmatpush1.msra.mxu0 0.0
    %1079 = vmatprep.subr.mxu0 0.0
    %1080 = vmatpush1.msra.mxu0 0.0
    %1081 = vmatprep.subr.mxu0 0.0
    %1082 = vmatpush1.msra.mxu0 0.0
    %1083 = vmatprep.subr.mxu0 0.0
    %1084 = vmatpush1.msra.mxu0 0.0
    %1085 = vmatprep.subr.mxu0 0.0
    %1086 = vmatpush1.msra.mxu0 0.0
    %1087 = vmatprep.subr.mxu0 0.0
    %1088 = vmatpush1.msra.mxu0 0.0
    %1089 = vmatprep.subr.mxu0 0.0
    %1090 = vmatpush1.msra.mxu0 0.0
    %1091 = vmatprep.subr.mxu0 0.0
    %1092 = vmatpush1.msra.mxu0 0.0
    %1093 = vmatprep.subr.mxu0 0.0
    %1094 = vmatpush1.msra.mxu0 0.0
    %1095 = vmatprep.subr.mxu0 0.0
    %1096 = vmatpush1.msra.mxu0 0.0
    %1097 = vmatprep.subr.mxu0 0.0
    %1098 = vmatpush1.msra.mxu0 0.0
    %1099 = vmatprep.subr.mxu0 0.0
    %1100 = vmatpush1.msra.mxu0 0.0
    %1101 = vmatprep.subr.mxu0 0.0
    %1102 = vmatpush1.msra.mxu0 0.0
    %1103 = vmatprep.subr.mxu0 0.0
    %1104 = vmatpush1.msra.mxu0 0.0
    %1105 = vmatprep.subr.mxu0 0.0
    %1106 = vmatpush1.msra.mxu0 0.0
    %1107 = vmatprep.subr.mxu0 0.0
    %1108 = vmatpush1.msra.mxu0 0.0
    %1109 = vmatprep.subr.mxu0 0.0
    %1110 = vmatpush1.msra.mxu0 0.0
    %1111 = vmatprep.subr.mxu0 0.0
    %1112 = vmatpush1.msra.mxu0 0.0
    %1113 = vmatprep.subr.mxu0 0.0
    %1114 = vmatpush1.msra.mxu0 0.0
    %1115 = vmatprep.subr.mxu0 0.0
    %1116 = vmatpush1.msra.mxu0 0.0
    %1117 = vmatprep.subr.mxu0 0.0
    %1118 = vmatpush1.msra.mxu0 0.0
    %1119 = vmatprep.subr.mxu0 0.0
    %1120 = vmatpush1.msra.mxu0 0.0
    %1121 = vmatprep.subr.mxu0 0.0
    %1122 = vmatpush1.msra.mxu0 0.0
    %1123 = vmatprep.subr.mxu0 0.0
    %1124 = vmatpush1.msra.mxu0 0.0
    %1125 = vmatprep.subr.mxu0 0.0
    %1126 = vmatpush1.msra.mxu0 0.0
    %1127 = vmatprep.subr.mxu0 0.0
    %1128 = vmatpush1.msra.mxu0 0.0
    %1129 = vmatprep.subr.mxu0 0.0
    %1130 = vmatpush1.msra.mxu0 0.0
    %1131 = vmatprep.subr.mxu0 0.0
    %1132 = vmatpush1.msra.mxu0 0.0
    %1133 = vmatprep.subr.mxu0 0.0
    %1134 = vmatpush1.msra.mxu0 0.0
    %1135 = vmatprep.subr.mxu0 0.0
    %1136 = vmatpush1.msra.mxu0 0.0
    %1137 = vmatprep.subr.mxu0 0.0
    %1138 = vmatpush1.msra.mxu0 0.0
    %1139 = vmatprep.mubr.f32.mxu0 0.0
    %1140 = vmatmul.mubr.f32.gmra.mrb[0].mxu0 %v1073
    %v1141 = vpop.f32.mrb[0].mxu0
    %v1142 = vadd.f32 0.0, %v1141
    %v1143 = vpop.f32.mrb[0].mxu0
    %1144 = vdwg.mxu0
    %1145 = vrot.lane.b32.xlu0 %v203, 64
    %v1146 = vpop.permute.xlu0 %1145
    %v1149 = vsel %vm214, %v912, 0
    %1151 = vmatprep.subr.mxu0 0.0
    %1152 = vmatpush1.msra.mxu0 %v1146
    %1153 = vmatprep.subr.mxu0 0.0
    %1154 = vmatpush1.msra.mxu0 0.0
    %1155 = vmatprep.subr.mxu0 0.0
    %1156 = vmatpush1.msra.mxu0 0.0
    %1157 = vmatprep.subr.mxu0 0.0
    %1158 = vmatpush1.msra.mxu0 0.0
    %1159 = vmatprep.subr.mxu0 0.0
    %1160 = vmatpush1.msra.mxu0 0.0
    %1161 = vmatprep.subr.mxu0 0.0
    %1162 = vmatpush1.msra.mxu0 0.0
    %1163 = vmatprep.subr.mxu0 0.0
    %1164 = vmatpush1.msra.mxu0 0.0
    %1165 = vmatprep.subr.mxu0 0.0
    %1166 = vmatpush1.msra.mxu0 0.0
    %1167 = vmatprep.subr.mxu0 0.0
    %1168 = vmatpush1.msra.mxu0 0.0
    %1169 = vmatprep.subr.mxu0 0.0
    %1170 = vmatpush1.msra.mxu0 0.0
    %1171 = vmatprep.subr.mxu0 0.0
    %1172 = vmatpush1.msra.mxu0 0.0
    %1173 = vmatprep.subr.mxu0 0.0
    %1174 = vmatpush1.msra.mxu0 0.0
    %1175 = vmatprep.subr.mxu0 0.0
    %1176 = vmatpush1.msra.mxu0 0.0
    %1177 = vmatprep.subr.mxu0 0.0
    %1178 = vmatpush1.msra.mxu0 0.0
    %1179 = vmatprep.subr.mxu0 0.0
    %1180 = vmatpush1.msra.mxu0 0.0
    %1181 = vmatprep.subr.mxu0 0.0
    %1182 = vmatpush1.msra.mxu0 0.0
    %1183 = vmatprep.subr.mxu0 0.0
    %1184 = vmatpush1.msra.mxu0 0.0
    %1185 = vmatprep.subr.mxu0 0.0
    %1186 = vmatpush1.msra.mxu0 0.0
    %1187 = vmatprep.subr.mxu0 0.0
    %1188 = vmatpush1.msra.mxu0 0.0
    %1189 = vmatprep.subr.mxu0 0.0
    %1190 = vmatpush1.msra.mxu0 0.0
    %1191 = vmatprep.subr.mxu0 0.0
    %1192 = vmatpush1.msra.mxu0 0.0
    %1193 = vmatprep.subr.mxu0 0.0
    %1194 = vmatpush1.msra.mxu0 0.0
    %1195 = vmatprep.subr.mxu0 0.0
    %1196 = vmatpush1.msra.mxu0 0.0
    %1197 = vmatprep.subr.mxu0 0.0
    %1198 = vmatpush1.msra.mxu0 0.0
    %1199 = vmatprep.subr.mxu0 0.0
    %1200 = vmatpush1.msra.mxu0 0.0
    %1201 = vmatprep.subr.mxu0 0.0
    %1202 = vmatpush1.msra.mxu0 0.0
    %1203 = vmatprep.subr.mxu0 0.0
    %1204 = vmatpush1.msra.mxu0 0.0
    %1205 = vmatprep.subr.mxu0 0.0
    %1206 = vmatpush1.msra.mxu0 0.0
    %1207 = vmatprep.subr.mxu0 0.0
    %1208 = vmatpush1.msra.mxu0 0.0
    %1209 = vmatprep.subr.mxu0 0.0
    %1210 = vmatpush1.msra.mxu0 0.0
    %1211 = vmatprep.subr.mxu0 0.0
    %1212 = vmatpush1.msra.mxu0 0.0
    %1213 = vmatprep.subr.mxu0 0.0
    %1214 = vmatpush1.msra.mxu0 0.0
    %1215 = vmatprep.mubr.f32.mxu0 0.0
    %1216 = vmatmul.mubr.f32.gmra.mrb[0].mxu0 %v1149
    %v1217 = vpop.f32.mrb[0].mxu0
    %v1218 = vadd.f32 0.0, %v1217
    %v1219 = vpop.f32.mrb[0].mxu0
    %1220 = vdwg.mxu0
    %1221 = vrot.lane.b32.xlu0 %v205, 64
    %v1222 = vpop.permute.xlu0 %1221
    %v1225 = vsel %vm214, %v913, 0
    %1227 = vmatprep.subr.mxu0 0.0
    %1228 = vmatpush1.msra.mxu0 %v1222
    %1229 = vmatprep.subr.mxu0 0.0
    %1230 = vmatpush1.msra.mxu0 0.0
    %1231 = vmatprep.subr.mxu0 0.0
    %1232 = vmatpush1.msra.mxu0 0.0
    %1233 = vmatprep.subr.mxu0 0.0
    %1234 = vmatpush1.msra.mxu0 0.0
    %1235 = vmatprep.subr.mxu0 0.0
    %1236 = vmatpush1.msra.mxu0 0.0
    %1237 = vmatprep.subr.mxu0 0.0
    %1238 = vmatpush1.msra.mxu0 0.0
    %1239 = vmatprep.subr.mxu0 0.0
    %1240 = vmatpush1.msra.mxu0 0.0
    %1241 = vmatprep.subr.mxu0 0.0
    %1242 = vmatpush1.msra.mxu0 0.0
    %1243 = vmatprep.subr.mxu0 0.0
    %1244 = vmatpush1.msra.mxu0 0.0
    %1245 = vmatprep.subr.mxu0 0.0
    %1246 = vmatpush1.msra.mxu0 0.0
    %1247 = vmatprep.subr.mxu0 0.0
    %1248 = vmatpush1.msra.mxu0 0.0
    %1249 = vmatprep.subr.mxu0 0.0
    %1250 = vmatpush1.msra.mxu0 0.0
    %1251 = vmatprep.subr.mxu0 0.0
    %1252 = vmatpush1.msra.mxu0 0.0
    %1253 = vmatprep.subr.mxu0 0.0
    %1254 = vmatpush1.msra.mxu0 0.0
    %1255 = vmatprep.subr.mxu0 0.0
    %1256 = vmatpush1.msra.mxu0 0.0
    %1257 = vmatprep.subr.mxu0 0.0
    %1258 = vmatpush1.msra.mxu0 0.0
    %1259 = vmatprep.subr.mxu0 0.0
    %1260 = vmatpush1.msra.mxu0 0.0
    %1261 = vmatprep.subr.mxu0 0.0
    %1262 = vmatpush1.msra.mxu0 0.0
    %1263 = vmatprep.subr.mxu0 0.0
    %1264 = vmatpush1.msra.mxu0 0.0
    %1265 = vmatprep.subr.mxu0 0.0
    %1266 = vmatpush1.msra.mxu0 0.0
    %1267 = vmatprep.subr.mxu0 0.0
    %1268 = vmatpush1.msra.mxu0 0.0
    %1269 = vmatprep.subr.mxu0 0.0
    %1270 = vmatpush1.msra.mxu0 0.0
    %1271 = vmatprep.subr.mxu0 0.0
    %1272 = vmatpush1.msra.mxu0 0.0
    %1273 = vmatprep.subr.mxu0 0.0
    %1274 = vmatpush1.msra.mxu0 0.0
    %1275 = vmatprep.subr.mxu0 0.0
    %1276 = vmatpush1.msra.mxu0 0.0
    %1277 = vmatprep.subr.mxu0 0.0
    %1278 = vmatpush1.msra.mxu0 0.0
    %1279 = vmatprep.subr.mxu0 0.0
    %1280 = vmatpush1.msra.mxu0 0.0
    %1281 = vmatprep.subr.mxu0 0.0
    %1282 = vmatpush1.msra.mxu0 0.0
    %1283 = vmatprep.subr.mxu0 0.0
    %1284 = vmatpush1.msra.mxu0 0.0
    %1285 = vmatprep.subr.mxu0 0.0
    %1286 = vmatpush1.msra.mxu0 0.0
    %1287 = vmatprep.subr.mxu0 0.0
    %1288 = vmatpush1.msra.mxu0 0.0
    %1289 = vmatprep.subr.mxu0 0.0
    %1290 = vmatpush1.msra.mxu0 0.0
    %1291 = vmatprep.mubr.f32.mxu0 0.0
    %1292 = vmatmul.mubr.f32.gmra.mrb[0].mxu0 %v1225
    %v1293 = vpop.f32.mrb[0].mxu0
    %v1294 = vadd.f32 0.0, %v1293
    %v1295 = vpop.f32.mrb[0].mxu0
    %1296 = vdwg.mxu0
    %1297 = vrot.lane.b32.xlu0 %v207, 64
    %v1298 = vpop.permute.xlu0 %1297
    %v1301 = vsel %vm214, %v914, 0
    %1303 = vmatprep.subr.mxu0 0.0
    %1304 = vmatpush1.msra.mxu0 %v1298
    %1305 = vmatprep.subr.mxu0 0.0
    %1306 = vmatpush1.msra.mxu0 0.0
    %1307 = vmatprep.subr.mxu0 0.0
    %1308 = vmatpush1.msra.mxu0 0.0
    %1309 = vmatprep.subr.mxu0 0.0
    %1310 = vmatpush1.msra.mxu0 0.0
    %1311 = vmatprep.subr.mxu0 0.0
    %1312 = vmatpush1.msra.mxu0 0.0
    %1313 = vmatprep.subr.mxu0 0.0
    %1314 = vmatpush1.msra.mxu0 0.0
    %1315 = vmatprep.subr.mxu0 0.0
    %1316 = vmatpush1.msra.mxu0 0.0
    %1317 = vmatprep.subr.mxu0 0.0
    %1318 = vmatpush1.msra.mxu0 0.0
    %1319 = vmatprep.subr.mxu0 0.0
    %1320 = vmatpush1.msra.mxu0 0.0
    %1321 = vmatprep.subr.mxu0 0.0
    %1322 = vmatpush1.msra.mxu0 0.0
    %1323 = vmatprep.subr.mxu0 0.0
    %1324 = vmatpush1.msra.mxu0 0.0
    %1325 = vmatprep.subr.mxu0 0.0
    %1326 = vmatpush1.msra.mxu0 0.0
    %1327 = vmatprep.subr.mxu0 0.0
    %1328 = vmatpush1.msra.mxu0 0.0
    %1329 = vmatprep.subr.mxu0 0.0
    %1330 = vmatpush1.msra.mxu0 0.0
    %1331 = vmatprep.subr.mxu0 0.0
    %1332 = vmatpush1.msra.mxu0 0.0
    %1333 = vmatprep.subr.mxu0 0.0
    %1334 = vmatpush1.msra.mxu0 0.0
    %1335 = vmatprep.subr.mxu0 0.0
    %1336 = vmatpush1.msra.mxu0 0.0
    %1337 = vmatprep.subr.mxu0 0.0
    %1338 = vmatpush1.msra.mxu0 0.0
    %1339 = vmatprep.subr.mxu0 0.0
    %1340 = vmatpush1.msra.mxu0 0.0
    %1341 = vmatprep.subr.mxu0 0.0
    %1342 = vmatpush1.msra.mxu0 0.0
    %1343 = vmatprep.subr.mxu0 0.0
    %1344 = vmatpush1.msra.mxu0 0.0
    %1345 = vmatprep.subr.mxu0 0.0
    %1346 = vmatpush1.msra.mxu0 0.0
    %1347 = vmatprep.subr.mxu0 0.0
    %1348 = vmatpush1.msra.mxu0 0.0
    %1349 = vmatprep.subr.mxu0 0.0
    %1350 = vmatpush1.msra.mxu0 0.0
    %1351 = vmatprep.subr.mxu0 0.0
    %1352 = vmatpush1.msra.mxu0 0.0
    %1353 = vmatprep.subr.mxu0 0.0
    %1354 = vmatpush1.msra.mxu0 0.0
    %1355 = vmatprep.subr.mxu0 0.0
    %1356 = vmatpush1.msra.mxu0 0.0
    %1357 = vmatprep.subr.mxu0 0.0
    %1358 = vmatpush1.msra.mxu0 0.0
    %1359 = vmatprep.subr.mxu0 0.0
    %1360 = vmatpush1.msra.mxu0 0.0
    %1361 = vmatprep.subr.mxu0 0.0
    %1362 = vmatpush1.msra.mxu0 0.0
    %1363 = vmatprep.subr.mxu0 0.0
    %1364 = vmatpush1.msra.mxu0 0.0
    %1365 = vmatprep.subr.mxu0 0.0
    %1366 = vmatpush1.msra.mxu0 0.0
    %1367 = vmatprep.mubr.f32.mxu0 0.0
    %1368 = vmatmul.mubr.f32.gmra.mrb[0].mxu0 %v1301
    %v1369 = vpop.f32.mrb[0].mxu0
    %v1370 = vadd.f32 0.0, %v1369
    %v1371 = vpop.f32.mrb[0].mxu0
    %1372 = vdwg.mxu0
    %1373 = vrot.lane.b32.xlu0 %v209, 64
    %v1374 = vpop.permute.xlu0 %1373
    %v1377 = vsel %vm214, %v915, 0
    %1379 = vmatprep.subr.mxu0 0.0
    %1380 = vmatpush1.msra.mxu0 %v1374
    %1381 = vmatprep.subr.mxu0 0.0
    %1382 = vmatpush1.msra.mxu0 0.0
    %1383 = vmatprep.subr.mxu0 0.0
    %1384 = vmatpush1.msra.mxu0 0.0
    %1385 = vmatprep.subr.mxu0 0.0
    %1386 = vmatpush1.msra.mxu0 0.0
    %1387 = vmatprep.subr.mxu0 0.0
    %1388 = vmatpush1.msra.mxu0 0.0
    %1389 = vmatprep.subr.mxu0 0.0
    %1390 = vmatpush1.msra.mxu0 0.0
    %1391 = vmatprep.subr.mxu0 0.0
    %1392 = vmatpush1.msra.mxu0 0.0
    %1393 = vmatprep.subr.mxu0 0.0
    %1394 = vmatpush1.msra.mxu0 0.0
    %1395 = vmatprep.subr.mxu0 0.0
    %1396 = vmatpush1.msra.mxu0 0.0
    %1397 = vmatprep.subr.mxu0 0.0
    %1398 = vmatpush1.msra.mxu0 0.0
    %1399 = vmatprep.subr.mxu0 0.0
    %1400 = vmatpush1.msra.mxu0 0.0
    %1401 = vmatprep.subr.mxu0 0.0
    %1402 = vmatpush1.msra.mxu0 0.0
    %1403 = vmatprep.subr.mxu0 0.0
    %1404 = vmatpush1.msra.mxu0 0.0
    %1405 = vmatprep.subr.mxu0 0.0
    %1406 = vmatpush1.msra.mxu0 0.0
    %1407 = vmatprep.subr.mxu0 0.0
    %1408 = vmatpush1.msra.mxu0 0.0
    %1409 = vmatprep.subr.mxu0 0.0
    %1410 = vmatpush1.msra.mxu0 0.0
    %1411 = vmatprep.subr.mxu0 0.0
    %1412 = vmatpush1.msra.mxu0 0.0
    %1413 = vmatprep.subr.mxu0 0.0
    %1414 = vmatpush1.msra.mxu0 0.0
    %1415 = vmatprep.subr.mxu0 0.0
    %1416 = vmatpush1.msra.mxu0 0.0
    %1417 = vmatprep.subr.mxu0 0.0
    %1418 = vmatpush1.msra.mxu0 0.0
    %1419 = vmatprep.subr.mxu0 0.0
    %1420 = vmatpush1.msra.mxu0 0.0
    %1421 = vmatprep.subr.mxu0 0.0
    %1422 = vmatpush1.msra.mxu0 0.0
    %1423 = vmatprep.subr.mxu0 0.0
    %1424 = vmatpush1.msra.mxu0 0.0
    %1425 = vmatprep.subr.mxu0 0.0
    %1426 = vmatpush1.msra.mxu0 0.0
    %1427 = vmatprep.subr.mxu0 0.0
    %1428 = vmatpush1.msra.mxu0 0.0
    %1429 = vmatprep.subr.mxu0 0.0
    %1430 = vmatpush1.msra.mxu0 0.0
    %1431 = vmatprep.subr.mxu0 0.0
    %1432 = vmatpush1.msra.mxu0 0.0
    %1433 = vmatprep.subr.mxu0 0.0
    %1434 = vmatpush1.msra.mxu0 0.0
    %1435 = vmatprep.subr.mxu0 0.0
    %1436 = vmatpush1.msra.mxu0 0.0
    %1437 = vmatprep.subr.mxu0 0.0
    %1438 = vmatpush1.msra.mxu0 0.0
    %1439 = vmatprep.subr.mxu0 0.0
    %1440 = vmatpush1.msra.mxu0 0.0
    %1441 = vmatprep.subr.mxu0 0.0
    %1442 = vmatpush1.msra.mxu0 0.0
    %1443 = vmatprep.mubr.f32.mxu0 0.0
    %1444 = vmatmul.mubr.f32.gmra.mrb[0].mxu0 %v1377
    %v1445 = vpop.f32.mrb[0].mxu0
    %v1446 = vadd.f32 0.0, %v1445
    %v1447 = vpop.f32.mrb[0].mxu0
    %1448 = vdwg.mxu0
    %1449 = vrot.lane.b32.xlu0 %v211, 64
    %v1450 = vpop.permute.xlu0 %1449
    %v1453 = vsel %vm214, %v916, 0
    %1455 = vmatprep.subr.mxu0 0.0
    %1456 = vmatpush1.msra.mxu0 %v1450
    %1457 = vmatprep.subr.mxu0 0.0
    %1458 = vmatpush1.msra.mxu0 0.0
    %1459 = vmatprep.subr.mxu0 0.0
    %1460 = vmatpush1.msra.mxu0 0.0
    %1461 = vmatprep.subr.mxu0 0.0
    %1462 = vmatpush1.msra.mxu0 0.0
    %1463 = vmatprep.subr.mxu0 0.0
    %1464 = vmatpush1.msra.mxu0 0.0
    %1465 = vmatprep.subr.mxu0 0.0
    %1466 = vmatpush1.msra.mxu0 0.0
    %1467 = vmatprep.subr.mxu0 0.0
    %1468 = vmatpush1.msra.mxu0 0.0
    %1469 = vmatprep.subr.mxu0 0.0
    %1470 = vmatpush1.msra.mxu0 0.0
    %1471 = vmatprep.subr.mxu0 0.0
    %1472 = vmatpush1.msra.mxu0 0.0
    %1473 = vmatprep.subr.mxu0 0.0
    %1474 = vmatpush1.msra.mxu0 0.0
    %1475 = vmatprep.subr.mxu0 0.0
    %1476 = vmatpush1.msra.mxu0 0.0
    %1477 = vmatprep.subr.mxu0 0.0
    %1478 = vmatpush1.msra.mxu0 0.0
    %1479 = vmatprep.subr.mxu0 0.0
    %1480 = vmatpush1.msra.mxu0 0.0
    %1481 = vmatprep.subr.mxu0 0.0
    %1482 = vmatpush1.msra.mxu0 0.0
    %1483 = vmatprep.subr.mxu0 0.0
    %1484 = vmatpush1.msra.mxu0 0.0
    %1485 = vmatprep.subr.mxu0 0.0
    %1486 = vmatpush1.msra.mxu0 0.0
    %1487 = vmatprep.subr.mxu0 0.0
    %1488 = vmatpush1.msra.mxu0 0.0
    %1489 = vmatprep.subr.mxu0 0.0
    %1490 = vmatpush1.msra.mxu0 0.0
    %1491 = vmatprep.subr.mxu0 0.0
    %1492 = vmatpush1.msra.mxu0 0.0
    %1493 = vmatprep.subr.mxu0 0.0
    %1494 = vmatpush1.msra.mxu0 0.0
    %1495 = vmatprep.subr.mxu0 0.0
    %1496 = vmatpush1.msra.mxu0 0.0
    %1497 = vmatprep.subr.mxu0 0.0
    %1498 = vmatpush1.msra.mxu0 0.0
    %1499 = vmatprep.subr.mxu0 0.0
    %1500 = vmatpush1.msra.mxu0 0.0
    %1501 = vmatprep.subr.mxu0 0.0
    %1502 = vmatpush1.msra.mxu0 0.0
    %1503 = vmatprep.subr.mxu0 0.0
    %1504 = vmatpush1.msra.mxu0 0.0
    %1505 = vmatprep.subr.mxu0 0.0
    %1506 = vmatpush1.msra.mxu0 0.0
    %1507 = vmatprep.subr.mxu0 0.0
    %1508 = vmatpush1.msra.mxu0 0.0
    %1509 = vmatprep.subr.mxu0 0.0
    %1510 = vmatpush1.msra.mxu0 0.0
    %1511 = vmatprep.subr.mxu0 0.0
    %1512 = vmatpush1.msra.mxu0 0.0
    %1513 = vmatprep.subr.mxu0 0.0
    %1514 = vmatpush1.msra.mxu0 0.0
    %1515 = vmatprep.subr.mxu0 0.0
    %1516 = vmatpush1.msra.mxu0 0.0
    %1517 = vmatprep.subr.mxu0 0.0
    %1518 = vmatpush1.msra.mxu0 0.0
    %1519 = vmatprep.mubr.f32.mxu0 0.0
    %1520 = vmatmul.mubr.f32.gmra.mrb[0].mxu0 %v1453
    %v1521 = vpop.f32.mrb[0].mxu0
    %v1522 = vadd.f32 0.0, %v1521
    %v1523 = vpop.f32.mrb[0].mxu0
    %1524 = vdwg.mxu0
    %1527 = vrot.lane.b32.xlu0 %v1142, 8
    %v1528 = vpop.permute.xlu0 %1527
    %1529 = vrot.lane.b32.xlu0 %v1218, 8
    %v1530 = vpop.permute.xlu0 %1529
    %1535 = vrot.lane.b32.xlu0 %v1294, 16
    %v1536 = vpop.permute.xlu0 %1535
    %1537 = vrot.lane.b32.xlu0 %v1370, 16
    %v1538 = vpop.permute.xlu0 %1537
    %1543 = vrot.lane.b32.xlu0 %v1446, 24
    %v1544 = vpop.permute.xlu0 %1543
    %1545 = vrot.lane.b32.xlu0 %v1522, 24
    %v1546 = vpop.permute.xlu0 %1545
    %v1549 = vsel %vm214, %v990, %v1528
    %v1550 = vsel %vm214, %v1066, %v1530
    %vm1551 = vcmask 130048
    %v1552 = vsel %vm1551, %v1549, %v1536
    %v1553 = vsel %vm1551, %v1550, %v1538
    %vm1554 = vcmask 195584
    %v1555 = vsel %vm1554, %v1552, %v1544
    %v1556 = vsel %vm1554, %v1553, %v1546
    %v1557 = vld [vmem:[%s2] sm:$0xff]
    %v1558 = vld [vmem:[%s2 + $0x8] sm:$0xff]
    %v1559 = vld [vmem:[%s2 + $0x10] sm:$0xff]
    %v1560 = vld [vmem:[%s2 + $0x18] sm:$0xff]
    %v1561 = vlaneseq
    %v1562 = vshrl.u32 %v1561, 7
    %v1563 = vsub.s32 1, %v1562
    %v1564 = vrot.slane %v54, %v1563
    %v1566 = vsel %vm55, %v1555, 0
    %v1569 = vsel %vm55, %v1556, 0
    %1571 = vmatprep.subr.mxu0 0.0
    %1572 = vmatpush1.msra.mxu0 %v1557
    %1573 = vmatprep.subr.mxu0 0.0
    %1574 = vmatpush1.msra.mxu0 %v1558
    %1575 = vmatprep.subr.mxu0 0.0
    %1576 = vmatpush1.msra.mxu0 %v1559
    %1577 = vmatprep.subr.mxu0 0.0
    %1578 = vmatpush1.msra.mxu0 %v1560
    %1579 = vmatprep.subr.mxu0 0.0
    %1580 = vmatpush1.msra.mxu0 0.0
    %1581 = vmatprep.subr.mxu0 0.0
    %1582 = vmatpush1.msra.mxu0 0.0
    %1583 = vmatprep.subr.mxu0 0.0
    %1584 = vmatpush1.msra.mxu0 0.0
    %1585 = vmatprep.subr.mxu0 0.0
    %1586 = vmatpush1.msra.mxu0 0.0
    %1587 = vmatprep.subr.mxu0 0.0
    %1588 = vmatpush1.msra.mxu0 0.0
    %1589 = vmatprep.subr.mxu0 0.0
    %1590 = vmatpush1.msra.mxu0 0.0
    %1591 = vmatprep.subr.mxu0 0.0
    %1592 = vmatpush1.msra.mxu0 0.0
    %1593 = vmatprep.subr.mxu0 0.0
    %1594 = vmatpush1.msra.mxu0 0.0
    %1595 = vmatprep.subr.mxu0 0.0
    %1596 = vmatpush1.msra.mxu0 0.0
    %1597 = vmatprep.subr.mxu0 0.0
    %1598 = vmatpush1.msra.mxu0 0.0
    %1599 = vmatprep.subr.mxu0 0.0
    %1600 = vmatpush1.msra.mxu0 0.0
    %1601 = vmatprep.subr.mxu0 0.0
    %1602 = vmatpush1.msra.mxu0 0.0
    %1603 = vmatprep.subr.mxu0 0.0
    %1604 = vmatpush1.msra.mxu0 0.0
    %1605 = vmatprep.subr.mxu0 0.0
    %1606 = vmatpush1.msra.mxu0 0.0
    %1607 = vmatprep.subr.mxu0 0.0
    %1608 = vmatpush1.msra.mxu0 0.0
    %1609 = vmatprep.subr.mxu0 0.0
    %1610 = vmatpush1.msra.mxu0 0.0
    %1611 = vmatprep.subr.mxu0 0.0
    %1612 = vmatpush1.msra.mxu0 0.0
    %1613 = vmatprep.subr.mxu0 0.0
    %1614 = vmatpush1.msra.mxu0 0.0
    %1615 = vmatprep.subr.mxu0 0.0
    %1616 = vmatpush1.msra.mxu0 0.0
    %1617 = vmatprep.subr.mxu0 0.0
    %1618 = vmatpush1.msra.mxu0 0.0
    %1619 = vmatprep.subr.mxu0 0.0
    %1620 = vmatpush1.msra.mxu0 0.0
    %1621 = vmatprep.subr.mxu0 0.0
    %1622 = vmatpush1.msra.mxu0 0.0
    %1623 = vmatprep.subr.mxu0 0.0
    %1624 = vmatpush1.msra.mxu0 0.0
    %1625 = vmatprep.subr.mxu0 0.0
    %1626 = vmatpush1.msra.mxu0 0.0
    %1627 = vmatprep.subr.mxu0 0.0
    %1628 = vmatpush1.msra.mxu0 0.0
    %1629 = vmatprep.subr.mxu0 0.0
    %1630 = vmatpush1.msra.mxu0 0.0
    %1631 = vmatprep.subr.mxu0 0.0
    %1632 = vmatpush1.msra.mxu0 0.0
    %1633 = vmatprep.subr.mxu0 0.0
    %1634 = vmatpush1.msra.mxu0 0.0
    %1635 = vmatprep.mubr.f32.mxu0 0.0
    %1636 = vmatmul.mubr.f32.gmra.mrb[0].mxu0 %v1566
    %v1637 = vpop.f32.mrb[0].mxu0
    %v1638 = vadd.f32 %v1564, %v1637
    %v1639 = vpop.f32.mrb[0].mxu0
    %1640 = vmatprep.mubr.f32.mxu0 0.0
    %1641 = vmatmul.mubr.f32.gmra.mrb[0].mxu0 %v1569
    %v1642 = vpop.f32.mrb[0].mxu0
    %v1643 = vadd.f32 %v1564, %v1642
    %v1644 = vpop.f32.mrb[0].mxu0
    %1645 = vdwg.mxu0
    %v1646 = vadd.f32 %v52, %v1638
    %v1647 = vadd.f32 %v53, %v1643
    %v1648 = vsel %vm55, %v1646, 0.0
    %1649 = vadd.xlane.f32.xlu0 %v1648
    %v1650 = vpop.xlane.xlu0 %1649
    %v1651 = vsel %vm55, %v1647, 0.0
    %1652 = vadd.xlane.f32.xlu0 %v1651
    %v1653 = vpop.xlane.xlu0 %1652
    %v1654 = vmul.f32 %v1650, %v62
    %v1655 = vmul.f32 %v1653, %v62
    %v1656 = vsub.f32 %v1646, %v1654
    %v1657 = vsub.f32 %v1647, %v1655
    %v1658 = vmul.f32 %v1656, %v1656
    %v1659 = vmul.f32 %v1657, %v1657
    %v1660 = vsel %vm55, %v1658, 0.0
    %1661 = vadd.xlane.f32.xlu0 %v1660
    %v1662 = vpop.xlane.xlu0 %1661
    %v1663 = vsel %vm55, %v1659, 0.0
    %1664 = vadd.xlane.f32.xlu0 %v1663
    %v1665 = vpop.xlane.xlu0 %1664
    %v1666 = vmul.f32 %v1662, 0.032258064
    %v1667 = vmul.f32 %v1665, 0.032258064
    %v1668 = vrsqrt.pop %v1666
    %v1669 = vmul.f32 %v1666, %v1668
    %vm1670 = vcmp.eq.f32.partialorder %v1666, inf
    %v1671 = vsel %vm1670, %v1666, %v1669
    %vm1672 = vcmp.eq.f32.partialorder %v1666, 0.0
    %v1673 = vand.u32 %v1666, 2147483648
    %v1674 = vsel %vm1672, %v1673, %v1671
    %v1675 = vrsqrt.pop %v1667
    %v1676 = vmul.f32 %v1667, %v1675
    %vm1677 = vcmp.eq.f32.partialorder %v1667, inf
    %v1678 = vsel %vm1677, %v1667, %v1676
    %vm1679 = vcmp.eq.f32.partialorder %v1667, 0.0
    %v1680 = vand.u32 %v1667, 2147483648
    %v1681 = vsel %vm1679, %v1680, %v1678
    %v1682 = vadd.f32 %v1674, 1e-06
    %v1683 = vadd.f32 %v1681, 1e-06
    %v1684 = vrcp.pop %v1682
    %v1685 = vrcp.pop %v1683
    %v1686 = vlaneseq
    %v1687 = vshrl.u32 %v1686, 7
    %v1688 = vsub.s32 6, %v1687
    %v1689 = vrot.slane %v54, %v1688
    %v1690 = vmul.f32 %v1689, %v1656
    %v1691 = vmul.f32 %v1689, %v1657
    %v1692 = vmul.f32 %v1690, %v1684
    %v1693 = vmul.f32 %v1691, %v1685
    %v1694 = vlaneseq
    %v1695 = vshrl.u32 %v1694, 7
    %v1696 = vsub.s32 7, %v1695
    %v1697 = vrot.slane %v54, %v1696
    %v1698 = vadd.f32 %v1692, %v1697
    %v1699 = vadd.f32 %v1693, %v1697
    %v1700 = vld [vmem:[%s3] sm:$0xff]
    %v1701 = vld [vmem:[%s3 + $0x8] sm:$0xff]
    %v1702 = vld [vmem:[%s3 + $0x10] sm:$0xff]
    %v1703 = vld [vmem:[%s3 + $0x18] sm:$0xff]
    %v1704 = vlaneseq
    %v1705 = vshrl.u32 %v1704, 7
    %v1706 = vsub.s32 2, %v1705
    %v1707 = vrot.slane %v54, %v1706
    %v1709 = vsel %vm55, %v1698, 0
    %v1712 = vsel %vm55, %v1699, 0
    %1714 = vmatprep.subr.mxu0 0.0
    %1715 = vmatpush1.msra.mxu0 %v1700
    %1716 = vmatprep.subr.mxu0 0.0
    %1717 = vmatpush1.msra.mxu0 %v1701
    %1718 = vmatprep.subr.mxu0 0.0
    %1719 = vmatpush1.msra.mxu0 %v1702
    %1720 = vmatprep.subr.mxu0 0.0
    %1721 = vmatpush1.msra.mxu0 %v1703
    %1722 = vmatprep.subr.mxu0 0.0
    %1723 = vmatpush1.msra.mxu0 0.0
    %1724 = vmatprep.subr.mxu0 0.0
    %1725 = vmatpush1.msra.mxu0 0.0
    %1726 = vmatprep.subr.mxu0 0.0
    %1727 = vmatpush1.msra.mxu0 0.0
    %1728 = vmatprep.subr.mxu0 0.0
    %1729 = vmatpush1.msra.mxu0 0.0
    %1730 = vmatprep.subr.mxu0 0.0
    %1731 = vmatpush1.msra.mxu0 0.0
    %1732 = vmatprep.subr.mxu0 0.0
    %1733 = vmatpush1.msra.mxu0 0.0
    %1734 = vmatprep.subr.mxu0 0.0
    %1735 = vmatpush1.msra.mxu0 0.0
    %1736 = vmatprep.subr.mxu0 0.0
    %1737 = vmatpush1.msra.mxu0 0.0
    %1738 = vmatprep.subr.mxu0 0.0
    %1739 = vmatpush1.msra.mxu0 0.0
    %1740 = vmatprep.subr.mxu0 0.0
    %1741 = vmatpush1.msra.mxu0 0.0
    %1742 = vmatprep.subr.mxu0 0.0
    %1743 = vmatpush1.msra.mxu0 0.0
    %1744 = vmatprep.subr.mxu0 0.0
    %1745 = vmatpush1.msra.mxu0 0.0
    %1746 = vmatprep.subr.mxu0 0.0
    %1747 = vmatpush1.msra.mxu0 0.0
    %1748 = vmatprep.subr.mxu0 0.0
    %1749 = vmatpush1.msra.mxu0 0.0
    %1750 = vmatprep.subr.mxu0 0.0
    %1751 = vmatpush1.msra.mxu0 0.0
    %1752 = vmatprep.subr.mxu0 0.0
    %1753 = vmatpush1.msra.mxu0 0.0
    %1754 = vmatprep.subr.mxu0 0.0
    %1755 = vmatpush1.msra.mxu0 0.0
    %1756 = vmatprep.subr.mxu0 0.0
    %1757 = vmatpush1.msra.mxu0 0.0
    %1758 = vmatprep.subr.mxu0 0.0
    %1759 = vmatpush1.msra.mxu0 0.0
    %1760 = vmatprep.subr.mxu0 0.0
    %1761 = vmatpush1.msra.mxu0 0.0
    %1762 = vmatprep.subr.mxu0 0.0
    %1763 = vmatpush1.msra.mxu0 0.0
    %1764 = vmatprep.subr.mxu0 0.0
    %1765 = vmatpush1.msra.mxu0 0.0
    %1766 = vmatprep.subr.mxu0 0.0
    %1767 = vmatpush1.msra.mxu0 0.0
    %1768 = vmatprep.subr.mxu0 0.0
    %1769 = vmatpush1.msra.mxu0 0.0
    %1770 = vmatprep.subr.mxu0 0.0
    %1771 = vmatpush1.msra.mxu0 0.0
    %1772 = vmatprep.subr.mxu0 0.0
    %1773 = vmatpush1.msra.mxu0 0.0
    %1774 = vmatprep.subr.mxu0 0.0
    %1775 = vmatpush1.msra.mxu0 0.0
    %1776 = vmatprep.subr.mxu0 0.0
    %1777 = vmatpush1.msra.mxu0 0.0
    %1778 = vmatprep.mubr.f32.mxu0 0.0
    %1779 = vmatmul.mubr.f32.gmra.mrb[0].mxu0 %v1709
    %v1780 = vpop.f32.mrb[0].mxu0
    %v1781 = vadd.f32 %v1707, %v1780
    %v1782 = vpop.f32.mrb[0].mxu0
    %1783 = vmatprep.mubr.f32.mxu0 0.0
    %1784 = vmatmul.mubr.f32.gmra.mrb[0].mxu0 %v1712
    %v1785 = vpop.f32.mrb[0].mxu0
    %v1786 = vadd.f32 %v1707, %v1785
    %v1787 = vpop.f32.mrb[0].mxu0
    %1788 = vdwg.mxu0
    %v1789 = vmax.f32 %v1781, 0.0
    %v1790 = vmax.f32 %v1786, 0.0
    %v1791 = vld [vmem:[%s4] sm:$0xff]
    %v1792 = vld [vmem:[%s4 + $0x8] sm:$0xff]
    %v1793 = vld [vmem:[%s4 + $0x10] sm:$0xff]
    %v1794 = vld [vmem:[%s4 + $0x18] sm:$0xff]
    %v1795 = vld [vmem:[%s4 + $0x20] sm:$0xff]
    %v1796 = vld [vmem:[%s4 + $0x28] sm:$0xff]
    %v1797 = vld [vmem:[%s4 + $0x30] sm:$0xff]
    %v1798 = vld [vmem:[%s4 + $0x38] sm:$0xff]
    %v1799 = vlaneseq
    %v1800 = vshrl.u32 %v1799, 7
    %v1801 = vsub.s32 3, %v1800
    %v1802 = vrot.slane %v54, %v1801
    %vm1803 = vcmask 523264
    %v1805 = vsel %vm1803, %v1789, 0
    %v1808 = vsel %vm1803, %v1790, 0
    %1810 = vmatprep.subr.mxu0 0.0
    %1811 = vmatpush1.msra.mxu0 %v1791
    %1812 = vmatprep.subr.mxu0 0.0
    %1813 = vmatpush1.msra.mxu0 %v1792
    %1814 = vmatprep.subr.mxu0 0.0
    %1815 = vmatpush1.msra.mxu0 %v1793
    %1816 = vmatprep.subr.mxu0 0.0
    %1817 = vmatpush1.msra.mxu0 %v1794
    %1818 = vmatprep.subr.mxu0 0.0
    %1819 = vmatpush1.msra.mxu0 %v1795
    %1820 = vmatprep.subr.mxu0 0.0
    %1821 = vmatpush1.msra.mxu0 %v1796
    %1822 = vmatprep.subr.mxu0 0.0
    %1823 = vmatpush1.msra.mxu0 %v1797
    %1824 = vmatprep.subr.mxu0 0.0
    %1825 = vmatpush1.msra.mxu0 %v1798
    %1826 = vmatprep.subr.mxu0 0.0
    %1827 = vmatpush1.msra.mxu0 0.0
    %1828 = vmatprep.subr.mxu0 0.0
    %1829 = vmatpush1.msra.mxu0 0.0
    %1830 = vmatprep.subr.mxu0 0.0
    %1831 = vmatpush1.msra.mxu0 0.0
    %1832 = vmatprep.subr.mxu0 0.0
    %1833 = vmatpush1.msra.mxu0 0.0
    %1834 = vmatprep.subr.mxu0 0.0
    %1835 = vmatpush1.msra.mxu0 0.0
    %1836 = vmatprep.subr.mxu0 0.0
    %1837 = vmatpush1.msra.mxu0 0.0
    %1838 = vmatprep.subr.mxu0 0.0
    %1839 = vmatpush1.msra.mxu0 0.0
    %1840 = vmatprep.subr.mxu0 0.0
    %1841 = vmatpush1.msra.mxu0 0.0
    %1842 = vmatprep.subr.mxu0 0.0
    %1843 = vmatpush1.msra.mxu0 0.0
    %1844 = vmatprep.subr.mxu0 0.0
    %1845 = vmatpush1.msra.mxu0 0.0
    %1846 = vmatprep.subr.mxu0 0.0
    %1847 = vmatpush1.msra.mxu0 0.0
    %1848 = vmatprep.subr.mxu0 0.0
    %1849 = vmatpush1.msra.mxu0 0.0
    %1850 = vmatprep.subr.mxu0 0.0
    %1851 = vmatpush1.msra.mxu0 0.0
    %1852 = vmatprep.subr.mxu0 0.0
    %1853 = vmatpush1.msra.mxu0 0.0
    %1854 = vmatprep.subr.mxu0 0.0
    %1855 = vmatpush1.msra.mxu0 0.0
    %1856 = vmatprep.subr.mxu0 0.0
    %1857 = vmatpush1.msra.mxu0 0.0
    %1858 = vmatprep.subr.mxu0 0.0
    %1859 = vmatpush1.msra.mxu0 0.0
    %1860 = vmatprep.subr.mxu0 0.0
    %1861 = vmatpush1.msra.mxu0 0.0
    %1862 = vmatprep.subr.mxu0 0.0
    %1863 = vmatpush1.msra.mxu0 0.0
    %1864 = vmatprep.subr.mxu0 0.0
    %1865 = vmatpush1.msra.mxu0 0.0
    %1866 = vmatprep.subr.mxu0 0.0
    %1867 = vmatpush1.msra.mxu0 0.0
    %1868 = vmatprep.subr.mxu0 0.0
    %1869 = vmatpush1.msra.mxu0 0.0
    %1870 = vmatprep.subr.mxu0 0.0
    %1871 = vmatpush1.msra.mxu0 0.0
    %1872 = vmatprep.subr.mxu0 0.0
    %1873 = vmatpush1.msra.mxu0 0.0
    %1874 = vmatprep.mubr.f32.mxu0 0.0
    %1875 = vmatmul.mubr.f32.gmra.mrb[0].mxu0 %v1805
    %v1876 = vpop.f32.mrb[0].mxu0
    %v1877 = vadd.f32 %v1802, %v1876
    %v1878 = vpop.f32.mrb[0].mxu0
    %1879 = vmatprep.mubr.f32.mxu0 0.0
    %1880 = vmatmul.mubr.f32.gmra.mrb[0].mxu0 %v1808
    %v1881 = vpop.f32.mrb[0].mxu0
    %v1882 = vadd.f32 %v1802, %v1881
    %v1883 = vpop.f32.mrb[0].mxu0
    %1884 = vdwg.mxu0
    %v1885 = vadd.f32 %v1646, %v1877
    %v1886 = vadd.f32 %v1647, %v1882
    %v1887 = vld [vmem:[#allocation5 + $0x8] sm:$0xff]
    %v1888 = vsel %vm55, %v1885, 0.0
    %1889 = vadd.xlane.f32.xlu0 %v1888
    %v1890 = vpop.xlane.xlu0 %1889
    %v1891 = vsel %vm55, %v1886, 0.0
    %1892 = vadd.xlane.f32.xlu0 %v1891
    %v1893 = vpop.xlane.xlu0 %1892
    %v1894 = vmul.f32 %v1890, %v62
    %v1895 = vmul.f32 %v1893, %v62
    %v1896 = vsub.f32 %v1885, %v1894
    %v1897 = vsub.f32 %v1886, %v1895
    %v1898 = vmul.f32 %v1896, %v1896
    %v1899 = vmul.f32 %v1897, %v1897
    %v1900 = vsel %vm55, %v1898, 0.0
    %1901 = vadd.xlane.f32.xlu0 %v1900
    %v1902 = vpop.xlane.xlu0 %1901
    %v1903 = vsel %vm55, %v1899, 0.0
    %1904 = vadd.xlane.f32.xlu0 %v1903
    %v1905 = vpop.xlane.xlu0 %1904
    %v1906 = vmul.f32 %v1902, 0.032258064
    %v1907 = vmul.f32 %v1905, 0.032258064
    %v1908 = vrsqrt.pop %v1906
    %v1909 = vmul.f32 %v1906, %v1908
    %vm1910 = vcmp.eq.f32.partialorder %v1906, inf
    %v1911 = vsel %vm1910, %v1906, %v1909
    %vm1912 = vcmp.eq.f32.partialorder %v1906, 0.0
    %v1913 = vand.u32 %v1906, 2147483648
    %v1914 = vsel %vm1912, %v1913, %v1911
    %v1915 = vrsqrt.pop %v1907
    %v1916 = vmul.f32 %v1907, %v1915
    %vm1917 = vcmp.eq.f32.partialorder %v1907, inf
    %v1918 = vsel %vm1917, %v1907, %v1916
    %vm1919 = vcmp.eq.f32.partialorder %v1907, 0.0
    %v1920 = vand.u32 %v1907, 2147483648
    %v1921 = vsel %vm1919, %v1920, %v1918
    %v1922 = vadd.f32 %v1914, 1e-06
    %v1923 = vadd.f32 %v1921, 1e-06
    %v1924 = vrcp.pop %v1922
    %v1925 = vrcp.pop %v1923
    %v1926 = vlaneseq
    %v1927 = vshrl.u32 %v1926, 7
    %v1928 = vsub.s32 4, %v1927
    %v1929 = vrot.slane %v1887, %v1928
    %v1930 = vmul.f32 %v1929, %v1896
    %v1931 = vmul.f32 %v1929, %v1897
    %v1932 = vmul.f32 %v1930, %v1924
    %v1933 = vmul.f32 %v1931, %v1925
    %v1934 = vlaneseq
    %v1935 = vshrl.u32 %v1934, 7
    %v1936 = vsub.s32 5, %v1935
    %v1937 = vrot.slane %v1887, %v1936
    %v1938 = vadd.f32 %v1932, %v1937
    %v1939 = vadd.f32 %v1933, %v1937
    %s1940 = scalar_lea.vmem %s1, 32
    %v1941 = vld [vmem:[%s1940] sm:$0xff]
    %v1942 = vld [vmem:[%s1940 + $0x8] sm:$0xff]
    %v1943 = vld [vmem:[%s1940 + $0x10] sm:$0xff]
    %v1944 = vld [vmem:[%s1940 + $0x18] sm:$0xff]
    %v1945 = vlaneseq
    %v1946 = vshrl.u32 %v1945, 7
    %v1947 = vsub.s32 0, %v1946
    %v1948 = vrot.slane %v1887, %v1947
    %v1950 = vsel %vm55, %v1938, 0
    %v1953 = vsel %vm55, %v1939, 0
    %1955 = vmatprep.subr.mxu0 0.0
    %1956 = vmatpush1.msra.mxu0 %v1941
    %1957 = vmatprep.subr.mxu0 0.0
    %1958 = vmatpush1.msra.mxu0 %v1942
    %1959 = vmatprep.subr.mxu0 0.0
    %1960 = vmatpush1.msra.mxu0 %v1943
    %1961 = vmatprep.subr.mxu0 0.0
    %1962 = vmatpush1.msra.mxu0 %v1944
    %1963 = vmatprep.subr.mxu0 0.0
    %1964 = vmatpush1.msra.mxu0 0.0
    %1965 = vmatprep.subr.mxu0 0.0
    %1966 = vmatpush1.msra.mxu0 0.0
    %1967 = vmatprep.subr.mxu0 0.0
    %1968 = vmatpush1.msra.mxu0 0.0
    %1969 = vmatprep.subr.mxu0 0.0
    %1970 = vmatpush1.msra.mxu0 0.0
    %1971 = vmatprep.subr.mxu0 0.0
    %1972 = vmatpush1.msra.mxu0 0.0
    %1973 = vmatprep.subr.mxu0 0.0
    %1974 = vmatpush1.msra.mxu0 0.0
    %1975 = vmatprep.subr.mxu0 0.0
    %1976 = vmatpush1.msra.mxu0 0.0
    %1977 = vmatprep.subr.mxu0 0.0
    %1978 = vmatpush1.msra.mxu0 0.0
    %1979 = vmatprep.subr.mxu0 0.0
    %1980 = vmatpush1.msra.mxu0 0.0
    %1981 = vmatprep.subr.mxu0 0.0
    %1982 = vmatpush1.msra.mxu0 0.0
    %1983 = vmatprep.subr.mxu0 0.0
    %1984 = vmatpush1.msra.mxu0 0.0
    %1985 = vmatprep.subr.mxu0 0.0
    %1986 = vmatpush1.msra.mxu0 0.0
    %1987 = vmatprep.subr.mxu0 0.0
    %1988 = vmatpush1.msra.mxu0 0.0
    %1989 = vmatprep.subr.mxu0 0.0
    %1990 = vmatpush1.msra.mxu0 0.0
    %1991 = vmatprep.subr.mxu0 0.0
    %1992 = vmatpush1.msra.mxu0 0.0
    %1993 = vmatprep.subr.mxu0 0.0
    %1994 = vmatpush1.msra.mxu0 0.0
    %1995 = vmatprep.subr.mxu0 0.0
    %1996 = vmatpush1.msra.mxu0 0.0
    %1997 = vmatprep.subr.mxu0 0.0
    %1998 = vmatpush1.msra.mxu0 0.0
    %1999 = vmatprep.subr.mxu0 0.0
    %2000 = vmatpush1.msra.mxu0 0.0
    %2001 = vmatprep.subr.mxu0 0.0
    %2002 = vmatpush1.msra.mxu0 0.0
    %2003 = vmatprep.subr.mxu0 0.0
    %2004 = vmatpush1.msra.mxu0 0.0
    %2005 = vmatprep.subr.mxu0 0.0
    %2006 = vmatpush1.msra.mxu0 0.0
    %2007 = vmatprep.subr.mxu0 0.0
    %2008 = vmatpush1.msra.mxu0 0.0
    %2009 = vmatprep.subr.mxu0 0.0
    %2010 = vmatpush1.msra.mxu0 0.0
    %2011 = vmatprep.subr.mxu0 0.0
    %2012 = vmatpush1.msra.mxu0 0.0
    %2013 = vmatprep.subr.mxu0 0.0
    %2014 = vmatpush1.msra.mxu0 0.0
    %2015 = vmatprep.subr.mxu0 0.0
    %2016 = vmatpush1.msra.mxu0 0.0
    %2017 = vmatprep.subr.mxu0 0.0
    %2018 = vmatpush1.msra.mxu0 0.0
    %2019 = vmatprep.mubr.f32.mxu0 0.0
    %2020 = vmatmul.mubr.f32.gmra.mrb[0].mxu0 %v1950
    %v2021 = vpop.f32.mrb[0].mxu0
    %v2022 = vadd.f32 %v1948, %v2021
    %v2023 = vpop.f32.mrb[0].mxu0
    %2024 = vmatprep.mubr.f32.mxu0 0.0
    %2025 = vmatmul.mubr.f32.gmra.mrb[0].mxu0 %v1953
    %v2026 = vpop.f32.mrb[0].mxu0
    %v2027 = vadd.f32 %v1948, %v2026
    %v2028 = vpop.f32.mrb[0].mxu0
    %2029 = vdwg.mxu0
    %2032 = vrot.lane.b32.xlu0 %v2022, 120
    %v2033 = vpop.permute.xlu0 %2032
    %2034 = vrot.lane.b32.xlu0 %v2027, 120
    %v2035 = vpop.permute.xlu0 %2034
    %2036 = vrot.lane.b32.xlu0 %v2022, 112
    %v2037 = vpop.permute.xlu0 %2036
    %2038 = vrot.lane.b32.xlu0 %v2027, 112
    %v2039 = vpop.permute.xlu0 %2038
    %2040 = vrot.lane.b32.xlu0 %v2022, 104
    %v2041 = vpop.permute.xlu0 %2040
    %2042 = vrot.lane.b32.xlu0 %v2027, 104
    %v2043 = vpop.permute.xlu0 %2042
    %2044 = vrot.lane.b32.xlu0 %v2022, 96
    %v2045 = vpop.permute.xlu0 %2044
    %v2046 = vsel %vm214, %v2022, 0
    %v2048 = vsel %vm214, %v2045, 0
    %2050 = vmatprep.subr.mxu0 0.0
    %2051 = vmatpush1.xpose.msra.mxu0 %v2048
    %2052 = vmatprep.subr.mxu0 0.0
    %2053 = vmatpush1.xpose.msra.mxu0 0.0
    %2054 = vmatprep.subr.mxu0 0.0
    %2055 = vmatpush1.xpose.msra.mxu0 0.0
    %2056 = vmatprep.subr.mxu0 0.0
    %2057 = vmatpush1.xpose.msra.mxu0 0.0
    %2058 = vmatprep.subr.mxu0 0.0
    %2059 = vmatpush1.xpose.msra.mxu0 0.0
    %2060 = vmatprep.subr.mxu0 0.0
    %2061 = vmatpush1.xpose.msra.mxu0 0.0
    %2062 = vmatprep.subr.mxu0 0.0
    %2063 = vmatpush1.xpose.msra.mxu0 0.0
    %2064 = vmatprep.subr.mxu0 0.0
    %2065 = vmatpush1.xpose.msra.mxu0 0.0
    %2066 = vmatprep.subr.mxu0 0.0
    %2067 = vmatpush1.xpose.msra.mxu0 0.0
    %2068 = vmatprep.subr.mxu0 0.0
    %2069 = vmatpush1.xpose.msra.mxu0 0.0
    %2070 = vmatprep.subr.mxu0 0.0
    %2071 = vmatpush1.xpose.msra.mxu0 0.0
    %2072 = vmatprep.subr.mxu0 0.0
    %2073 = vmatpush1.xpose.msra.mxu0 0.0
    %2074 = vmatprep.subr.mxu0 0.0
    %2075 = vmatpush1.xpose.msra.mxu0 0.0
    %2076 = vmatprep.subr.mxu0 0.0
    %2077 = vmatpush1.xpose.msra.mxu0 0.0
    %2078 = vmatprep.subr.mxu0 0.0
    %2079 = vmatpush1.xpose.msra.mxu0 0.0
    %2080 = vmatprep.subr.mxu0 0.0
    %2081 = vmatpush1.xpose.msra.mxu0 0.0
    %2082 = vmatprep.subr.mxu0 0.0
    %2083 = vmatpush1.xpose.msra.mxu0 0.0
    %2084 = vmatprep.subr.mxu0 0.0
    %2085 = vmatpush1.xpose.msra.mxu0 0.0
    %2086 = vmatprep.subr.mxu0 0.0
    %2087 = vmatpush1.xpose.msra.mxu0 0.0
    %2088 = vmatprep.subr.mxu0 0.0
    %2089 = vmatpush1.xpose.msra.mxu0 0.0
    %2090 = vmatprep.subr.mxu0 0.0
    %2091 = vmatpush1.xpose.msra.mxu0 0.0
    %2092 = vmatprep.subr.mxu0 0.0
    %2093 = vmatpush1.xpose.msra.mxu0 0.0
    %2094 = vmatprep.subr.mxu0 0.0
    %2095 = vmatpush1.xpose.msra.mxu0 0.0
    %2096 = vmatprep.subr.mxu0 0.0
    %2097 = vmatpush1.xpose.msra.mxu0 0.0
    %2098 = vmatprep.subr.mxu0 0.0
    %2099 = vmatpush1.xpose.msra.mxu0 0.0
    %2100 = vmatprep.subr.mxu0 0.0
    %2101 = vmatpush1.xpose.msra.mxu0 0.0
    %2102 = vmatprep.subr.mxu0 0.0
    %2103 = vmatpush1.xpose.msra.mxu0 0.0
    %2104 = vmatprep.subr.mxu0 0.0
    %2105 = vmatpush1.xpose.msra.mxu0 0.0
    %2106 = vmatprep.subr.mxu0 0.0
    %2107 = vmatpush1.xpose.msra.mxu0 0.0
    %2108 = vmatprep.subr.mxu0 0.0
    %2109 = vmatpush1.xpose.msra.mxu0 0.0
    %2110 = vmatprep.subr.mxu0 0.0
    %2111 = vmatpush1.xpose.msra.mxu0 0.0
    %2112 = vmatprep.subr.mxu0 0.0
    %2113 = vmatpush1.xpose.msra.mxu0 0.0
    %2114 = vmatprep.mubr.f32.mxu0 0.0
    %2115 = vmatmul.mubr.f32.gmra.mrb[0].mxu0 %v2046
    %v2116 = vpop.f32.mrb[0].mxu0
    %v2117 = vadd.f32 0.0, %v2116
    %v2118 = vpop.f32.mrb[0].mxu0
    %2119 = vdwg.mxu0
    %2120 = vrot.lane.b32.xlu0 %v2027, 96
    %v2121 = vpop.permute.xlu0 %2120
    %v2122 = vsel %vm214, %v2027, 0
    %v2124 = vsel %vm214, %v2121, 0
    %2126 = vmatprep.subr.mxu0 0.0
    %2127 = vmatpush1.xpose.msra.mxu0 %v2124
    %2128 = vmatprep.subr.mxu0 0.0
    %2129 = vmatpush1.xpose.msra.mxu0 0.0
    %2130 = vmatprep.subr.mxu0 0.0
    %2131 = vmatpush1.xpose.msra.mxu0 0.0
    %2132 = vmatprep.subr.mxu0 0.0
    %2133 = vmatpush1.xpose.msra.mxu0 0.0
    %2134 = vmatprep.subr.mxu0 0.0
    %2135 = vmatpush1.xpose.msra.mxu0 0.0
    %2136 = vmatprep.subr.mxu0 0.0
    %2137 = vmatpush1.xpose.msra.mxu0 0.0
    %2138 = vmatprep.subr.mxu0 0.0
    %2139 = vmatpush1.xpose.msra.mxu0 0.0
    %2140 = vmatprep.subr.mxu0 0.0
    %2141 = vmatpush1.xpose.msra.mxu0 0.0
    %2142 = vmatprep.subr.mxu0 0.0
    %2143 = vmatpush1.xpose.msra.mxu0 0.0
    %2144 = vmatprep.subr.mxu0 0.0
    %2145 = vmatpush1.xpose.msra.mxu0 0.0
    %2146 = vmatprep.subr.mxu0 0.0
    %2147 = vmatpush1.xpose.msra.mxu0 0.0
    %2148 = vmatprep.subr.mxu0 0.0
    %2149 = vmatpush1.xpose.msra.mxu0 0.0
    %2150 = vmatprep.subr.mxu0 0.0
    %2151 = vmatpush1.xpose.msra.mxu0 0.0
    %2152 = vmatprep.subr.mxu0 0.0
    %2153 = vmatpush1.xpose.msra.mxu0 0.0
    %2154 = vmatprep.subr.mxu0 0.0
    %2155 = vmatpush1.xpose.msra.mxu0 0.0
    %2156 = vmatprep.subr.mxu0 0.0
    %2157 = vmatpush1.xpose.msra.mxu0 0.0
    %2158 = vmatprep.subr.mxu0 0.0
    %2159 = vmatpush1.xpose.msra.mxu0 0.0
    %2160 = vmatprep.subr.mxu0 0.0
    %2161 = vmatpush1.xpose.msra.mxu0 0.0
    %2162 = vmatprep.subr.mxu0 0.0
    %2163 = vmatpush1.xpose.msra.mxu0 0.0
    %2164 = vmatprep.subr.mxu0 0.0
    %2165 = vmatpush1.xpose.msra.mxu0 0.0
    %2166 = vmatprep.subr.mxu0 0.0
    %2167 = vmatpush1.xpose.msra.mxu0 0.0
    %2168 = vmatprep.subr.mxu0 0.0
    %2169 = vmatpush1.xpose.msra.mxu0 0.0
    %2170 = vmatprep.subr.mxu0 0.0
    %2171 = vmatpush1.xpose.msra.mxu0 0.0
    %2172 = vmatprep.subr.mxu0 0.0
    %2173 = vmatpush1.xpose.msra.mxu0 0.0
    %2174 = vmatprep.subr.mxu0 0.0
    %2175 = vmatpush1.xpose.msra.mxu0 0.0
    %2176 = vmatprep.subr.mxu0 0.0
    %2177 = vmatpush1.xpose.msra.mxu0 0.0
    %2178 = vmatprep.subr.mxu0 0.0
    %2179 = vmatpush1.xpose.msra.mxu0 0.0
    %2180 = vmatprep.subr.mxu0 0.0
    %2181 = vmatpush1.xpose.msra.mxu0 0.0
    %2182 = vmatprep.subr.mxu0 0.0
    %2183 = vmatpush1.xpose.msra.mxu0 0.0
    %2184 = vmatprep.subr.mxu0 0.0
    %2185 = vmatpush1.xpose.msra.mxu0 0.0
    %2186 = vmatprep.subr.mxu0 0.0
    %2187 = vmatpush1.xpose.msra.mxu0 0.0
    %2188 = vmatprep.subr.mxu0 0.0
    %2189 = vmatpush1.xpose.msra.mxu0 0.0
    %2190 = vmatprep.mubr.f32.mxu0 0.0
    %2191 = vmatmul.mubr.f32.gmra.mrb[0].mxu0 %v2122
    %v2192 = vpop.f32.mrb[0].mxu0
    %v2193 = vadd.f32 0.0, %v2192
    %v2194 = vpop.f32.mrb[0].mxu0
    %2195 = vdwg.mxu0
    %2196 = vrot.lane.b32.xlu0 %v2033, 96
    %v2197 = vpop.permute.xlu0 %2196
    %v2198 = vsel %vm214, %v2033, 0
    %v2200 = vsel %vm214, %v2197, 0
    %2202 = vmatprep.subr.mxu0 0.0
    %2203 = vmatpush1.xpose.msra.mxu0 %v2200
    %2204 = vmatprep.subr.mxu0 0.0
    %2205 = vmatpush1.xpose.msra.mxu0 0.0
    %2206 = vmatprep.subr.mxu0 0.0
    %2207 = vmatpush1.xpose.msra.mxu0 0.0
    %2208 = vmatprep.subr.mxu0 0.0
    %2209 = vmatpush1.xpose.msra.mxu0 0.0
    %2210 = vmatprep.subr.mxu0 0.0
    %2211 = vmatpush1.xpose.msra.mxu0 0.0
    %2212 = vmatprep.subr.mxu0 0.0
    %2213 = vmatpush1.xpose.msra.mxu0 0.0
    %2214 = vmatprep.subr.mxu0 0.0
    %2215 = vmatpush1.xpose.msra.mxu0 0.0
    %2216 = vmatprep.subr.mxu0 0.0
    %2217 = vmatpush1.xpose.msra.mxu0 0.0
    %2218 = vmatprep.subr.mxu0 0.0
    %2219 = vmatpush1.xpose.msra.mxu0 0.0
    %2220 = vmatprep.subr.mxu0 0.0
    %2221 = vmatpush1.xpose.msra.mxu0 0.0
    %2222 = vmatprep.subr.mxu0 0.0
    %2223 = vmatpush1.xpose.msra.mxu0 0.0
    %2224 = vmatprep.subr.mxu0 0.0
    %2225 = vmatpush1.xpose.msra.mxu0 0.0
    %2226 = vmatprep.subr.mxu0 0.0
    %2227 = vmatpush1.xpose.msra.mxu0 0.0
    %2228 = vmatprep.subr.mxu0 0.0
    %2229 = vmatpush1.xpose.msra.mxu0 0.0
    %2230 = vmatprep.subr.mxu0 0.0
    %2231 = vmatpush1.xpose.msra.mxu0 0.0
    %2232 = vmatprep.subr.mxu0 0.0
    %2233 = vmatpush1.xpose.msra.mxu0 0.0
    %2234 = vmatprep.subr.mxu0 0.0
    %2235 = vmatpush1.xpose.msra.mxu0 0.0
    %2236 = vmatprep.subr.mxu0 0.0
    %2237 = vmatpush1.xpose.msra.mxu0 0.0
    %2238 = vmatprep.subr.mxu0 0.0
    %2239 = vmatpush1.xpose.msra.mxu0 0.0
    %2240 = vmatprep.subr.mxu0 0.0
    %2241 = vmatpush1.xpose.msra.mxu0 0.0
    %2242 = vmatprep.subr.mxu0 0.0
    %2243 = vmatpush1.xpose.msra.mxu0 0.0
    %2244 = vmatprep.subr.mxu0 0.0
    %2245 = vmatpush1.xpose.msra.mxu0 0.0
    %2246 = vmatprep.subr.mxu0 0.0
    %2247 = vmatpush1.xpose.msra.mxu0 0.0
    %2248 = vmatprep.subr.mxu0 0.0
    %2249 = vmatpush1.xpose.msra.mxu0 0.0
    %2250 = vmatprep.subr.mxu0 0.0
    %2251 = vmatpush1.xpose.msra.mxu0 0.0
    %2252 = vmatprep.subr.mxu0 0.0
    %2253 = vmatpush1.xpose.msra.mxu0 0.0
    %2254 = vmatprep.subr.mxu0 0.0
    %2255 = vmatpush1.xpose.msra.mxu0 0.0
    %2256 = vmatprep.subr.mxu0 0.0
    %2257 = vmatpush1.xpose.msra.mxu0 0.0
    %2258 = vmatprep.subr.mxu0 0.0
    %2259 = vmatpush1.xpose.msra.mxu0 0.0
    %2260 = vmatprep.subr.mxu0 0.0
    %2261 = vmatpush1.xpose.msra.mxu0 0.0
    %2262 = vmatprep.subr.mxu0 0.0
    %2263 = vmatpush1.xpose.msra.mxu0 0.0
    %2264 = vmatprep.subr.mxu0 0.0
    %2265 = vmatpush1.xpose.msra.mxu0 0.0
    %2266 = vmatprep.mubr.f32.mxu0 0.0
    %2267 = vmatmul.mubr.f32.gmra.mrb[0].mxu0 %v2198
    %v2268 = vpop.f32.mrb[0].mxu0
    %v2269 = vadd.f32 0.0, %v2268
    %v2270 = vpop.f32.mrb[0].mxu0
    %2271 = vdwg.mxu0
    %2272 = vrot.lane.b32.xlu0 %v2035, 96
    %v2273 = vpop.permute.xlu0 %2272
    %v2274 = vsel %vm214, %v2035, 0
    %v2276 = vsel %vm214, %v2273, 0
    %2278 = vmatprep.subr.mxu0 0.0
    %2279 = vmatpush1.xpose.msra.mxu0 %v2276
    %2280 = vmatprep.subr.mxu0 0.0
    %2281 = vmatpush1.xpose.msra.mxu0 0.0
    %2282 = vmatprep.subr.mxu0 0.0
    %2283 = vmatpush1.xpose.msra.mxu0 0.0
    %2284 = vmatprep.subr.mxu0 0.0
    %2285 = vmatpush1.xpose.msra.mxu0 0.0
    %2286 = vmatprep.subr.mxu0 0.0
    %2287 = vmatpush1.xpose.msra.mxu0 0.0
    %2288 = vmatprep.subr.mxu0 0.0
    %2289 = vmatpush1.xpose.msra.mxu0 0.0
    %2290 = vmatprep.subr.mxu0 0.0
    %2291 = vmatpush1.xpose.msra.mxu0 0.0
    %2292 = vmatprep.subr.mxu0 0.0
    %2293 = vmatpush1.xpose.msra.mxu0 0.0
    %2294 = vmatprep.subr.mxu0 0.0
    %2295 = vmatpush1.xpose.msra.mxu0 0.0
    %2296 = vmatprep.subr.mxu0 0.0
    %2297 = vmatpush1.xpose.msra.mxu0 0.0
    %2298 = vmatprep.subr.mxu0 0.0
    %2299 = vmatpush1.xpose.msra.mxu0 0.0
    %2300 = vmatprep.subr.mxu0 0.0
    %2301 = vmatpush1.xpose.msra.mxu0 0.0
    %2302 = vmatprep.subr.mxu0 0.0
    %2303 = vmatpush1.xpose.msra.mxu0 0.0
    %2304 = vmatprep.subr.mxu0 0.0
    %2305 = vmatpush1.xpose.msra.mxu0 0.0
    %2306 = vmatprep.subr.mxu0 0.0
    %2307 = vmatpush1.xpose.msra.mxu0 0.0
    %2308 = vmatprep.subr.mxu0 0.0
    %2309 = vmatpush1.xpose.msra.mxu0 0.0
    %2310 = vmatprep.subr.mxu0 0.0
    %2311 = vmatpush1.xpose.msra.mxu0 0.0
    %2312 = vmatprep.subr.mxu0 0.0
    %2313 = vmatpush1.xpose.msra.mxu0 0.0
    %2314 = vmatprep.subr.mxu0 0.0
    %2315 = vmatpush1.xpose.msra.mxu0 0.0
    %2316 = vmatprep.subr.mxu0 0.0
    %2317 = vmatpush1.xpose.msra.mxu0 0.0
    %2318 = vmatprep.subr.mxu0 0.0
    %2319 = vmatpush1.xpose.msra.mxu0 0.0
    %2320 = vmatprep.subr.mxu0 0.0
    %2321 = vmatpush1.xpose.msra.mxu0 0.0
    %2322 = vmatprep.subr.mxu0 0.0
    %2323 = vmatpush1.xpose.msra.mxu0 0.0
    %2324 = vmatprep.subr.mxu0 0.0
    %2325 = vmatpush1.xpose.msra.mxu0 0.0
    %2326 = vmatprep.subr.mxu0 0.0
    %2327 = vmatpush1.xpose.msra.mxu0 0.0
    %2328 = vmatprep.subr.mxu0 0.0
    %2329 = vmatpush1.xpose.msra.mxu0 0.0
    %2330 = vmatprep.subr.mxu0 0.0
    %2331 = vmatpush1.xpose.msra.mxu0 0.0
    %2332 = vmatprep.subr.mxu0 0.0
    %2333 = vmatpush1.xpose.msra.mxu0 0.0
    %2334 = vmatprep.subr.mxu0 0.0
    %2335 = vmatpush1.xpose.msra.mxu0 0.0
    %2336 = vmatprep.subr.mxu0 0.0
    %2337 = vmatpush1.xpose.msra.mxu0 0.0
    %2338 = vmatprep.subr.mxu0 0.0
    %2339 = vmatpush1.xpose.msra.mxu0 0.0
    %2340 = vmatprep.subr.mxu0 0.0
    %2341 = vmatpush1.xpose.msra.mxu0 0.0
    %2342 = vmatprep.mubr.f32.mxu0 0.0
    %2343 = vmatmul.mubr.f32.gmra.mrb[0].mxu0 %v2274
    %v2344 = vpop.f32.mrb[0].mxu0
    %v2345 = vadd.f32 0.0, %v2344
    %v2346 = vpop.f32.mrb[0].mxu0
    %2347 = vdwg.mxu0
    %2348 = vrot.lane.b32.xlu0 %v2037, 96
    %v2349 = vpop.permute.xlu0 %2348
    %v2350 = vsel %vm214, %v2037, 0
    %v2352 = vsel %vm214, %v2349, 0
    %2354 = vmatprep.subr.mxu0 0.0
    %2355 = vmatpush1.xpose.msra.mxu0 %v2352
    %2356 = vmatprep.subr.mxu0 0.0
    %2357 = vmatpush1.xpose.msra.mxu0 0.0
    %2358 = vmatprep.subr.mxu0 0.0
    %2359 = vmatpush1.xpose.msra.mxu0 0.0
    %2360 = vmatprep.subr.mxu0 0.0
    %2361 = vmatpush1.xpose.msra.mxu0 0.0
    %2362 = vmatprep.subr.mxu0 0.0
    %2363 = vmatpush1.xpose.msra.mxu0 0.0
    %2364 = vmatprep.subr.mxu0 0.0
    %2365 = vmatpush1.xpose.msra.mxu0 0.0
    %2366 = vmatprep.subr.mxu0 0.0
    %2367 = vmatpush1.xpose.msra.mxu0 0.0
    %2368 = vmatprep.subr.mxu0 0.0
    %2369 = vmatpush1.xpose.msra.mxu0 0.0
    %2370 = vmatprep.subr.mxu0 0.0
    %2371 = vmatpush1.xpose.msra.mxu0 0.0
    %2372 = vmatprep.subr.mxu0 0.0
    %2373 = vmatpush1.xpose.msra.mxu0 0.0
    %2374 = vmatprep.subr.mxu0 0.0
    %2375 = vmatpush1.xpose.msra.mxu0 0.0
    %2376 = vmatprep.subr.mxu0 0.0
    %2377 = vmatpush1.xpose.msra.mxu0 0.0
    %2378 = vmatprep.subr.mxu0 0.0
    %2379 = vmatpush1.xpose.msra.mxu0 0.0
    %2380 = vmatprep.subr.mxu0 0.0
    %2381 = vmatpush1.xpose.msra.mxu0 0.0
    %2382 = vmatprep.subr.mxu0 0.0
    %2383 = vmatpush1.xpose.msra.mxu0 0.0
    %2384 = vmatprep.subr.mxu0 0.0
    %2385 = vmatpush1.xpose.msra.mxu0 0.0
    %2386 = vmatprep.subr.mxu0 0.0
    %2387 = vmatpush1.xpose.msra.mxu0 0.0
    %2388 = vmatprep.subr.mxu0 0.0
    %2389 = vmatpush1.xpose.msra.mxu0 0.0
    %2390 = vmatprep.subr.mxu0 0.0
    %2391 = vmatpush1.xpose.msra.mxu0 0.0
    %2392 = vmatprep.subr.mxu0 0.0
    %2393 = vmatpush1.xpose.msra.mxu0 0.0
    %2394 = vmatprep.subr.mxu0 0.0
    %2395 = vmatpush1.xpose.msra.mxu0 0.0
    %2396 = vmatprep.subr.mxu0 0.0
    %2397 = vmatpush1.xpose.msra.mxu0 0.0
    %2398 = vmatprep.subr.mxu0 0.0
    %2399 = vmatpush1.xpose.msra.mxu0 0.0
    %2400 = vmatprep.subr.mxu0 0.0
    %2401 = vmatpush1.xpose.msra.mxu0 0.0
    %2402 = vmatprep.subr.mxu0 0.0
    %2403 = vmatpush1.xpose.msra.mxu0 0.0
    %2404 = vmatprep.subr.mxu0 0.0
    %2405 = vmatpush1.xpose.msra.mxu0 0.0
    %2406 = vmatprep.subr.mxu0 0.0
    %2407 = vmatpush1.xpose.msra.mxu0 0.0
    %2408 = vmatprep.subr.mxu0 0.0
    %2409 = vmatpush1.xpose.msra.mxu0 0.0
    %2410 = vmatprep.subr.mxu0 0.0
    %2411 = vmatpush1.xpose.msra.mxu0 0.0
    %2412 = vmatprep.subr.mxu0 0.0
    %2413 = vmatpush1.xpose.msra.mxu0 0.0
    %2414 = vmatprep.subr.mxu0 0.0
    %2415 = vmatpush1.xpose.msra.mxu0 0.0
    %2416 = vmatprep.subr.mxu0 0.0
    %2417 = vmatpush1.xpose.msra.mxu0 0.0
    %2418 = vmatprep.mubr.f32.mxu0 0.0
    %2419 = vmatmul.mubr.f32.gmra.mrb[0].mxu0 %v2350
    %v2420 = vpop.f32.mrb[0].mxu0
    %v2421 = vadd.f32 0.0, %v2420
    %v2422 = vpop.f32.mrb[0].mxu0
    %2423 = vdwg.mxu0
    %2424 = vrot.lane.b32.xlu0 %v2039, 96
    %v2425 = vpop.permute.xlu0 %2424
    %v2426 = vsel %vm214, %v2039, 0
    %v2428 = vsel %vm214, %v2425, 0
    %2430 = vmatprep.subr.mxu0 0.0
    %2431 = vmatpush1.xpose.msra.mxu0 %v2428
    %2432 = vmatprep.subr.mxu0 0.0
    %2433 = vmatpush1.xpose.msra.mxu0 0.0
    %2434 = vmatprep.subr.mxu0 0.0
    %2435 = vmatpush1.xpose.msra.mxu0 0.0
    %2436 = vmatprep.subr.mxu0 0.0
    %2437 = vmatpush1.xpose.msra.mxu0 0.0
    %2438 = vmatprep.subr.mxu0 0.0
    %2439 = vmatpush1.xpose.msra.mxu0 0.0
    %2440 = vmatprep.subr.mxu0 0.0
    %2441 = vmatpush1.xpose.msra.mxu0 0.0
    %2442 = vmatprep.subr.mxu0 0.0
    %2443 = vmatpush1.xpose.msra.mxu0 0.0
    %2444 = vmatprep.subr.mxu0 0.0
    %2445 = vmatpush1.xpose.msra.mxu0 0.0
    %2446 = vmatprep.subr.mxu0 0.0
    %2447 = vmatpush1.xpose.msra.mxu0 0.0
    %2448 = vmatprep.subr.mxu0 0.0
    %2449 = vmatpush1.xpose.msra.mxu0 0.0
    %2450 = vmatprep.subr.mxu0 0.0
    %2451 = vmatpush1.xpose.msra.mxu0 0.0
    %2452 = vmatprep.subr.mxu0 0.0
    %2453 = vmatpush1.xpose.msra.mxu0 0.0
    %2454 = vmatprep.subr.mxu0 0.0
    %2455 = vmatpush1.xpose.msra.mxu0 0.0
    %2456 = vmatprep.subr.mxu0 0.0
    %2457 = vmatpush1.xpose.msra.mxu0 0.0
    %2458 = vmatprep.subr.mxu0 0.0
    %2459 = vmatpush1.xpose.msra.mxu0 0.0
    %2460 = vmatprep.subr.mxu0 0.0
    %2461 = vmatpush1.xpose.msra.mxu0 0.0
    %2462 = vmatprep.subr.mxu0 0.0
    %2463 = vmatpush1.xpose.msra.mxu0 0.0
    %2464 = vmatprep.subr.mxu0 0.0
    %2465 = vmatpush1.xpose.msra.mxu0 0.0
    %2466 = vmatprep.subr.mxu0 0.0
    %2467 = vmatpush1.xpose.msra.mxu0 0.0
    %2468 = vmatprep.subr.mxu0 0.0
    %2469 = vmatpush1.xpose.msra.mxu0 0.0
    %2470 = vmatprep.subr.mxu0 0.0
    %2471 = vmatpush1.xpose.msra.mxu0 0.0
    %2472 = vmatprep.subr.mxu0 0.0
    %2473 = vmatpush1.xpose.msra.mxu0 0.0
    %2474 = vmatprep.subr.mxu0 0.0
    %2475 = vmatpush1.xpose.msra.mxu0 0.0
    %2476 = vmatprep.subr.mxu0 0.0
    %2477 = vmatpush1.xpose.msra.mxu0 0.0
    %2478 = vmatprep.subr.mxu0 0.0
    %2479 = vmatpush1.xpose.msra.mxu0 0.0
    %2480 = vmatprep.subr.mxu0 0.0
    %2481 = vmatpush1.xpose.msra.mxu0 0.0
    %2482 = vmatprep.subr.mxu0 0.0
    %2483 = vmatpush1.xpose.msra.mxu0 0.0
    %2484 = vmatprep.subr.mxu0 0.0
    %2485 = vmatpush1.xpose.msra.mxu0 0.0
    %2486 = vmatprep.subr.mxu0 0.0
    %2487 = vmatpush1.xpose.msra.mxu0 0.0
    %2488 = vmatprep.subr.mxu0 0.0
    %2489 = vmatpush1.xpose.msra.mxu0 0.0
    %2490 = vmatprep.subr.mxu0 0.0
    %2491 = vmatpush1.xpose.msra.mxu0 0.0
    %2492 = vmatprep.subr.mxu0 0.0
    %2493 = vmatpush1.xpose.msra.mxu0 0.0
    %2494 = vmatprep.mubr.f32.mxu0 0.0
    %2495 = vmatmul.mubr.f32.gmra.mrb[0].mxu0 %v2426
    %v2496 = vpop.f32.mrb[0].mxu0
    %v2497 = vadd.f32 0.0, %v2496
    %v2498 = vpop.f32.mrb[0].mxu0
    %2499 = vdwg.mxu0
    %2500 = vrot.lane.b32.xlu0 %v2041, 96
    %v2501 = vpop.permute.xlu0 %2500
    %v2502 = vsel %vm214, %v2041, 0
    %v2504 = vsel %vm214, %v2501, 0
    %2506 = vmatprep.subr.mxu0 0.0
    %2507 = vmatpush1.xpose.msra.mxu0 %v2504
    %2508 = vmatprep.subr.mxu0 0.0
    %2509 = vmatpush1.xpose.msra.mxu0 0.0
    %2510 = vmatprep.subr.mxu0 0.0
    %2511 = vmatpush1.xpose.msra.mxu0 0.0
    %2512 = vmatprep.subr.mxu0 0.0
    %2513 = vmatpush1.xpose.msra.mxu0 0.0
    %2514 = vmatprep.subr.mxu0 0.0
    %2515 = vmatpush1.xpose.msra.mxu0 0.0
    %2516 = vmatprep.subr.mxu0 0.0
    %2517 = vmatpush1.xpose.msra.mxu0 0.0
    %2518 = vmatprep.subr.mxu0 0.0
    %2519 = vmatpush1.xpose.msra.mxu0 0.0
    %2520 = vmatprep.subr.mxu0 0.0
    %2521 = vmatpush1.xpose.msra.mxu0 0.0
    %2522 = vmatprep.subr.mxu0 0.0
    %2523 = vmatpush1.xpose.msra.mxu0 0.0
    %2524 = vmatprep.subr.mxu0 0.0
    %2525 = vmatpush1.xpose.msra.mxu0 0.0
    %2526 = vmatprep.subr.mxu0 0.0
    %2527 = vmatpush1.xpose.msra.mxu0 0.0
    %2528 = vmatprep.subr.mxu0 0.0
    %2529 = vmatpush1.xpose.msra.mxu0 0.0
    %2530 = vmatprep.subr.mxu0 0.0
    %2531 = vmatpush1.xpose.msra.mxu0 0.0
    %2532 = vmatprep.subr.mxu0 0.0
    %2533 = vmatpush1.xpose.msra.mxu0 0.0
    %2534 = vmatprep.subr.mxu0 0.0
    %2535 = vmatpush1.xpose.msra.mxu0 0.0
    %2536 = vmatprep.subr.mxu0 0.0
    %2537 = vmatpush1.xpose.msra.mxu0 0.0
    %2538 = vmatprep.subr.mxu0 0.0
    %2539 = vmatpush1.xpose.msra.mxu0 0.0
    %2540 = vmatprep.subr.mxu0 0.0
    %2541 = vmatpush1.xpose.msra.mxu0 0.0
    %2542 = vmatprep.subr.mxu0 0.0
    %2543 = vmatpush1.xpose.msra.mxu0 0.0
    %2544 = vmatprep.subr.mxu0 0.0
    %2545 = vmatpush1.xpose.msra.mxu0 0.0
    %2546 = vmatprep.subr.mxu0 0.0
    %2547 = vmatpush1.xpose.msra.mxu0 0.0
    %2548 = vmatprep.subr.mxu0 0.0
    %2549 = vmatpush1.xpose.msra.mxu0 0.0
    %2550 = vmatprep.subr.mxu0 0.0
    %2551 = vmatpush1.xpose.msra.mxu0 0.0
    %2552 = vmatprep.subr.mxu0 0.0
    %2553 = vmatpush1.xpose.msra.mxu0 0.0
    %2554 = vmatprep.subr.mxu0 0.0
    %2555 = vmatpush1.xpose.msra.mxu0 0.0
    %2556 = vmatprep.subr.mxu0 0.0
    %2557 = vmatpush1.xpose.msra.mxu0 0.0
    %2558 = vmatprep.subr.mxu0 0.0
    %2559 = vmatpush1.xpose.msra.mxu0 0.0
    %2560 = vmatprep.subr.mxu0 0.0
    %2561 = vmatpush1.xpose.msra.mxu0 0.0
    %2562 = vmatprep.subr.mxu0 0.0
    %2563 = vmatpush1.xpose.msra.mxu0 0.0
    %2564 = vmatprep.subr.mxu0 0.0
    %2565 = vmatpush1.xpose.msra.mxu0 0.0
    %2566 = vmatprep.subr.mxu0 0.0
    %2567 = vmatpush1.xpose.msra.mxu0 0.0
    %2568 = vmatprep.subr.mxu0 0.0
    %2569 = vmatpush1.xpose.msra.mxu0 0.0
    %2570 = vmatprep.mubr.f32.mxu0 0.0
    %2571 = vmatmul.mubr.f32.gmra.mrb[0].mxu0 %v2502
    %v2572 = vpop.f32.mrb[0].mxu0
    %v2573 = vadd.f32 0.0, %v2572
    %v2574 = vpop.f32.mrb[0].mxu0
    %2575 = vdwg.mxu0
    %2576 = vrot.lane.b32.xlu0 %v2043, 96
    %v2577 = vpop.permute.xlu0 %2576
    %v2578 = vsel %vm214, %v2043, 0
    %v2580 = vsel %vm214, %v2577, 0
    %2582 = vmatprep.subr.mxu0 0.0
    %2583 = vmatpush1.xpose.msra.mxu0 %v2580
    %2584 = vmatprep.subr.mxu0 0.0
    %2585 = vmatpush1.xpose.msra.mxu0 0.0
    %2586 = vmatprep.subr.mxu0 0.0
    %2587 = vmatpush1.xpose.msra.mxu0 0.0
    %2588 = vmatprep.subr.mxu0 0.0
    %2589 = vmatpush1.xpose.msra.mxu0 0.0
    %2590 = vmatprep.subr.mxu0 0.0
    %2591 = vmatpush1.xpose.msra.mxu0 0.0
    %2592 = vmatprep.subr.mxu0 0.0
    %2593 = vmatpush1.xpose.msra.mxu0 0.0
    %2594 = vmatprep.subr.mxu0 0.0
    %2595 = vmatpush1.xpose.msra.mxu0 0.0
    %2596 = vmatprep.subr.mxu0 0.0
    %2597 = vmatpush1.xpose.msra.mxu0 0.0
    %2598 = vmatprep.subr.mxu0 0.0
    %2599 = vmatpush1.xpose.msra.mxu0 0.0
    %2600 = vmatprep.subr.mxu0 0.0
    %2601 = vmatpush1.xpose.msra.mxu0 0.0
    %2602 = vmatprep.subr.mxu0 0.0
    %2603 = vmatpush1.xpose.msra.mxu0 0.0
    %2604 = vmatprep.subr.mxu0 0.0
    %2605 = vmatpush1.xpose.msra.mxu0 0.0
    %2606 = vmatprep.subr.mxu0 0.0
    %2607 = vmatpush1.xpose.msra.mxu0 0.0
    %2608 = vmatprep.subr.mxu0 0.0
    %2609 = vmatpush1.xpose.msra.mxu0 0.0
    %2610 = vmatprep.subr.mxu0 0.0
    %2611 = vmatpush1.xpose.msra.mxu0 0.0
    %2612 = vmatprep.subr.mxu0 0.0
    %2613 = vmatpush1.xpose.msra.mxu0 0.0
    %2614 = vmatprep.subr.mxu0 0.0
    %2615 = vmatpush1.xpose.msra.mxu0 0.0
    %2616 = vmatprep.subr.mxu0 0.0
    %2617 = vmatpush1.xpose.msra.mxu0 0.0
    %2618 = vmatprep.subr.mxu0 0.0
    %2619 = vmatpush1.xpose.msra.mxu0 0.0
    %2620 = vmatprep.subr.mxu0 0.0
    %2621 = vmatpush1.xpose.msra.mxu0 0.0
    %2622 = vmatprep.subr.mxu0 0.0
    %2623 = vmatpush1.xpose.msra.mxu0 0.0
    %2624 = vmatprep.subr.mxu0 0.0
    %2625 = vmatpush1.xpose.msra.mxu0 0.0
    %2626 = vmatprep.subr.mxu0 0.0
    %2627 = vmatpush1.xpose.msra.mxu0 0.0
    %2628 = vmatprep.subr.mxu0 0.0
    %2629 = vmatpush1.xpose.msra.mxu0 0.0
    %2630 = vmatprep.subr.mxu0 0.0
    %2631 = vmatpush1.xpose.msra.mxu0 0.0
    %2632 = vmatprep.subr.mxu0 0.0
    %2633 = vmatpush1.xpose.msra.mxu0 0.0
    %2634 = vmatprep.subr.mxu0 0.0
    %2635 = vmatpush1.xpose.msra.mxu0 0.0
    %2636 = vmatprep.subr.mxu0 0.0
    %2637 = vmatpush1.xpose.msra.mxu0 0.0
    %2638 = vmatprep.subr.mxu0 0.0
    %2639 = vmatpush1.xpose.msra.mxu0 0.0
    %2640 = vmatprep.subr.mxu0 0.0
    %2641 = vmatpush1.xpose.msra.mxu0 0.0
    %2642 = vmatprep.subr.mxu0 0.0
    %2643 = vmatpush1.xpose.msra.mxu0 0.0
    %2644 = vmatprep.subr.mxu0 0.0
    %2645 = vmatpush1.xpose.msra.mxu0 0.0
    %2646 = vmatprep.mubr.f32.mxu0 0.0
    %2647 = vmatmul.mubr.f32.gmra.mrb[0].mxu0 %v2578
    %v2648 = vpop.f32.mrb[0].mxu0
    %v2649 = vadd.f32 0.0, %v2648
    %v2650 = vpop.f32.mrb[0].mxu0
    %2651 = vdwg.mxu0
    %v2652 = vmul.f32 %v2117, 0.35355338
    %v2653 = vmul.f32 %v2193, 0.35355338
    %v2654 = vmul.f32 %v2269, 0.35355338
    %v2655 = vmul.f32 %v2345, 0.35355338
    %v2656 = vmul.f32 %v2421, 0.35355338
    %v2657 = vmul.f32 %v2497, 0.35355338
    %v2658 = vmul.f32 %v2573, 0.35355338
    %v2659 = vmul.f32 %v2649, 0.35355338
    %v2660 = vsel %vm214, %v2652, -inf
    %2661 = vmax.xlane.f32.xlu0 %v2660
    %v2662 = vpop.xlane.xlu0 %2661
    %v2663 = vsel %vm214, %v2653, -inf
    %2664 = vmax.xlane.f32.xlu0 %v2663
    %v2665 = vpop.xlane.xlu0 %2664
    %v2666 = vsel %vm214, %v2654, -inf
    %2667 = vmax.xlane.f32.xlu0 %v2666
    %v2668 = vpop.xlane.xlu0 %2667
    %v2669 = vsel %vm214, %v2655, -inf
    %2670 = vmax.xlane.f32.xlu0 %v2669
    %v2671 = vpop.xlane.xlu0 %2670
    %v2672 = vsel %vm214, %v2656, -inf
    %2673 = vmax.xlane.f32.xlu0 %v2672
    %v2674 = vpop.xlane.xlu0 %2673
    %v2675 = vsel %vm214, %v2657, -inf
    %2676 = vmax.xlane.f32.xlu0 %v2675
    %v2677 = vpop.xlane.xlu0 %2676
    %v2678 = vsel %vm214, %v2658, -inf
    %2679 = vmax.xlane.f32.xlu0 %v2678
    %v2680 = vpop.xlane.xlu0 %2679
    %v2681 = vsel %vm214, %v2659, -inf
    %2682 = vmax.xlane.f32.xlu0 %v2681
    %v2683 = vpop.xlane.xlu0 %2682
    %v2684 = vsub.f32 %v2652, %v2662
    %v2685 = vsub.f32 %v2653, %v2665
    %v2686 = vsub.f32 %v2654, %v2668
    %v2687 = vsub.f32 %v2655, %v2671
    %v2688 = vsub.f32 %v2656, %v2674
    %v2689 = vsub.f32 %v2657, %v2677
    %v2690 = vsub.f32 %v2658, %v2680
    %v2691 = vsub.f32 %v2659, %v2683
    %v2692 = vmul.f32 %v2684, 1.442695
    %v2693 = vpow.pop %v2692
    %v2694 = vmul.f32 %v2685, 1.442695
    %v2695 = vpow.pop %v2694
    %v2696 = vmul.f32 %v2686, 1.442695
    %v2697 = vpow.pop %v2696
    %v2698 = vmul.f32 %v2687, 1.442695
    %v2699 = vpow.pop %v2698
    %v2700 = vmul.f32 %v2688, 1.442695
    %v2701 = vpow.pop %v2700
    %v2702 = vmul.f32 %v2689, 1.442695
    %v2703 = vpow.pop %v2702
    %v2704 = vmul.f32 %v2690, 1.442695
    %v2705 = vpow.pop %v2704
    %v2706 = vmul.f32 %v2691, 1.442695
    %v2707 = vpow.pop %v2706
    %v2708 = vsel %vm214, %v2693, 0.0
    %2709 = vadd.xlane.f32.xlu0 %v2708
    %v2710 = vpop.xlane.xlu0 %2709
    %v2711 = vsel %vm214, %v2695, 0.0
    %2712 = vadd.xlane.f32.xlu0 %v2711
    %v2713 = vpop.xlane.xlu0 %2712
    %v2714 = vsel %vm214, %v2697, 0.0
    %2715 = vadd.xlane.f32.xlu0 %v2714
    %v2716 = vpop.xlane.xlu0 %2715
    %v2717 = vsel %vm214, %v2699, 0.0
    %2718 = vadd.xlane.f32.xlu0 %v2717
    %v2719 = vpop.xlane.xlu0 %2718
    %v2720 = vsel %vm214, %v2701, 0.0
    %2721 = vadd.xlane.f32.xlu0 %v2720
    %v2722 = vpop.xlane.xlu0 %2721
    %v2723 = vsel %vm214, %v2703, 0.0
    %2724 = vadd.xlane.f32.xlu0 %v2723
    %v2725 = vpop.xlane.xlu0 %2724
    %v2726 = vsel %vm214, %v2705, 0.0
    %2727 = vadd.xlane.f32.xlu0 %v2726
    %v2728 = vpop.xlane.xlu0 %2727
    %v2729 = vsel %vm214, %v2707, 0.0
    %2730 = vadd.xlane.f32.xlu0 %v2729
    %v2731 = vpop.xlane.xlu0 %2730
    %v2732 = vrcp.pop %v2710
    %v2733 = vrcp.pop %v2713
    %v2734 = vrcp.pop %v2716
    %v2735 = vrcp.pop %v2719
    %v2736 = vrcp.pop %v2722
    %v2737 = vrcp.pop %v2725
    %v2738 = vrcp.pop %v2728
    %v2739 = vrcp.pop %v2731
    %v2740 = vmul.f32 %v2693, %v2732
    %v2741 = vmul.f32 %v2695, %v2733
    %v2742 = vmul.f32 %v2697, %v2734
    %v2743 = vmul.f32 %v2699, %v2735
    %v2744 = vmul.f32 %v2701, %v2736
    %v2745 = vmul.f32 %v2703, %v2737
    %v2746 = vmul.f32 %v2705, %v2738
    %v2747 = vmul.f32 %v2707, %v2739
    %2748 = vrot.lane.b32.xlu0 %v2022, 64
    %v2749 = vpop.permute.xlu0 %2748
    %v2752 = vsel %vm214, %v2740, 0
    %2754 = vmatprep.subr.mxu0 0.0
    %2755 = vmatpush1.msra.mxu0 %v2749
    %2756 = vmatprep.subr.mxu0 0.0
    %2757 = vmatpush1.msra.mxu0 0.0
    %2758 = vmatprep.subr.mxu0 0.0
    %2759 = vmatpush1.msra.mxu0 0.0
    %2760 = vmatprep.subr.mxu0 0.0
    %2761 = vmatpush1.msra.mxu0 0.0
    %2762 = vmatprep.subr.mxu0 0.0
    %2763 = vmatpush1.msra.mxu0 0.0
    %2764 = vmatprep.subr.mxu0 0.0
    %2765 = vmatpush1.msra.mxu0 0.0
    %2766 = vmatprep.subr.mxu0 0.0
    %2767 = vmatpush1.msra.mxu0 0.0
    %2768 = vmatprep.subr.mxu0 0.0
    %2769 = vmatpush1.msra.mxu0 0.0
    %2770 = vmatprep.subr.mxu0 0.0
    %2771 = vmatpush1.msra.mxu0 0.0
    %2772 = vmatprep.subr.mxu0 0.0
    %2773 = vmatpush1.msra.mxu0 0.0
    %2774 = vmatprep.subr.mxu0 0.0
    %2775 = vmatpush1.msra.mxu0 0.0
    %2776 = vmatprep.subr.mxu0 0.0
    %2777 = vmatpush1.msra.mxu0 0.0
    %2778 = vmatprep.subr.mxu0 0.0
    %2779 = vmatpush1.msra.mxu0 0.0
    %2780 = vmatprep.subr.mxu0 0.0
    %2781 = vmatpush1.msra.mxu0 0.0
    %2782 = vmatprep.subr.mxu0 0.0
    %2783 = vmatpush1.msra.mxu0 0.0
    %2784 = vmatprep.subr.mxu0 0.0
    %2785 = vmatpush1.msra.mxu0 0.0
    %2786 = vmatprep.subr.mxu0 0.0
    %2787 = vmatpush1.msra.mxu0 0.0
    %2788 = vmatprep.subr.mxu0 0.0
    %2789 = vmatpush1.msra.mxu0 0.0
    %2790 = vmatprep.subr.mxu0 0.0
    %2791 = vmatpush1.msra.mxu0 0.0
    %2792 = vmatprep.subr.mxu0 0.0
    %2793 = vmatpush1.msra.mxu0 0.0
    %2794 = vmatprep.subr.mxu0 0.0
    %2795 = vmatpush1.msra.mxu0 0.0
    %2796 = vmatprep.subr.mxu0 0.0
    %2797 = vmatpush1.msra.mxu0 0.0
    %2798 = vmatprep.subr.mxu0 0.0
    %2799 = vmatpush1.msra.mxu0 0.0
    %2800 = vmatprep.subr.mxu0 0.0
    %2801 = vmatpush1.msra.mxu0 0.0
    %2802 = vmatprep.subr.mxu0 0.0
    %2803 = vmatpush1.msra.mxu0 0.0
    %2804 = vmatprep.subr.mxu0 0.0
    %2805 = vmatpush1.msra.mxu0 0.0
    %2806 = vmatprep.subr.mxu0 0.0
    %2807 = vmatpush1.msra.mxu0 0.0
    %2808 = vmatprep.subr.mxu0 0.0
    %2809 = vmatpush1.msra.mxu0 0.0
    %2810 = vmatprep.subr.mxu0 0.0
    %2811 = vmatpush1.msra.mxu0 0.0
    %2812 = vmatprep.subr.mxu0 0.0
    %2813 = vmatpush1.msra.mxu0 0.0
    %2814 = vmatprep.subr.mxu0 0.0
    %2815 = vmatpush1.msra.mxu0 0.0
    %2816 = vmatprep.subr.mxu0 0.0
    %2817 = vmatpush1.msra.mxu0 0.0
    %2818 = vmatprep.mubr.f32.mxu0 0.0
    %2819 = vmatmul.mubr.f32.gmra.mrb[0].mxu0 %v2752
    %v2820 = vpop.f32.mrb[0].mxu0
    %v2821 = vadd.f32 0.0, %v2820
    %v2822 = vpop.f32.mrb[0].mxu0
    %2823 = vdwg.mxu0
    %2824 = vrot.lane.b32.xlu0 %v2027, 64
    %v2825 = vpop.permute.xlu0 %2824
    %v2828 = vsel %vm214, %v2741, 0
    %2830 = vmatprep.subr.mxu0 0.0
    %2831 = vmatpush1.msra.mxu0 %v2825
    %2832 = vmatprep.subr.mxu0 0.0
    %2833 = vmatpush1.msra.mxu0 0.0
    %2834 = vmatprep.subr.mxu0 0.0
    %2835 = vmatpush1.msra.mxu0 0.0
    %2836 = vmatprep.subr.mxu0 0.0
    %2837 = vmatpush1.msra.mxu0 0.0
    %2838 = vmatprep.subr.mxu0 0.0
    %2839 = vmatpush1.msra.mxu0 0.0
    %2840 = vmatprep.subr.mxu0 0.0
    %2841 = vmatpush1.msra.mxu0 0.0
    %2842 = vmatprep.subr.mxu0 0.0
    %2843 = vmatpush1.msra.mxu0 0.0
    %2844 = vmatprep.subr.mxu0 0.0
    %2845 = vmatpush1.msra.mxu0 0.0
    %2846 = vmatprep.subr.mxu0 0.0
    %2847 = vmatpush1.msra.mxu0 0.0
    %2848 = vmatprep.subr.mxu0 0.0
    %2849 = vmatpush1.msra.mxu0 0.0
    %2850 = vmatprep.subr.mxu0 0.0
    %2851 = vmatpush1.msra.mxu0 0.0
    %2852 = vmatprep.subr.mxu0 0.0
    %2853 = vmatpush1.msra.mxu0 0.0
    %2854 = vmatprep.subr.mxu0 0.0
    %2855 = vmatpush1.msra.mxu0 0.0
    %2856 = vmatprep.subr.mxu0 0.0
    %2857 = vmatpush1.msra.mxu0 0.0
    %2858 = vmatprep.subr.mxu0 0.0
    %2859 = vmatpush1.msra.mxu0 0.0
    %2860 = vmatprep.subr.mxu0 0.0
    %2861 = vmatpush1.msra.mxu0 0.0
    %2862 = vmatprep.subr.mxu0 0.0
    %2863 = vmatpush1.msra.mxu0 0.0
    %2864 = vmatprep.subr.mxu0 0.0
    %2865 = vmatpush1.msra.mxu0 0.0
    %2866 = vmatprep.subr.mxu0 0.0
    %2867 = vmatpush1.msra.mxu0 0.0
    %2868 = vmatprep.subr.mxu0 0.0
    %2869 = vmatpush1.msra.mxu0 0.0
    %2870 = vmatprep.subr.mxu0 0.0
    %2871 = vmatpush1.msra.mxu0 0.0
    %2872 = vmatprep.subr.mxu0 0.0
    %2873 = vmatpush1.msra.mxu0 0.0
    %2874 = vmatprep.subr.mxu0 0.0
    %2875 = vmatpush1.msra.mxu0 0.0
    %2876 = vmatprep.subr.mxu0 0.0
    %2877 = vmatpush1.msra.mxu0 0.0
    %2878 = vmatprep.subr.mxu0 0.0
    %2879 = vmatpush1.msra.mxu0 0.0
    %2880 = vmatprep.subr.mxu0 0.0
    %2881 = vmatpush1.msra.mxu0 0.0
    %2882 = vmatprep.subr.mxu0 0.0
    %2883 = vmatpush1.msra.mxu0 0.0
    %2884 = vmatprep.subr.mxu0 0.0
    %2885 = vmatpush1.msra.mxu0 0.0
    %2886 = vmatprep.subr.mxu0 0.0
    %2887 = vmatpush1.msra.mxu0 0.0
    %2888 = vmatprep.subr.mxu0 0.0
    %2889 = vmatpush1.msra.mxu0 0.0
    %2890 = vmatprep.subr.mxu0 0.0
    %2891 = vmatpush1.msra.mxu0 0.0
    %2892 = vmatprep.subr.mxu0 0.0
    %2893 = vmatpush1.msra.mxu0 0.0
    %2894 = vmatprep.mubr.f32.mxu0 0.0
    %2895 = vmatmul.mubr.f32.gmra.mrb[0].mxu0 %v2828
    %v2896 = vpop.f32.mrb[0].mxu0
    %v2897 = vadd.f32 0.0, %v2896
    %v2898 = vpop.f32.mrb[0].mxu0
    %2899 = vdwg.mxu0
    %2900 = vrot.lane.b32.xlu0 %v2033, 64
    %v2901 = vpop.permute.xlu0 %2900
    %v2904 = vsel %vm214, %v2742, 0
    %2906 = vmatprep.subr.mxu0 0.0
    %2907 = vmatpush1.msra.mxu0 %v2901
    %2908 = vmatprep.subr.mxu0 0.0
    %2909 = vmatpush1.msra.mxu0 0.0
    %2910 = vmatprep.subr.mxu0 0.0
    %2911 = vmatpush1.msra.mxu0 0.0
    %2912 = vmatprep.subr.mxu0 0.0
    %2913 = vmatpush1.msra.mxu0 0.0
    %2914 = vmatprep.subr.mxu0 0.0
    %2915 = vmatpush1.msra.mxu0 0.0
    %2916 = vmatprep.subr.mxu0 0.0
    %2917 = vmatpush1.msra.mxu0 0.0
    %2918 = vmatprep.subr.mxu0 0.0
    %2919 = vmatpush1.msra.mxu0 0.0
    %2920 = vmatprep.subr.mxu0 0.0
    %2921 = vmatpush1.msra.mxu0 0.0
    %2922 = vmatprep.subr.mxu0 0.0
    %2923 = vmatpush1.msra.mxu0 0.0
    %2924 = vmatprep.subr.mxu0 0.0
    %2925 = vmatpush1.msra.mxu0 0.0
    %2926 = vmatprep.subr.mxu0 0.0
    %2927 = vmatpush1.msra.mxu0 0.0
    %2928 = vmatprep.subr.mxu0 0.0
    %2929 = vmatpush1.msra.mxu0 0.0
    %2930 = vmatprep.subr.mxu0 0.0
    %2931 = vmatpush1.msra.mxu0 0.0
    %2932 = vmatprep.subr.mxu0 0.0
    %2933 = vmatpush1.msra.mxu0 0.0
    %2934 = vmatprep.subr.mxu0 0.0
    %2935 = vmatpush1.msra.mxu0 0.0
    %2936 = vmatprep.subr.mxu0 0.0
    %2937 = vmatpush1.msra.mxu0 0.0
    %2938 = vmatprep.subr.mxu0 0.0
    %2939 = vmatpush1.msra.mxu0 0.0
    %2940 = vmatprep.subr.mxu0 0.0
    %2941 = vmatpush1.msra.mxu0 0.0
    %2942 = vmatprep.subr.mxu0 0.0
    %2943 = vmatpush1.msra.mxu0 0.0
    %2944 = vmatprep.subr.mxu0 0.0
    %2945 = vmatpush1.msra.mxu0 0.0
    %2946 = vmatprep.subr.mxu0 0.0
    %2947 = vmatpush1.msra.mxu0 0.0
    %2948 = vmatprep.subr.mxu0 0.0
    %2949 = vmatpush1.msra.mxu0 0.0
    %2950 = vmatprep.subr.mxu0 0.0
    %2951 = vmatpush1.msra.mxu0 0.0
    %2952 = vmatprep.subr.mxu0 0.0
    %2953 = vmatpush1.msra.mxu0 0.0
    %2954 = vmatprep.subr.mxu0 0.0
    %2955 = vmatpush1.msra.mxu0 0.0
    %2956 = vmatprep.subr.mxu0 0.0
    %2957 = vmatpush1.msra.mxu0 0.0
    %2958 = vmatprep.subr.mxu0 0.0
    %2959 = vmatpush1.msra.mxu0 0.0
    %2960 = vmatprep.subr.mxu0 0.0
    %2961 = vmatpush1.msra.mxu0 0.0
    %2962 = vmatprep.subr.mxu0 0.0
    %2963 = vmatpush1.msra.mxu0 0.0
    %2964 = vmatprep.subr.mxu0 0.0
    %2965 = vmatpush1.msra.mxu0 0.0
    %2966 = vmatprep.subr.mxu0 0.0
    %2967 = vmatpush1.msra.mxu0 0.0
    %2968 = vmatprep.subr.mxu0 0.0
    %2969 = vmatpush1.msra.mxu0 0.0
    %2970 = vmatprep.mubr.f32.mxu0 0.0
    %2971 = vmatmul.mubr.f32.gmra.mrb[0].mxu0 %v2904
    %v2972 = vpop.f32.mrb[0].mxu0
    %v2973 = vadd.f32 0.0, %v2972
    %v2974 = vpop.f32.mrb[0].mxu0
    %2975 = vdwg.mxu0
    %2976 = vrot.lane.b32.xlu0 %v2035, 64
    %v2977 = vpop.permute.xlu0 %2976
    %v2980 = vsel %vm214, %v2743, 0
    %2982 = vmatprep.subr.mxu0 0.0
    %2983 = vmatpush1.msra.mxu0 %v2977
    %2984 = vmatprep.subr.mxu0 0.0
    %2985 = vmatpush1.msra.mxu0 0.0
    %2986 = vmatprep.subr.mxu0 0.0
    %2987 = vmatpush1.msra.mxu0 0.0
    %2988 = vmatprep.subr.mxu0 0.0
    %2989 = vmatpush1.msra.mxu0 0.0
    %2990 = vmatprep.subr.mxu0 0.0
    %2991 = vmatpush1.msra.mxu0 0.0
    %2992 = vmatprep.subr.mxu0 0.0
    %2993 = vmatpush1.msra.mxu0 0.0
    %2994 = vmatprep.subr.mxu0 0.0
    %2995 = vmatpush1.msra.mxu0 0.0
    %2996 = vmatprep.subr.mxu0 0.0
    %2997 = vmatpush1.msra.mxu0 0.0
    %2998 = vmatprep.subr.mxu0 0.0
    %2999 = vmatpush1.msra.mxu0 0.0
    %3000 = vmatprep.subr.mxu0 0.0
    %3001 = vmatpush1.msra.mxu0 0.0
    %3002 = vmatprep.subr.mxu0 0.0
    %3003 = vmatpush1.msra.mxu0 0.0
    %3004 = vmatprep.subr.mxu0 0.0
    %3005 = vmatpush1.msra.mxu0 0.0
    %3006 = vmatprep.subr.mxu0 0.0
    %3007 = vmatpush1.msra.mxu0 0.0
    %3008 = vmatprep.subr.mxu0 0.0
    %3009 = vmatpush1.msra.mxu0 0.0
    %3010 = vmatprep.subr.mxu0 0.0
    %3011 = vmatpush1.msra.mxu0 0.0
    %3012 = vmatprep.subr.mxu0 0.0
    %3013 = vmatpush1.msra.mxu0 0.0
    %3014 = vmatprep.subr.mxu0 0.0
    %3015 = vmatpush1.msra.mxu0 0.0
    %3016 = vmatprep.subr.mxu0 0.0
    %3017 = vmatpush1.msra.mxu0 0.0
    %3018 = vmatprep.subr.mxu0 0.0
    %3019 = vmatpush1.msra.mxu0 0.0
    %3020 = vmatprep.subr.mxu0 0.0
    %3021 = vmatpush1.msra.mxu0 0.0
    %3022 = vmatprep.subr.mxu0 0.0
    %3023 = vmatpush1.msra.mxu0 0.0
    %3024 = vmatprep.subr.mxu0 0.0
    %3025 = vmatpush1.msra.mxu0 0.0
    %3026 = vmatprep.subr.mxu0 0.0
    %3027 = vmatpush1.msra.mxu0 0.0
    %3028 = vmatprep.subr.mxu0 0.0
    %3029 = vmatpush1.msra.mxu0 0.0
    %3030 = vmatprep.subr.mxu0 0.0
    %3031 = vmatpush1.msra.mxu0 0.0
    %3032 = vmatprep.subr.mxu0 0.0
    %3033 = vmatpush1.msra.mxu0 0.0
    %3034 = vmatprep.subr.mxu0 0.0
    %3035 = vmatpush1.msra.mxu0 0.0
    %3036 = vmatprep.subr.mxu0 0.0
    %3037 = vmatpush1.msra.mxu0 0.0
    %3038 = vmatprep.subr.mxu0 0.0
    %3039 = vmatpush1.msra.mxu0 0.0
    %3040 = vmatprep.subr.mxu0 0.0
    %3041 = vmatpush1.msra.mxu0 0.0
    %3042 = vmatprep.subr.mxu0 0.0
    %3043 = vmatpush1.msra.mxu0 0.0
    %3044 = vmatprep.subr.mxu0 0.0
    %3045 = vmatpush1.msra.mxu0 0.0
    %3046 = vmatprep.mubr.f32.mxu0 0.0
    %3047 = vmatmul.mubr.f32.gmra.mrb[0].mxu0 %v2980
    %v3048 = vpop.f32.mrb[0].mxu0
    %v3049 = vadd.f32 0.0, %v3048
    %v3050 = vpop.f32.mrb[0].mxu0
    %3051 = vdwg.mxu0
    %3052 = vrot.lane.b32.xlu0 %v2037, 64
    %v3053 = vpop.permute.xlu0 %3052
    %v3056 = vsel %vm214, %v2744, 0
    %3058 = vmatprep.subr.mxu0 0.0
    %3059 = vmatpush1.msra.mxu0 %v3053
    %3060 = vmatprep.subr.mxu0 0.0
    %3061 = vmatpush1.msra.mxu0 0.0
    %3062 = vmatprep.subr.mxu0 0.0
    %3063 = vmatpush1.msra.mxu0 0.0
    %3064 = vmatprep.subr.mxu0 0.0
    %3065 = vmatpush1.msra.mxu0 0.0
    %3066 = vmatprep.subr.mxu0 0.0
    %3067 = vmatpush1.msra.mxu0 0.0
    %3068 = vmatprep.subr.mxu0 0.0
    %3069 = vmatpush1.msra.mxu0 0.0
    %3070 = vmatprep.subr.mxu0 0.0
    %3071 = vmatpush1.msra.mxu0 0.0
    %3072 = vmatprep.subr.mxu0 0.0
    %3073 = vmatpush1.msra.mxu0 0.0
    %3074 = vmatprep.subr.mxu0 0.0
    %3075 = vmatpush1.msra.mxu0 0.0
    %3076 = vmatprep.subr.mxu0 0.0
    %3077 = vmatpush1.msra.mxu0 0.0
    %3078 = vmatprep.subr.mxu0 0.0
    %3079 = vmatpush1.msra.mxu0 0.0
    %3080 = vmatprep.subr.mxu0 0.0
    %3081 = vmatpush1.msra.mxu0 0.0
    %3082 = vmatprep.subr.mxu0 0.0
    %3083 = vmatpush1.msra.mxu0 0.0
    %3084 = vmatprep.subr.mxu0 0.0
    %3085 = vmatpush1.msra.mxu0 0.0
    %3086 = vmatprep.subr.mxu0 0.0
    %3087 = vmatpush1.msra.mxu0 0.0
    %3088 = vmatprep.subr.mxu0 0.0
    %3089 = vmatpush1.msra.mxu0 0.0
    %3090 = vmatprep.subr.mxu0 0.0
    %3091 = vmatpush1.msra.mxu0 0.0
    %3092 = vmatprep.subr.mxu0 0.0
    %3093 = vmatpush1.msra.mxu0 0.0
    %3094 = vmatprep.subr.mxu0 0.0
    %3095 = vmatpush1.msra.mxu0 0.0
    %3096 = vmatprep.subr.mxu0 0.0
    %3097 = vmatpush1.msra.mxu0 0.0
    %3098 = vmatprep.subr.mxu0 0.0
    %3099 = vmatpush1.msra.mxu0 0.0
    %3100 = vmatprep.subr.mxu0 0.0
    %3101 = vmatpush1.msra.mxu0 0.0
    %3102 = vmatprep.subr.mxu0 0.0
    %3103 = vmatpush1.msra.mxu0 0.0
    %3104 = vmatprep.subr.mxu0 0.0
    %3105 = vmatpush1.msra.mxu0 0.0
    %3106 = vmatprep.subr.mxu0 0.0
    %3107 = vmatpush1.msra.mxu0 0.0
    %3108 = vmatprep.subr.mxu0 0.0
    %3109 = vmatpush1.msra.mxu0 0.0
    %3110 = vmatprep.subr.mxu0 0.0
    %3111 = vmatpush1.msra.mxu0 0.0
    %3112 = vmatprep.subr.mxu0 0.0
    %3113 = vmatpush1.msra.mxu0 0.0
    %3114 = vmatprep.subr.mxu0 0.0
    %3115 = vmatpush1.msra.mxu0 0.0
    %3116 = vmatprep.subr.mxu0 0.0
    %3117 = vmatpush1.msra.mxu0 0.0
    %3118 = vmatprep.subr.mxu0 0.0
    %3119 = vmatpush1.msra.mxu0 0.0
    %3120 = vmatprep.subr.mxu0 0.0
    %3121 = vmatpush1.msra.mxu0 0.0
    %3122 = vmatprep.mubr.f32.mxu0 0.0
    %3123 = vmatmul.mubr.f32.gmra.mrb[0].mxu0 %v3056
    %v3124 = vpop.f32.mrb[0].mxu0
    %v3125 = vadd.f32 0.0, %v3124
    %v3126 = vpop.f32.mrb[0].mxu0
    %3127 = vdwg.mxu0
    %3128 = vrot.lane.b32.xlu0 %v2039, 64
    %v3129 = vpop.permute.xlu0 %3128
    %v3132 = vsel %vm214, %v2745, 0
    %3134 = vmatprep.subr.mxu0 0.0
    %3135 = vmatpush1.msra.mxu0 %v3129
    %3136 = vmatprep.subr.mxu0 0.0
    %3137 = vmatpush1.msra.mxu0 0.0
    %3138 = vmatprep.subr.mxu0 0.0
    %3139 = vmatpush1.msra.mxu0 0.0
    %3140 = vmatprep.subr.mxu0 0.0
    %3141 = vmatpush1.msra.mxu0 0.0
    %3142 = vmatprep.subr.mxu0 0.0
    %3143 = vmatpush1.msra.mxu0 0.0
    %3144 = vmatprep.subr.mxu0 0.0
    %3145 = vmatpush1.msra.mxu0 0.0
    %3146 = vmatprep.subr.mxu0 0.0
    %3147 = vmatpush1.msra.mxu0 0.0
    %3148 = vmatprep.subr.mxu0 0.0
    %3149 = vmatpush1.msra.mxu0 0.0
    %3150 = vmatprep.subr.mxu0 0.0
    %3151 = vmatpush1.msra.mxu0 0.0
    %3152 = vmatprep.subr.mxu0 0.0
    %3153 = vmatpush1.msra.mxu0 0.0
    %3154 = vmatprep.subr.mxu0 0.0
    %3155 = vmatpush1.msra.mxu0 0.0
    %3156 = vmatprep.subr.mxu0 0.0
    %3157 = vmatpush1.msra.mxu0 0.0
    %3158 = vmatprep.subr.mxu0 0.0
    %3159 = vmatpush1.msra.mxu0 0.0
    %3160 = vmatprep.subr.mxu0 0.0
    %3161 = vmatpush1.msra.mxu0 0.0
    %3162 = vmatprep.subr.mxu0 0.0
    %3163 = vmatpush1.msra.mxu0 0.0
    %3164 = vmatprep.subr.mxu0 0.0
    %3165 = vmatpush1.msra.mxu0 0.0
    %3166 = vmatprep.subr.mxu0 0.0
    %3167 = vmatpush1.msra.mxu0 0.0
    %3168 = vmatprep.subr.mxu0 0.0
    %3169 = vmatpush1.msra.mxu0 0.0
    %3170 = vmatprep.subr.mxu0 0.0
    %3171 = vmatpush1.msra.mxu0 0.0
    %3172 = vmatprep.subr.mxu0 0.0
    %3173 = vmatpush1.msra.mxu0 0.0
    %3174 = vmatprep.subr.mxu0 0.0
    %3175 = vmatpush1.msra.mxu0 0.0
    %3176 = vmatprep.subr.mxu0 0.0
    %3177 = vmatpush1.msra.mxu0 0.0
    %3178 = vmatprep.subr.mxu0 0.0
    %3179 = vmatpush1.msra.mxu0 0.0
    %3180 = vmatprep.subr.mxu0 0.0
    %3181 = vmatpush1.msra.mxu0 0.0
    %3182 = vmatprep.subr.mxu0 0.0
    %3183 = vmatpush1.msra.mxu0 0.0
    %3184 = vmatprep.subr.mxu0 0.0
    %3185 = vmatpush1.msra.mxu0 0.0
    %3186 = vmatprep.subr.mxu0 0.0
    %3187 = vmatpush1.msra.mxu0 0.0
    %3188 = vmatprep.subr.mxu0 0.0
    %3189 = vmatpush1.msra.mxu0 0.0
    %3190 = vmatprep.subr.mxu0 0.0
    %3191 = vmatpush1.msra.mxu0 0.0
    %3192 = vmatprep.subr.mxu0 0.0
    %3193 = vmatpush1.msra.mxu0 0.0
    %3194 = vmatprep.subr.mxu0 0.0
    %3195 = vmatpush1.msra.mxu0 0.0
    %3196 = vmatprep.subr.mxu0 0.0
    %3197 = vmatpush1.msra.mxu0 0.0
    %3198 = vmatprep.mubr.f32.mxu0 0.0
    %3199 = vmatmul.mubr.f32.gmra.mrb[0].mxu0 %v3132
    %v3200 = vpop.f32.mrb[0].mxu0
    %v3201 = vadd.f32 0.0, %v3200
    %v3202 = vpop.f32.mrb[0].mxu0
    %3203 = vdwg.mxu0
    %3204 = vrot.lane.b32.xlu0 %v2041, 64
    %v3205 = vpop.permute.xlu0 %3204
    %v3208 = vsel %vm214, %v2746, 0
    %3210 = vmatprep.subr.mxu0 0.0
    %3211 = vmatpush1.msra.mxu0 %v3205
    %3212 = vmatprep.subr.mxu0 0.0
    %3213 = vmatpush1.msra.mxu0 0.0
    %3214 = vmatprep.subr.mxu0 0.0
    %3215 = vmatpush1.msra.mxu0 0.0
    %3216 = vmatprep.subr.mxu0 0.0
    %3217 = vmatpush1.msra.mxu0 0.0
    %3218 = vmatprep.subr.mxu0 0.0
    %3219 = vmatpush1.msra.mxu0 0.0
    %3220 = vmatprep.subr.mxu0 0.0
    %3221 = vmatpush1.msra.mxu0 0.0
    %3222 = vmatprep.subr.mxu0 0.0
    %3223 = vmatpush1.msra.mxu0 0.0
    %3224 = vmatprep.subr.mxu0 0.0
    %3225 = vmatpush1.msra.mxu0 0.0
    %3226 = vmatprep.subr.mxu0 0.0
    %3227 = vmatpush1.msra.mxu0 0.0
    %3228 = vmatprep.subr.mxu0 0.0
    %3229 = vmatpush1.msra.mxu0 0.0
    %3230 = vmatprep.subr.mxu0 0.0
    %3231 = vmatpush1.msra.mxu0 0.0
    %3232 = vmatprep.subr.mxu0 0.0
    %3233 = vmatpush1.msra.mxu0 0.0
    %3234 = vmatprep.subr.mxu0 0.0
    %3235 = vmatpush1.msra.mxu0 0.0
    %3236 = vmatprep.subr.mxu0 0.0
    %3237 = vmatpush1.msra.mxu0 0.0
    %3238 = vmatprep.subr.mxu0 0.0
    %3239 = vmatpush1.msra.mxu0 0.0
    %3240 = vmatprep.subr.mxu0 0.0
    %3241 = vmatpush1.msra.mxu0 0.0
    %3242 = vmatprep.subr.mxu0 0.0
    %3243 = vmatpush1.msra.mxu0 0.0
    %3244 = vmatprep.subr.mxu0 0.0
    %3245 = vmatpush1.msra.mxu0 0.0
    %3246 = vmatprep.subr.mxu0 0.0
    %3247 = vmatpush1.msra.mxu0 0.0
    %3248 = vmatprep.subr.mxu0 0.0
    %3249 = vmatpush1.msra.mxu0 0.0
    %3250 = vmatprep.subr.mxu0 0.0
    %3251 = vmatpush1.msra.mxu0 0.0
    %3252 = vmatprep.subr.mxu0 0.0
    %3253 = vmatpush1.msra.mxu0 0.0
    %3254 = vmatprep.subr.mxu0 0.0
    %3255 = vmatpush1.msra.mxu0 0.0
    %3256 = vmatprep.subr.mxu0 0.0
    %3257 = vmatpush1.msra.mxu0 0.0
    %3258 = vmatprep.subr.mxu0 0.0
    %3259 = vmatpush1.msra.mxu0 0.0
    %3260 = vmatprep.subr.mxu0 0.0
    %3261 = vmatpush1.msra.mxu0 0.0
    %3262 = vmatprep.subr.mxu0 0.0
    %3263 = vmatpush1.msra.mxu0 0.0
    %3264 = vmatprep.subr.mxu0 0.0
    %3265 = vmatpush1.msra.mxu0 0.0
    %3266 = vmatprep.subr.mxu0 0.0
    %3267 = vmatpush1.msra.mxu0 0.0
    %3268 = vmatprep.subr.mxu0 0.0
    %3269 = vmatpush1.msra.mxu0 0.0
    %3270 = vmatprep.subr.mxu0 0.0
    %3271 = vmatpush1.msra.mxu0 0.0
    %3272 = vmatprep.subr.mxu0 0.0
    %3273 = vmatpush1.msra.mxu0 0.0
    %3274 = vmatprep.mubr.f32.mxu0 0.0
    %3275 = vmatmul.mubr.f32.gmra.mrb[0].mxu0 %v3208
    %v3276 = vpop.f32.mrb[0].mxu0
    %v3277 = vadd.f32 0.0, %v3276
    %v3278 = vpop.f32.mrb[0].mxu0
    %3279 = vdwg.mxu0
    %3280 = vrot.lane.b32.xlu0 %v2043, 64
    %v3281 = vpop.permute.xlu0 %3280
    %v3284 = vsel %vm214, %v2747, 0
    %3286 = vmatprep.subr.mxu0 0.0
    %3287 = vmatpush1.msra.mxu0 %v3281
    %3288 = vmatprep.subr.mxu0 0.0
    %3289 = vmatpush1.msra.mxu0 0.0
    %3290 = vmatprep.subr.mxu0 0.0
    %3291 = vmatpush1.msra.mxu0 0.0
    %3292 = vmatprep.subr.mxu0 0.0
    %3293 = vmatpush1.msra.mxu0 0.0
    %3294 = vmatprep.subr.mxu0 0.0
    %3295 = vmatpush1.msra.mxu0 0.0
    %3296 = vmatprep.subr.mxu0 0.0
    %3297 = vmatpush1.msra.mxu0 0.0
    %3298 = vmatprep.subr.mxu0 0.0
    %3299 = vmatpush1.msra.mxu0 0.0
    %3300 = vmatprep.subr.mxu0 0.0
    %3301 = vmatpush1.msra.mxu0 0.0
    %3302 = vmatprep.subr.mxu0 0.0
    %3303 = vmatpush1.msra.mxu0 0.0
    %3304 = vmatprep.subr.mxu0 0.0
    %3305 = vmatpush1.msra.mxu0 0.0
    %3306 = vmatprep.subr.mxu0 0.0
    %3307 = vmatpush1.msra.mxu0 0.0
    %3308 = vmatprep.subr.mxu0 0.0
    %3309 = vmatpush1.msra.mxu0 0.0
    %3310 = vmatprep.subr.mxu0 0.0
    %3311 = vmatpush1.msra.mxu0 0.0
    %3312 = vmatprep.subr.mxu0 0.0
    %3313 = vmatpush1.msra.mxu0 0.0
    %3314 = vmatprep.subr.mxu0 0.0
    %3315 = vmatpush1.msra.mxu0 0.0
    %3316 = vmatprep.subr.mxu0 0.0
    %3317 = vmatpush1.msra.mxu0 0.0
    %3318 = vmatprep.subr.mxu0 0.0
    %3319 = vmatpush1.msra.mxu0 0.0
    %3320 = vmatprep.subr.mxu0 0.0
    %3321 = vmatpush1.msra.mxu0 0.0
    %3322 = vmatprep.subr.mxu0 0.0
    %3323 = vmatpush1.msra.mxu0 0.0
    %3324 = vmatprep.subr.mxu0 0.0
    %3325 = vmatpush1.msra.mxu0 0.0
    %3326 = vmatprep.subr.mxu0 0.0
    %3327 = vmatpush1.msra.mxu0 0.0
    %3328 = vmatprep.subr.mxu0 0.0
    %3329 = vmatpush1.msra.mxu0 0.0
    %3330 = vmatprep.subr.mxu0 0.0
    %3331 = vmatpush1.msra.mxu0 0.0
    %3332 = vmatprep.subr.mxu0 0.0
    %3333 = vmatpush1.msra.mxu0 0.0
    %3334 = vmatprep.subr.mxu0 0.0
    %3335 = vmatpush1.msra.mxu0 0.0
    %3336 = vmatprep.subr.mxu0 0.0
    %3337 = vmatpush1.msra.mxu0 0.0
    %3338 = vmatprep.subr.mxu0 0.0
    %3339 = vmatpush1.msra.mxu0 0.0
    %3340 = vmatprep.subr.mxu0 0.0
    %3341 = vmatpush1.msra.mxu0 0.0
    %3342 = vmatprep.subr.mxu0 0.0
    %3343 = vmatpush1.msra.mxu0 0.0
    %3344 = vmatprep.subr.mxu0 0.0
    %3345 = vmatpush1.msra.mxu0 0.0
    %3346 = vmatprep.subr.mxu0 0.0
    %3347 = vmatpush1.msra.mxu0 0.0
    %3348 = vmatprep.subr.mxu0 0.0
    %3349 = vmatpush1.msra.mxu0 0.0
    %3350 = vmatprep.mubr.f32.mxu0 0.0
    %3351 = vmatmul.mubr.f32.gmra.mrb[0].mxu0 %v3284
    %v3352 = vpop.f32.mrb[0].mxu0
    %v3353 = vadd.f32 0.0, %v3352
    %v3354 = vpop.f32.mrb[0].mxu0
    %3355 = vdwg.mxu0
    %3358 = vrot.lane.b32.xlu0 %v2973, 8
    %v3359 = vpop.permute.xlu0 %3358
    %3360 = vrot.lane.b32.xlu0 %v3049, 8
    %v3361 = vpop.permute.xlu0 %3360
    %3366 = vrot.lane.b32.xlu0 %v3125, 16
    %v3367 = vpop.permute.xlu0 %3366
    %3368 = vrot.lane.b32.xlu0 %v3201, 16
    %v3369 = vpop.permute.xlu0 %3368
    %3374 = vrot.lane.b32.xlu0 %v3277, 24
    %v3375 = vpop.permute.xlu0 %3374
    %3376 = vrot.lane.b32.xlu0 %v3353, 24
    %v3377 = vpop.permute.xlu0 %3376
    %v3380 = vsel %vm214, %v2821, %v3359
    %v3381 = vsel %vm214, %v2897, %v3361
    %v3382 = vsel %vm1551, %v3380, %v3367
    %v3383 = vsel %vm1551, %v3381, %v3369
    %v3384 = vsel %vm1554, %v3382, %v3375
    %v3385 = vsel %vm1554, %v3383, %v3377
    %s3386 = scalar_lea.vmem %s2, 32
    %v3387 = vld [vmem:[%s3386] sm:$0xff]
    %v3388 = vld [vmem:[%s3386 + $0x8] sm:$0xff]
    %v3389 = vld [vmem:[%s3386 + $0x10] sm:$0xff]
    %v3390 = vld [vmem:[%s3386 + $0x18] sm:$0xff]
    %v3391 = vlaneseq
    %v3392 = vshrl.u32 %v3391, 7
    %v3393 = vsub.s32 1, %v3392
    %v3394 = vrot.slane %v1887, %v3393
    %v3396 = vsel %vm55, %v3384, 0
    %v3399 = vsel %vm55, %v3385, 0
    %3401 = vmatprep.subr.mxu0 0.0
    %3402 = vmatpush1.msra.mxu0 %v3387
    %3403 = vmatprep.subr.mxu0 0.0
    %3404 = vmatpush1.msra.mxu0 %v3388
    %3405 = vmatprep.subr.mxu0 0.0
    %3406 = vmatpush1.msra.mxu0 %v3389
    %3407 = vmatprep.subr.mxu0 0.0
    %3408 = vmatpush1.msra.mxu0 %v3390
    %3409 = vmatprep.subr.mxu0 0.0
    %3410 = vmatpush1.msra.mxu0 0.0
    %3411 = vmatprep.subr.mxu0 0.0
    %3412 = vmatpush1.msra.mxu0 0.0
    %3413 = vmatprep.subr.mxu0 0.0
    %3414 = vmatpush1.msra.mxu0 0.0
    %3415 = vmatprep.subr.mxu0 0.0
    %3416 = vmatpush1.msra.mxu0 0.0
    %3417 = vmatprep.subr.mxu0 0.0
    %3418 = vmatpush1.msra.mxu0 0.0
    %3419 = vmatprep.subr.mxu0 0.0
    %3420 = vmatpush1.msra.mxu0 0.0
    %3421 = vmatprep.subr.mxu0 0.0
    %3422 = vmatpush1.msra.mxu0 0.0
    %3423 = vmatprep.subr.mxu0 0.0
    %3424 = vmatpush1.msra.mxu0 0.0
    %3425 = vmatprep.subr.mxu0 0.0
    %3426 = vmatpush1.msra.mxu0 0.0
    %3427 = vmatprep.subr.mxu0 0.0
    %3428 = vmatpush1.msra.mxu0 0.0
    %3429 = vmatprep.subr.mxu0 0.0
    %3430 = vmatpush1.msra.mxu0 0.0
    %3431 = vmatprep.subr.mxu0 0.0
    %3432 = vmatpush1.msra.mxu0 0.0
    %3433 = vmatprep.subr.mxu0 0.0
    %3434 = vmatpush1.msra.mxu0 0.0
    %3435 = vmatprep.subr.mxu0 0.0
    %3436 = vmatpush1.msra.mxu0 0.0
    %3437 = vmatprep.subr.mxu0 0.0
    %3438 = vmatpush1.msra.mxu0 0.0
    %3439 = vmatprep.subr.mxu0 0.0
    %3440 = vmatpush1.msra.mxu0 0.0
    %3441 = vmatprep.subr.mxu0 0.0
    %3442 = vmatpush1.msra.mxu0 0.0
    %3443 = vmatprep.subr.mxu0 0.0
    %3444 = vmatpush1.msra.mxu0 0.0
    %3445 = vmatprep.subr.mxu0 0.0
    %3446 = vmatpush1.msra.mxu0 0.0
    %3447 = vmatprep.subr.mxu0 0.0
    %3448 = vmatpush1.msra.mxu0 0.0
    %3449 = vmatprep.subr.mxu0 0.0
    %3450 = vmatpush1.msra.mxu0 0.0
    %3451 = vmatprep.subr.mxu0 0.0
    %3452 = vmatpush1.msra.mxu0 0.0
    %3453 = vmatprep.subr.mxu0 0.0
    %3454 = vmatpush1.msra.mxu0 0.0
    %3455 = vmatprep.subr.mxu0 0.0
    %3456 = vmatpush1.msra.mxu0 0.0
    %3457 = vmatprep.subr.mxu0 0.0
    %3458 = vmatpush1.msra.mxu0 0.0
    %3459 = vmatprep.subr.mxu0 0.0
    %3460 = vmatpush1.msra.mxu0 0.0
    %3461 = vmatprep.subr.mxu0 0.0
    %3462 = vmatpush1.msra.mxu0 0.0
    %3463 = vmatprep.subr.mxu0 0.0
    %3464 = vmatpush1.msra.mxu0 0.0
    %3465 = vmatprep.mubr.f32.mxu0 0.0
    %3466 = vmatmul.mubr.f32.gmra.mrb[0].mxu0 %v3396
    %v3467 = vpop.f32.mrb[0].mxu0
    %v3468 = vadd.f32 %v3394, %v3467
    %v3469 = vpop.f32.mrb[0].mxu0
    %3470 = vmatprep.mubr.f32.mxu0 0.0
    %3471 = vmatmul.mubr.f32.gmra.mrb[0].mxu0 %v3399
    %v3472 = vpop.f32.mrb[0].mxu0
    %v3473 = vadd.f32 %v3394, %v3472
    %v3474 = vpop.f32.mrb[0].mxu0
    %3475 = vdwg.mxu0
    %v3476 = vadd.f32 %v1885, %v3468
    %v3477 = vadd.f32 %v1886, %v3473
    %v3478 = vsel %vm55, %v3476, 0.0
    %3479 = vadd.xlane.f32.xlu0 %v3478
    %v3480 = vpop.xlane.xlu0 %3479
    %v3481 = vsel %vm55, %v3477, 0.0
    %3482 = vadd.xlane.f32.xlu0 %v3481
    %v3483 = vpop.xlane.xlu0 %3482
    %v3484 = vmul.f32 %v3480, %v62
    %v3485 = vmul.f32 %v3483, %v62
    %v3486 = vsub.f32 %v3476, %v3484
    %v3487 = vsub.f32 %v3477, %v3485
    %v3488 = vmul.f32 %v3486, %v3486
    %v3489 = vmul.f32 %v3487, %v3487
    %v3490 = vsel %vm55, %v3488, 0.0
    %3491 = vadd.xlane.f32.xlu0 %v3490
    %v3492 = vpop.xlane.xlu0 %3491
    %v3493 = vsel %vm55, %v3489, 0.0
    %3494 = vadd.xlane.f32.xlu0 %v3493
    %v3495 = vpop.xlane.xlu0 %3494
    %v3496 = vmul.f32 %v3492, 0.032258064
    %v3497 = vmul.f32 %v3495, 0.032258064
    %v3498 = vrsqrt.pop %v3496
    %v3499 = vmul.f32 %v3496, %v3498
    %vm3500 = vcmp.eq.f32.partialorder %v3496, inf
    %v3501 = vsel %vm3500, %v3496, %v3499
    %vm3502 = vcmp.eq.f32.partialorder %v3496, 0.0
    %v3503 = vand.u32 %v3496, 2147483648
    %v3504 = vsel %vm3502, %v3503, %v3501
    %v3505 = vrsqrt.pop %v3497
    %v3506 = vmul.f32 %v3497, %v3505
    %vm3507 = vcmp.eq.f32.partialorder %v3497, inf
    %v3508 = vsel %vm3507, %v3497, %v3506
    %vm3509 = vcmp.eq.f32.partialorder %v3497, 0.0
    %v3510 = vand.u32 %v3497, 2147483648
    %v3511 = vsel %vm3509, %v3510, %v3508
    %v3512 = vadd.f32 %v3504, 1e-06
    %v3513 = vadd.f32 %v3511, 1e-06
    %v3514 = vrcp.pop %v3512
    %v3515 = vrcp.pop %v3513
    %v3516 = vlaneseq
    %v3517 = vshrl.u32 %v3516, 7
    %v3518 = vsub.s32 6, %v3517
    %v3519 = vrot.slane %v1887, %v3518
    %v3520 = vmul.f32 %v3519, %v3486
    %v3521 = vmul.f32 %v3519, %v3487
    %v3522 = vmul.f32 %v3520, %v3514
    %v3523 = vmul.f32 %v3521, %v3515
    %v3524 = vlaneseq
    %v3525 = vshrl.u32 %v3524, 7
    %v3526 = vsub.s32 7, %v3525
    %v3527 = vrot.slane %v1887, %v3526
    %v3528 = vadd.f32 %v3522, %v3527
    %v3529 = vadd.f32 %v3523, %v3527
    %s3530 = scalar_lea.vmem %s3, 32
    %v3531 = vld [vmem:[%s3530] sm:$0xff]
    %v3532 = vld [vmem:[%s3530 + $0x8] sm:$0xff]
    %v3533 = vld [vmem:[%s3530 + $0x10] sm:$0xff]
    %v3534 = vld [vmem:[%s3530 + $0x18] sm:$0xff]
    %v3535 = vlaneseq
    %v3536 = vshrl.u32 %v3535, 7
    %v3537 = vsub.s32 2, %v3536
    %v3538 = vrot.slane %v1887, %v3537
    %v3540 = vsel %vm55, %v3528, 0
    %v3543 = vsel %vm55, %v3529, 0
    %3545 = vmatprep.subr.mxu0 0.0
    %3546 = vmatpush1.msra.mxu0 %v3531
    %3547 = vmatprep.subr.mxu0 0.0
    %3548 = vmatpush1.msra.mxu0 %v3532
    %3549 = vmatprep.subr.mxu0 0.0
    %3550 = vmatpush1.msra.mxu0 %v3533
    %3551 = vmatprep.subr.mxu0 0.0
    %3552 = vmatpush1.msra.mxu0 %v3534
    %3553 = vmatprep.subr.mxu0 0.0
    %3554 = vmatpush1.msra.mxu0 0.0
    %3555 = vmatprep.subr.mxu0 0.0
    %3556 = vmatpush1.msra.mxu0 0.0
    %3557 = vmatprep.subr.mxu0 0.0
    %3558 = vmatpush1.msra.mxu0 0.0
    %3559 = vmatprep.subr.mxu0 0.0
    %3560 = vmatpush1.msra.mxu0 0.0
    %3561 = vmatprep.subr.mxu0 0.0
    %3562 = vmatpush1.msra.mxu0 0.0
    %3563 = vmatprep.subr.mxu0 0.0
    %3564 = vmatpush1.msra.mxu0 0.0
    %3565 = vmatprep.subr.mxu0 0.0
    %3566 = vmatpush1.msra.mxu0 0.0
    %3567 = vmatprep.subr.mxu0 0.0
    %3568 = vmatpush1.msra.mxu0 0.0
    %3569 = vmatprep.subr.mxu0 0.0
    %3570 = vmatpush1.msra.mxu0 0.0
    %3571 = vmatprep.subr.mxu0 0.0
    %3572 = vmatpush1.msra.mxu0 0.0
    %3573 = vmatprep.subr.mxu0 0.0
    %3574 = vmatpush1.msra.mxu0 0.0
    %3575 = vmatprep.subr.mxu0 0.0
    %3576 = vmatpush1.msra.mxu0 0.0
    %3577 = vmatprep.subr.mxu0 0.0
    %3578 = vmatpush1.msra.mxu0 0.0
    %3579 = vmatprep.subr.mxu0 0.0
    %3580 = vmatpush1.msra.mxu0 0.0
    %3581 = vmatprep.subr.mxu0 0.0
    %3582 = vmatpush1.msra.mxu0 0.0
    %3583 = vmatprep.subr.mxu0 0.0
    %3584 = vmatpush1.msra.mxu0 0.0
    %3585 = vmatprep.subr.mxu0 0.0
    %3586 = vmatpush1.msra.mxu0 0.0
    %3587 = vmatprep.subr.mxu0 0.0
    %3588 = vmatpush1.msra.mxu0 0.0
    %3589 = vmatprep.subr.mxu0 0.0
    %3590 = vmatpush1.msra.mxu0 0.0
    %3591 = vmatprep.subr.mxu0 0.0
    %3592 = vmatpush1.msra.mxu0 0.0
    %3593 = vmatprep.subr.mxu0 0.0
    %3594 = vmatpush1.msra.mxu0 0.0
    %3595 = vmatprep.subr.mxu0 0.0
    %3596 = vmatpush1.msra.mxu0 0.0
    %3597 = vmatprep.subr.mxu0 0.0
    %3598 = vmatpush1.msra.mxu0 0.0
    %3599 = vmatprep.subr.mxu0 0.0
    %3600 = vmatpush1.msra.mxu0 0.0
    %3601 = vmatprep.subr.mxu0 0.0
    %3602 = vmatpush1.msra.mxu0 0.0
    %3603 = vmatprep.subr.mxu0 0.0
    %3604 = vmatpush1.msra.mxu0 0.0
    %3605 = vmatprep.subr.mxu0 0.0
    %3606 = vmatpush1.msra.mxu0 0.0
    %3607 = vmatprep.subr.mxu0 0.0
    %3608 = vmatpush1.msra.mxu0 0.0
    %3609 = vmatprep.mubr.f32.mxu0 0.0
    %3610 = vmatmul.mubr.f32.gmra.mrb[0].mxu0 %v3540
    %v3611 = vpop.f32.mrb[0].mxu0
    %v3612 = vadd.f32 %v3538, %v3611
    %v3613 = vpop.f32.mrb[0].mxu0
    %3614 = vmatprep.mubr.f32.mxu0 0.0
    %3615 = vmatmul.mubr.f32.gmra.mrb[0].mxu0 %v3543
    %v3616 = vpop.f32.mrb[0].mxu0
    %v3617 = vadd.f32 %v3538, %v3616
    %v3618 = vpop.f32.mrb[0].mxu0
    %3619 = vdwg.mxu0
    %v3620 = vmax.f32 %v3612, 0.0
    %v3621 = vmax.f32 %v3617, 0.0
    %s3622 = scalar_lea.vmem %s4, 64
    %v3623 = vld [vmem:[%s3622] sm:$0xff]
    %v3624 = vld [vmem:[%s3622 + $0x8] sm:$0xff]
    %v3625 = vld [vmem:[%s3622 + $0x10] sm:$0xff]
    %v3626 = vld [vmem:[%s3622 + $0x18] sm:$0xff]
    %v3627 = vld [vmem:[%s3622 + $0x20] sm:$0xff]
    %v3628 = vld [vmem:[%s3622 + $0x28] sm:$0xff]
    %v3629 = vld [vmem:[%s3622 + $0x30] sm:$0xff]
    %v3630 = vld [vmem:[%s3622 + $0x38] sm:$0xff]
    %v3631 = vlaneseq
    %v3632 = vshrl.u32 %v3631, 7
    %v3633 = vsub.s32 3, %v3632
    %v3634 = vrot.slane %v1887, %v3633
    %v3636 = vsel %vm1803, %v3620, 0
    %v3639 = vsel %vm1803, %v3621, 0
    %3641 = vmatprep.subr.mxu0 0.0
    %3642 = vmatpush1.msra.mxu0 %v3623
    %3643 = vmatprep.subr.mxu0 0.0
    %3644 = vmatpush1.msra.mxu0 %v3624
    %3645 = vmatprep.subr.mxu0 0.0
    %3646 = vmatpush1.msra.mxu0 %v3625
    %3647 = vmatprep.subr.mxu0 0.0
    %3648 = vmatpush1.msra.mxu0 %v3626
    %3649 = vmatprep.subr.mxu0 0.0
    %3650 = vmatpush1.msra.mxu0 %v3627
    %3651 = vmatprep.subr.mxu0 0.0
    %3652 = vmatpush1.msra.mxu0 %v3628
    %3653 = vmatprep.subr.mxu0 0.0
    %3654 = vmatpush1.msra.mxu0 %v3629
    %3655 = vmatprep.subr.mxu0 0.0
    %3656 = vmatpush1.msra.mxu0 %v3630
    %3657 = vmatprep.subr.mxu0 0.0
    %3658 = vmatpush1.msra.mxu0 0.0
    %3659 = vmatprep.subr.mxu0 0.0
    %3660 = vmatpush1.msra.mxu0 0.0
    %3661 = vmatprep.subr.mxu0 0.0
    %3662 = vmatpush1.msra.mxu0 0.0
    %3663 = vmatprep.subr.mxu0 0.0
    %3664 = vmatpush1.msra.mxu0 0.0
    %3665 = vmatprep.subr.mxu0 0.0
    %3666 = vmatpush1.msra.mxu0 0.0
    %3667 = vmatprep.subr.mxu0 0.0
    %3668 = vmatpush1.msra.mxu0 0.0
    %3669 = vmatprep.subr.mxu0 0.0
    %3670 = vmatpush1.msra.mxu0 0.0
    %3671 = vmatprep.subr.mxu0 0.0
    %3672 = vmatpush1.msra.mxu0 0.0
    %3673 = vmatprep.subr.mxu0 0.0
    %3674 = vmatpush1.msra.mxu0 0.0
    %3675 = vmatprep.subr.mxu0 0.0
    %3676 = vmatpush1.msra.mxu0 0.0
    %3677 = vmatprep.subr.mxu0 0.0
    %3678 = vmatpush1.msra.mxu0 0.0
    %3679 = vmatprep.subr.mxu0 0.0
    %3680 = vmatpush1.msra.mxu0 0.0
    %3681 = vmatprep.subr.mxu0 0.0
    %3682 = vmatpush1.msra.mxu0 0.0
    %3683 = vmatprep.subr.mxu0 0.0
    %3684 = vmatpush1.msra.mxu0 0.0
    %3685 = vmatprep.subr.mxu0 0.0
    %3686 = vmatpush1.msra.mxu0 0.0
    %3687 = vmatprep.subr.mxu0 0.0
    %3688 = vmatpush1.msra.mxu0 0.0
    %3689 = vmatprep.subr.mxu0 0.0
    %3690 = vmatpush1.msra.mxu0 0.0
    %3691 = vmatprep.subr.mxu0 0.0
    %3692 = vmatpush1.msra.mxu0 0.0
    %3693 = vmatprep.subr.mxu0 0.0
    %3694 = vmatpush1.msra.mxu0 0.0
    %3695 = vmatprep.subr.mxu0 0.0
    %3696 = vmatpush1.msra.mxu0 0.0
    %3697 = vmatprep.subr.mxu0 0.0
    %3698 = vmatpush1.msra.mxu0 0.0
    %3699 = vmatprep.subr.mxu0 0.0
    %3700 = vmatpush1.msra.mxu0 0.0
    %3701 = vmatprep.subr.mxu0 0.0
    %3702 = vmatpush1.msra.mxu0 0.0
    %3703 = vmatprep.subr.mxu0 0.0
    %3704 = vmatpush1.msra.mxu0 0.0
    %3705 = vmatprep.mubr.f32.mxu0 0.0
    %3706 = vmatmul.mubr.f32.gmra.mrb[0].mxu0 %v3636
    %v3707 = vpop.f32.mrb[0].mxu0
    %v3708 = vadd.f32 %v3634, %v3707
    %v3709 = vpop.f32.mrb[0].mxu0
    %3710 = vmatprep.mubr.f32.mxu0 0.0
    %3711 = vmatmul.mubr.f32.gmra.mrb[0].mxu0 %v3639
    %v3712 = vpop.f32.mrb[0].mxu0
    %v3713 = vadd.f32 %v3634, %v3712
    %v3714 = vpop.f32.mrb[0].mxu0
    %3715 = vdwg.mxu0
    %v3716 = vadd.f32 %v3476, %v3708
    %v3717 = vadd.f32 %v3477, %v3713
    %v3718 = vld [vmem:[#allocation5 + $0x10] sm:$0x1]
    %v3719 = vld [vmem:[#allocation5 + $0x11] sm:$0x1]
    %v3720 = vsel %vm55, %v3716, 0.0
    %3721 = vadd.xlane.f32.xlu0 %v3720
    %v3722 = vpop.xlane.xlu0 %3721
    %v3723 = vsel %vm55, %v3717, 0.0
    %3724 = vadd.xlane.f32.xlu0 %v3723
    %v3725 = vpop.xlane.xlu0 %3724
    %v3726 = vmul.f32 %v3722, %v62
    %v3727 = vmul.f32 %v3725, %v62
    %v3728 = vsub.f32 %v3716, %v3726
    %v3729 = vsub.f32 %v3717, %v3727
    %v3730 = vmul.f32 %v3728, %v3728
    %v3731 = vmul.f32 %v3729, %v3729
    %v3732 = vsel %vm55, %v3730, 0.0
    %3733 = vadd.xlane.f32.xlu0 %v3732
    %v3734 = vpop.xlane.xlu0 %3733
    %v3735 = vsel %vm55, %v3731, 0.0
    %3736 = vadd.xlane.f32.xlu0 %v3735
    %v3737 = vpop.xlane.xlu0 %3736
    %v3738 = vmul.f32 %v3734, 0.032258064
    %v3739 = vmul.f32 %v3737, 0.032258064
    %v3740 = vrsqrt.pop %v3738
    %v3741 = vmul.f32 %v3738, %v3740
    %vm3742 = vcmp.eq.f32.partialorder %v3738, inf
    %v3743 = vsel %vm3742, %v3738, %v3741
    %vm3744 = vcmp.eq.f32.partialorder %v3738, 0.0
    %v3745 = vand.u32 %v3738, 2147483648
    %v3746 = vsel %vm3744, %v3745, %v3743
    %v3747 = vrsqrt.pop %v3739
    %v3748 = vmul.f32 %v3739, %v3747
    %vm3749 = vcmp.eq.f32.partialorder %v3739, inf
    %v3750 = vsel %vm3749, %v3739, %v3748
    %vm3751 = vcmp.eq.f32.partialorder %v3739, 0.0
    %v3752 = vand.u32 %v3739, 2147483648
    %v3753 = vsel %vm3751, %v3752, %v3750
    %v3754 = vadd.f32 %v3746, 1e-06
    %v3755 = vadd.f32 %v3753, 1e-06
    %v3756 = vrcp.pop %v3754
    %v3757 = vrcp.pop %v3755
    %v3758 = vlaneseq
    %v3759 = vshrl.u32 %v3758, 7
    %v3760 = vsub.s32 0, %v3759
    %v3761 = vrot.slane %v3718, %v3760
    %v3762 = vmul.f32 %v3761, %v3728
    %v3763 = vmul.f32 %v3761, %v3729
    %v3764 = vmul.f32 %v3762, %v3756
    %v3765 = vmul.f32 %v3763, %v3757
    %v3766 = vlaneseq
    %v3767 = vshrl.u32 %v3766, 7
    %v3768 = vsub.s32 0, %v3767
    %v3769 = vrot.slane %v3719, %v3768
    %v3770 = vadd.f32 %v3764, %v3769
    %v3771 = vadd.f32 %v3765, %v3769
    %3772 = vst.msk [vmem:[#allocation7] sm:$0xff] %vm55, %v3770
    %3773 = vst.msk [vmem:[#allocation7 + $0x8] sm:$0xff] %vm55, %v3771
    // Predicated region
    $region34: #{tpu_custom_call.1} parent=1 // pred_check
      _
    $region35: #{tpu_custom_call.1} parent=1 // pred_check_branch
      %3775 = sbr.rel (0) target = $region37
    $region36: #{tpu_custom_call.1} parent=1 // pred_region
      %s3777 = ssub.s32 256, 256
      %3778 = vsyncadd [#allocation4], %s3777
      %s3779 = sshll.u32 [#allocation7], 4
      %s3780 = int_to_ptr.vmem [resolvable:$true] %s3779
      %3785 = dma.vmem_to_hbm [thread:$0]  %s3780, 256, %s6, [#allocation4], 128, 128, 8
    $region37: #{tpu_custom_call.1} parent=1 // pred_fallthru
      _
    // Predicated region
    $region38: #{tpu_custom_call.1} parent=1 // pred_check
      _
    $region39: #{tpu_custom_call.1} parent=1 // pred_check_branch
      %3787 = sbr.rel (0) target = $region41
    $region40: #{tpu_custom_call.1} parent=1 // pred_region
      %3788 = dma.done [#allocation4], 256
    $region41: #{tpu_custom_call.1} parent=1 // pred_fallthru
      _
    %3789 = vsyncpa [#allocation3], 1
    %3790 = vsyncpa [#allocation6], 1
    %3791 = vsyncpa [#allocation4], 1

</llo_original>
